<compile_context>
chip_gen: v6e
topology: v6e:2x2x1
jax: 0.10.0
libtpu: 0.0.40
codegen_flags: <defaults>
</compile_context>

<pallas_src>
import functools

import jax
import jax.numpy as jnp
from jax.experimental import pallas as pl
from jax.experimental.pallas import tpu as pltpu


# ------------------------------ Pallas kernel ------------------------------- #

def fused_calibrate_kernel(x_ref, mask_ref, w_in_ref, b_in_ref,
                           w1_ref, b1_ref, w2_ref, b2_ref,
                           w_out_ref, b_out_ref,
                           out_ref,
                           fea_ref, h_ref, col_ref,
                           *, layers, Wp):
    """Whole CalibrateNetwork forward for B lane-concatenated images.

    x_ref   : (C, Wtot)  input images: channels zero-padded 3->C, spatially
              ring-padded (SAME padding), flattened to L=(H+2)*(W+2), lane-
              padded to Lpad (multiple of 128), B images concatenated on lanes
              (Wtot = B*Lpad).
    mask_ref: (1, Wtot)  1.0 at interior pixels, 0.0 on ring rows/cols and on
              the Lpad-L lane padding.
    w*_ref  : (Cout, 9*Cin) folded conv+BN weight matrices, b*_ref: (Cout, 1).
    out_ref : (OP, Wtot) delta = x - sigmoid(out_conv(fea)); first 3 channels
              are real, the rest (and the ring/pad lanes) are cropped later.
    fea/h   : (C, Wtot)  VMEM activations, col_ref: (9*C, Wtot) im2col scratch.
    """
    C, Wtot = fea_ref.shape
    OP = out_ref.shape[0]
    # lane offset of 3x3 tap (dy, dx) on a flattened padded plane
    offsets = [(dy - 1) * Wp + (dx - 1) for dy in range(3) for dx in range(3)]

    # Hoisted broadcasts (JAX does not CSE broadcast_in_dim).
    mask_c = jnp.broadcast_to(mask_ref[...], (C, Wtot))
    b_in = jnp.broadcast_to(b_in_ref[...], (C, Wtot))
    b1 = jnp.broadcast_to(b1_ref[...], (C, Wtot))
    b2 = jnp.broadcast_to(b2_ref[...], (C, Wtot))
    b_out = jnp.broadcast_to(b_out_ref[...], (OP, Wtot))
    w1 = w1_ref[...]
    w2 = w2_ref[...]

    def conv(src, wmat, bias_full):
        # im2col via XLU lane rotations of ONE aligned load: tap[l] = src[l+off].
        # Wrap-around (and cross-image) reads only affect ring / lane-pad output
        # columns, which are zeroed by mask_c (activations) or cropped (output).
        for k, off in enumerate(offsets):
            if off == 0:
                col_ref[k * C:(k + 1) * C, :] = src
            else:
                col_ref[k * C:(k + 1) * C, :] = pltpu.roll(src, (-off) % Wtot,
                                                           axis=1)
        y = jnp.dot(wmat, col_ref[...], preferred_element_type=jnp.float32)
        return y + bias_full

    # ---- in_conv: Conv(3->C) + BN(folded) + ReLU (input channels padded to C)
    x = x_ref[...]                                               # (C, Wtot)
    fea_ref[...] = jnp.maximum(conv(x, w_in_ref[...], b_in), 0.0) * mask_c

    # ---- residual blocks; weights are shared across all `layers` blocks.
    # `layers` is a small static int -> unrolled Python loop (LLO visibility).
    for _ in range(layers):
        h_ref[...] = jnp.maximum(conv(fea_ref[...], w1, b1), 0.0) * mask_c
        fea_ref[...] = (fea_ref[...]
                        + jnp.maximum(conv(h_ref[...], w2, b2), 0.0) * mask_c)

    # ---- out_conv + sigmoid; delta = input - sigmoid(conv(fea)).
    # No mask multiply: ring / pad / extra-channel lanes are cropped outside.
    y = conv(fea_ref[...], w_out_ref[...], b_out)                # (OP, Wtot)
    out_ref[...] = x[0:OP, :] - jax.nn.sigmoid(y)


# ------------------------------ glue wrapper -------------------------------- #

def _const_spec(a):
    zero = (0,) * a.ndim
    return pl.BlockSpec(a.shape, lambda n, _z=zero: _z)


def calibrate_network_forward(x_nchw, params, layers, imgs_per_step=None):
    """x_nchw: (N, 3, H, W) float32 -> delta (N, 3, H, W)."""
    f32 = jnp.float32
    N, cin_img, H, W = x_nchw.shape
    w_in, b_in = params["in"]
    (w1, b1), (w2, b2) = params["block"]
    w_out, b_out = params["out"]
    C = w_in.shape[3]
    assert C >= cin_img
    OP = min(C, 8)                           # padded out-channel count (>= 3)
    Hp, Wp = H + 2, W + 2
    L = Hp * Wp
    Lpad = ((L + 127) // 128) * 128          # lane-dense interior width

    # images per grid step (lane-concatenated); keep grid length >= 2 for v7x.
    if imgs_per_step is None:
        imgs_per_step = 2 if (N % 2 == 0 and N >= 4) else 1
    B = imgs_per_step
    assert N % B == 0
    G = N // B
    Wtot = B * Lpad

    # -- one-time input massaging: channel pad 3->C (sublane-aligned im2col
    #    rows), ring pad, flatten, lane pad to Lpad, lane-concat B images.
    x = jnp.pad(x_nchw.astype(f32), ((0, 0), (0, C - cin_img), (1, 1), (1, 1)))
    x = jnp.pad(x.reshape(N, C, L), ((0, 0), (0, 0), (0, Lpad - L)))
    x = x.reshape(G, B, C, Lpad).transpose(0, 2, 1, 3).reshape(G, C, Wtot)

    # interior mask: zero on ring rows/cols and on the Lpad-L lane padding
    yy = jnp.arange(Hp).reshape(Hp, 1)
    xx = jnp.arange(Wp).reshape(1, Wp)
    m = (((yy >= 1) & (yy <= H) & (xx >= 1) & (xx <= W))
         .astype(f32).reshape(1, L))
    mask = jnp.tile(jnp.pad(m, ((0, 0), (0, Lpad - L))), (1, B))   # (1, Wtot)

    # -- one-time weight massaging: HWIO -> (Cout, 9*Cin) matmul matrices
    def to_wmat(w):
        kh, kw, ci, co = w.shape
        return w.reshape(kh * kw * ci, co).T.astype(f32)

    w_in_p = jnp.pad(w_in, ((0, 0), (0, 0), (0, C - cin_img), (0, 0)))
    w_out_p = jnp.pad(w_out, ((0, 0), (0, 0), (0, 0), (0, OP - w_out.shape[3])))
    b_out_p = jnp.pad(b_out, (0, OP - b_out.shape[0]))
    wm_in, wm1, wm2, wm_out = map(to_wmat, (w_in_p, w1, w2, w_out_p))
    bc_in = b_in.reshape(C, 1).astype(f32)
    bc1 = b1.reshape(C, 1).astype(f32)
    bc2 = b2.reshape(C, 1).astype(f32)
    bc_out = b_out_p.reshape(OP, 1).astype(f32)

    kernel = functools.partial(fused_calibrate_kernel, layers=layers, Wp=Wp)

    # TODO(synk): for large H, W add a row-strip grid axis (1-row halo) so the
    # col/fea/h scratch stays within VMEM (64 MiB physical on v7x).
    out = pl.pallas_call(
        kernel,
        out_shape=jax.ShapeDtypeStruct((G, OP, Wtot), f32),
        grid_spec=pltpu.PrefetchScalarGridSpec(
            num_scalar_prefetch=0,
            grid=(G,),                                   # B images per step
            in_specs=[
                pl.BlockSpec((None, C, Wtot), lambda n: (n, 0, 0)),
                _const_spec(mask),
                _const_spec(wm_in), _const_spec(bc_in),
                _const_spec(wm1), _const_spec(bc1),
                _const_spec(wm2), _const_spec(bc2),
                _const_spec(wm_out), _const_spec(bc_out),
            ],
            out_specs=pl.BlockSpec((None, OP, Wtot), lambda n: (n, 0, 0)),
            scratch_shapes=[pltpu.VMEM((C, Wtot), f32),      # fea
                            pltpu.VMEM((C, Wtot), f32),      # h
                            pltpu.VMEM((9 * C, Wtot), f32)],  # im2col
        ),
        compiler_params=pltpu.CompilerParams(
            dimension_semantics=("parallel",)),              # 2 TCs on v7x
    )(x, mask, wm_in, bc_in, wm1, bc1, wm2, bc2, wm_out, bc_out)

    # un-concat the B images, crop channel pad, lane pad and the zero ring
    out = out.reshape(G, OP, B, Lpad).transpose(0, 2, 1, 3).reshape(N, OP, Lpad)
    return out[:, :3, :L].reshape(N, 3, Hp, Wp)[:, :, 1:-1, 1:-1]


# -------------------------- parameters / reference -------------------------- #

def fold_bn(w, b, gamma, beta, mean, var, eps=1e-5):
    """Fold eval-mode BatchNorm2d into the preceding conv (HWIO weights)."""
    s = gamma / jnp.sqrt(var + eps)
    return w * s[None, None, None, :], (b - mean) * s + beta


def make_conv_bn_params(key, cin, cout):
    ks = jax.random.split(key, 6)
    w = 0.1 * jax.random.normal(ks[0], (3, 3, cin, cout), jnp.float32)
    b = 0.05 * jax.random.normal(ks[1], (cout,), jnp.float32)
    gamma = 1.0 + 0.1 * jax.random.normal(ks[2], (cout,), jnp.float32)
    beta = 0.1 * jax.random.normal(ks[3], (cout,), jnp.float32)
    mean = 0.1 * jax.random.normal(ks[4], (cout,), jnp.float32)
    var = 0.5 + jax.random.uniform(ks[5], (cout,), jnp.float32)
    # TODO(synk): BatchNorm training-mode batch statistics are not modeled;
    # eval-mode running stats are folded into the conv instead.
    return fold_bn(w, b, gamma, beta, mean, var)


def make_params(key, channels):
    k_in, k_b1, k_b2, k_out = jax.random.split(key, 4)
    w_out = 0.1 * jax.random.normal(jax.random.fold_in(k_out, 0),
                                    (3, 3, channels, 3), jnp.float32)
    b_out = 0.05 * jax.random.normal(jax.random.fold_in(k_out, 1), (3,), jnp.float32)
    return {
        "in": make_conv_bn_params(k_in, 3, channels),
        "block": (make_conv_bn_params(k_b1, channels, channels),
                  make_conv_bn_params(k_b2, channels, channels)),
        "out": (w_out, b_out),
    }


def _ref_conv(x, w, b):
    y = jax.lax.conv_general_dilated(
        x, w, window_strides=(1, 1), padding="SAME",
        dimension_numbers=("NHWC", "HWIO", "NHWC"))
    return y + b[None, None, None, :]


def reference_forward(x_nchw, params, layers):
    x = jnp.transpose(x_nchw, (0, 2, 3, 1))
    w_in, b_in = params["in"]
    fea = jax.nn.relu(_ref_conv(x, w_in, b_in))
    (w1, b1), (w2, b2) = params["block"]
    for _ in range(layers):
        h = jax.nn.relu(_ref_conv(fea, w1, b1))
        fea = fea + jax.nn.relu(_ref_conv(h, w2, b2))
    w_out, b_out = params["out"]
    delta = x - jax.nn.sigmoid(_ref_conv(fea, w_out, b_out))
    return jnp.transpose(delta, (0, 3, 1, 2))


# ----------------------------------- main ------------------------------------ #

if __name__ == "__main__":
    key = jax.random.PRNGKey(0)
    k_params, k_x = jax.random.split(key)

    layers = 2
    channels = 8
    N, H, W = 4, 16, 16          # N=4 -> 2 images per grid step, grid=(2,)

    params = make_params(k_params, channels)
    x = jax.random.uniform(k_x, (N, 3, H, W), jnp.float32)

    fwd = jax.jit(functools.partial(calibrate_network_forward, layers=layers))
    out = fwd(x, params)
    out = jax.block_until_ready(out)

    ref = reference_forward(x, params, layers)
    assert out.shape == (N, 3, H, W), out.shape
    max_err = float(jnp.max(jnp.abs(out - ref)))
    assert max_err < 5e-4, f"mismatch vs reference: {max_err}"

    print("KERNEL_OK")
</pallas_src>

<mosaic_0001>
module attributes {stable_mosaic.version = 11 : i64} {
  func.func @fused_calibrate_kernel(%arg0: i32, %arg1: memref<1x8x768xf32, #tpu.memory_space<vmem>>, %arg2: memref<1x768xf32, #tpu.memory_space<vmem>>, %arg3: memref<8x72xf32, #tpu.memory_space<vmem>>, %arg4: memref<8x1xf32, #tpu.memory_space<vmem>>, %arg5: memref<8x72xf32, #tpu.memory_space<vmem>>, %arg6: memref<8x1xf32, #tpu.memory_space<vmem>>, %arg7: memref<8x72xf32, #tpu.memory_space<vmem>>, %arg8: memref<8x1xf32, #tpu.memory_space<vmem>>, %arg9: memref<8x72xf32, #tpu.memory_space<vmem>>, %arg10: memref<8x1xf32, #tpu.memory_space<vmem>>, %arg11: memref<1x8x768xf32, #tpu.memory_space<vmem>>, %arg12: memref<8x768xf32, #tpu.memory_space<vmem>>, %arg13: memref<8x768xf32, #tpu.memory_space<vmem>>, %arg14: memref<72x768xf32, #tpu.memory_space<vmem>>) attributes {dimension_semantics = [#tpu.dimension_semantics<parallel>], iteration_bounds = array<i64: 2>, scalar_prefetch = 0 : i64, scratch_operands = 3 : i64, tpu.core_type = #tpu.core_type<tc>, window_params = [{transform_indices = @transform_0, window_bounds = array<i64: 1, 8, 768>}, {pipeline_mode = #tpu.pipeline_mode<synchronous>, transform_indices = @transform_1, window_bounds = array<i64: 1, 768>}, {pipeline_mode = #tpu.pipeline_mode<synchronous>, transform_indices = @transform_2, window_bounds = array<i64: 8, 72>}, {pipeline_mode = #tpu.pipeline_mode<synchronous>, transform_indices = @transform_3, window_bounds = array<i64: 8, 1>}, {pipeline_mode = #tpu.pipeline_mode<synchronous>, transform_indices = @transform_4, window_bounds = array<i64: 8, 72>}, {pipeline_mode = #tpu.pipeline_mode<synchronous>, transform_indices = @transform_5, window_bounds = array<i64: 8, 1>}, {pipeline_mode = #tpu.pipeline_mode<synchronous>, transform_indices = @transform_6, window_bounds = array<i64: 8, 72>}, {pipeline_mode = #tpu.pipeline_mode<synchronous>, transform_indices = @transform_7, window_bounds = array<i64: 8, 1>}, {pipeline_mode = #tpu.pipeline_mode<synchronous>, transform_indices = @transform_8, window_bounds = array<i64: 8, 72>}, {pipeline_mode = #tpu.pipeline_mode<synchronous>, transform_indices = @transform_9, window_bounds = array<i64: 8, 1>}, {transform_indices = @transform_10, window_bounds = array<i64: 1, 8, 768>}]} {
    %c0 = arith.constant 0 : index
    %c0_0 = arith.constant 0 : index
    %0 = vector.load %arg2[%c0, %c0_0] : memref<1x768xf32, #tpu.memory_space<vmem>>, vector<1x768xf32>
    %1 = vector.shape_cast %0 : vector<1x768xf32> to vector<1x768xf32>
    %2 = vector.broadcast %1 : vector<1x768xf32> to vector<8x768xf32>
    %c0_1 = arith.constant 0 : index
    %c0_2 = arith.constant 0 : index
    %3 = vector.load %arg4[%c0_1, %c0_2] : memref<8x1xf32, #tpu.memory_space<vmem>>, vector<8x1xf32>
    %4 = vector.shape_cast %3 : vector<8x1xf32> to vector<8x1xf32>
    %5 = vector.broadcast %4 : vector<8x1xf32> to vector<8x768xf32>
    %c0_3 = arith.constant 0 : index
    %c0_4 = arith.constant 0 : index
    %6 = vector.load %arg6[%c0_3, %c0_4] : memref<8x1xf32, #tpu.memory_space<vmem>>, vector<8x1xf32>
    %7 = vector.shape_cast %6 : vector<8x1xf32> to vector<8x1xf32>
    %8 = vector.broadcast %7 : vector<8x1xf32> to vector<8x768xf32>
    %c0_5 = arith.constant 0 : index
    %c0_6 = arith.constant 0 : index
    %9 = vector.load %arg8[%c0_5, %c0_6] : memref<8x1xf32, #tpu.memory_space<vmem>>, vector<8x1xf32>
    %10 = vector.shape_cast %9 : vector<8x1xf32> to vector<8x1xf32>
    %11 = vector.broadcast %10 : vector<8x1xf32> to vector<8x768xf32>
    %c0_7 = arith.constant 0 : index
    %c0_8 = arith.constant 0 : index
    %12 = vector.load %arg10[%c0_7, %c0_8] : memref<8x1xf32, #tpu.memory_space<vmem>>, vector<8x1xf32>
    %13 = vector.shape_cast %12 : vector<8x1xf32> to vector<8x1xf32>
    %14 = vector.broadcast %13 : vector<8x1xf32> to vector<8x768xf32>
    %c0_9 = arith.constant 0 : index
    %c0_10 = arith.constant 0 : index
    %15 = vector.load %arg5[%c0_9, %c0_10] : memref<8x72xf32, #tpu.memory_space<vmem>>, vector<8x72xf32>
    %c0_11 = arith.constant 0 : index
    %c0_12 = arith.constant 0 : index
    %16 = vector.load %arg7[%c0_11, %c0_12] : memref<8x72xf32, #tpu.memory_space<vmem>>, vector<8x72xf32>
    %c0_13 = arith.constant 0 : index
    %c0_14 = arith.constant 0 : index
    %c0_15 = arith.constant 0 : index
    %17 = vector.load %arg1[%c0_13, %c0_14, %c0_15] : memref<1x8x768xf32, #tpu.memory_space<vmem>>, vector<1x8x768xf32>
    %18 = vector.shape_cast %17 : vector<1x8x768xf32> to vector<8x768xf32>
    %c0_16 = arith.constant 0 : index
    %c0_17 = arith.constant 0 : index
    %19 = vector.load %arg3[%c0_16, %c0_17] : memref<8x72xf32, #tpu.memory_space<vmem>>, vector<8x72xf32>
    %c19_i32 = arith.constant 19 : i32
    %20 = tpu.dynamic_rotate %18 by %c19_i32 dim 1 : vector<8x768xf32>, i32 -> vector<8x768xf32>
    %c0_18 = arith.constant 0 : index
    %c0_19 = arith.constant 0 : index
    %21 = vector.load %arg14[%c0_18, %c0_19] : memref<72x768xf32, #tpu.memory_space<vmem>>, vector<8x768xf32>
    tpu.vector_store %arg14[%c0_18, %c0_19], %20 {strides = array<i32>} : memref<72x768xf32, #tpu.memory_space<vmem>>, vector<8x768xf32>,
    %c18_i32 = arith.constant 18 : i32
    %22 = tpu.dynamic_rotate %18 by %c18_i32 dim 1 : vector<8x768xf32>, i32 -> vector<8x768xf32>
    %c8 = arith.constant 8 : index
    %c0_20 = arith.constant 0 : index
    %23 = vector.load %arg14[%c8, %c0_20] : memref<72x768xf32, #tpu.memory_space<vmem>>, vector<8x768xf32>
    tpu.vector_store %arg14[%c8, %c0_20], %22 {strides = array<i32>} : memref<72x768xf32, #tpu.memory_space<vmem>>, vector<8x768xf32>,
    %c17_i32 = arith.constant 17 : i32
    %24 = tpu.dynamic_rotate %18 by %c17_i32 dim 1 : vector<8x768xf32>, i32 -> vector<8x768xf32>
    %c16 = arith.constant 16 : index
    %c0_21 = arith.constant 0 : index
    %25 = vector.load %arg14[%c16, %c0_21] : memref<72x768xf32, #tpu.memory_space<vmem>>, vector<8x768xf32>
    tpu.vector_store %arg14[%c16, %c0_21], %24 {strides = array<i32>} : memref<72x768xf32, #tpu.memory_space<vmem>>, vector<8x768xf32>,
    %c1_i32 = arith.constant 1 : i32
    %26 = tpu.dynamic_rotate %18 by %c1_i32 dim 1 : vector<8x768xf32>, i32 -> vector<8x768xf32>
    %c24 = arith.constant 24 : index
    %c0_22 = arith.constant 0 : index
    %27 = vector.load %arg14[%c24, %c0_22] : memref<72x768xf32, #tpu.memory_space<vmem>>, vector<8x768xf32>
    tpu.vector_store %arg14[%c24, %c0_22], %26 {strides = array<i32>} : memref<72x768xf32, #tpu.memory_space<vmem>>, vector<8x768xf32>,
    %c32 = arith.constant 32 : index
    %c0_23 = arith.constant 0 : index
    %28 = vector.load %arg14[%c32, %c0_23] : memref<72x768xf32, #tpu.memory_space<vmem>>, vector<8x768xf32>
    tpu.vector_store %arg14[%c32, %c0_23], %18 {strides = array<i32>} : memref<72x768xf32, #tpu.memory_space<vmem>>, vector<8x768xf32>,
    %c767_i32 = arith.constant 767 : i32
    %29 = tpu.dynamic_rotate %18 by %c767_i32 dim 1 : vector<8x768xf32>, i32 -> vector<8x768xf32>
    %c40 = arith.constant 40 : index
    %c0_24 = arith.constant 0 : index
    %30 = vector.load %arg14[%c40, %c0_24] : memref<72x768xf32, #tpu.memory_space<vmem>>, vector<8x768xf32>
    tpu.vector_store %arg14[%c40, %c0_24], %29 {strides = array<i32>} : memref<72x768xf32, #tpu.memory_space<vmem>>, vector<8x768xf32>,
    %c751_i32 = arith.constant 751 : i32
    %31 = tpu.dynamic_rotate %18 by %c751_i32 dim 1 : vector<8x768xf32>, i32 -> vector<8x768xf32>
    %c48 = arith.constant 48 : index
    %c0_25 = arith.constant 0 : index
    %32 = vector.load %arg14[%c48, %c0_25] : memref<72x768xf32, #tpu.memory_space<vmem>>, vector<8x768xf32>
    tpu.vector_store %arg14[%c48, %c0_25], %31 {strides = array<i32>} : memref<72x768xf32, #tpu.memory_space<vmem>>, vector<8x768xf32>,
    %c750_i32 = arith.constant 750 : i32
    %33 = tpu.dynamic_rotate %18 by %c750_i32 dim 1 : vector<8x768xf32>, i32 -> vector<8x768xf32>
    %c56 = arith.constant 56 : index
    %c0_26 = arith.constant 0 : index
    %34 = vector.load %arg14[%c56, %c0_26] : memref<72x768xf32, #tpu.memory_space<vmem>>, vector<8x768xf32>
    tpu.vector_store %arg14[%c56, %c0_26], %33 {strides = array<i32>} : memref<72x768xf32, #tpu.memory_space<vmem>>, vector<8x768xf32>,
    %c749_i32 = arith.constant 749 : i32
    %35 = tpu.dynamic_rotate %18 by %c749_i32 dim 1 : vector<8x768xf32>, i32 -> vector<8x768xf32>
    %c64 = arith.constant 64 : index
    %c0_27 = arith.constant 0 : index
    %36 = vector.load %arg14[%c64, %c0_27] : memref<72x768xf32, #tpu.memory_space<vmem>>, vector<8x768xf32>
    tpu.vector_store %arg14[%c64, %c0_27], %35 {strides = array<i32>} : memref<72x768xf32, #tpu.memory_space<vmem>>, vector<8x768xf32>,
    %c0_28 = arith.constant 0 : index
    %c0_29 = arith.constant 0 : index
    %37 = vector.load %arg14[%c0_28, %c0_29] : memref<72x768xf32, #tpu.memory_space<vmem>>, vector<72x768xf32>
    %cst = arith.constant dense<0.000000e+00> : vector<8x768xf32>
    %38 = tpu.matmul %19, %37, %cst {dimension_numbers = #tpu.dot_dimension_numbers<[1], [0], [0], [1], [0, 0, 1, 1], [], []>} : vector<8x72xf32>, vector<72x768xf32>, vector<8x768xf32> -> vector<8x768xf32>
    %39 = arith.addf %38, %5 : vector<8x768xf32>
    %cst_30 = arith.constant 0.000000e+00 : f32
    %40 = vector.broadcast %cst_30 : f32 to vector<8x768xf32>
    %41 = arith.maximumf %39, %40 : vector<8x768xf32>
    %42 = arith.mulf %41, %2 : vector<8x768xf32>
    %c0_31 = arith.constant 0 : index
    %c0_32 = arith.constant 0 : index
    %43 = vector.load %arg12[%c0_31, %c0_32] : memref<8x768xf32, #tpu.memory_space<vmem>>, vector<8x768xf32>
    tpu.vector_store %arg12[%c0_31, %c0_32], %42 {strides = array<i32>} : memref<8x768xf32, #tpu.memory_space<vmem>>, vector<8x768xf32>,
    %c0_33 = arith.constant 0 : index
    %c0_34 = arith.constant 0 : index
    %44 = vector.load %arg12[%c0_33, %c0_34] : memref<8x768xf32, #tpu.memory_space<vmem>>, vector<8x768xf32>
    %c19_i32_35 = arith.constant 19 : i32
    %45 = tpu.dynamic_rotate %44 by %c19_i32_35 dim 1 : vector<8x768xf32>, i32 -> vector<8x768xf32>
    %c0_36 = arith.constant 0 : index
    %c0_37 = arith.constant 0 : index
    %46 = vector.load %arg14[%c0_36, %c0_37] : memref<72x768xf32, #tpu.memory_space<vmem>>, vector<8x768xf32>
    tpu.vector_store %arg14[%c0_36, %c0_37], %45 {strides = array<i32>} : memref<72x768xf32, #tpu.memory_space<vmem>>, vector<8x768xf32>,
    %c18_i32_38 = arith.constant 18 : i32
    %47 = tpu.dynamic_rotate %44 by %c18_i32_38 dim 1 : vector<8x768xf32>, i32 -> vector<8x768xf32>
    %c8_39 = arith.constant 8 : index
    %c0_40 = arith.constant 0 : index
    %48 = vector.load %arg14[%c8_39, %c0_40] : memref<72x768xf32, #tpu.memory_space<vmem>>, vector<8x768xf32>
    tpu.vector_store %arg14[%c8_39, %c0_40], %47 {strides = array<i32>} : memref<72x768xf32, #tpu.memory_space<vmem>>, vector<8x768xf32>,
    %c17_i32_41 = arith.constant 17 : i32
    %49 = tpu.dynamic_rotate %44 by %c17_i32_41 dim 1 : vector<8x768xf32>, i32 -> vector<8x768xf32>
    %c16_42 = arith.constant 16 : index
    %c0_43 = arith.constant 0 : index
    %50 = vector.load %arg14[%c16_42, %c0_43] : memref<72x768xf32, #tpu.memory_space<vmem>>, vector<8x768xf32>
    tpu.vector_store %arg14[%c16_42, %c0_43], %49 {strides = array<i32>} : memref<72x768xf32, #tpu.memory_space<vmem>>, vector<8x768xf32>,
    %c1_i32_44 = arith.constant 1 : i32
    %51 = tpu.dynamic_rotate %44 by %c1_i32_44 dim 1 : vector<8x768xf32>, i32 -> vector<8x768xf32>
    %c24_45 = arith.constant 24 : index
    %c0_46 = arith.constant 0 : index
    %52 = vector.load %arg14[%c24_45, %c0_46] : memref<72x768xf32, #tpu.memory_space<vmem>>, vector<8x768xf32>
    tpu.vector_store %arg14[%c24_45, %c0_46], %51 {strides = array<i32>} : memref<72x768xf32, #tpu.memory_space<vmem>>, vector<8x768xf32>,
    %c32_47 = arith.constant 32 : index
    %c0_48 = arith.constant 0 : index
    %53 = vector.load %arg14[%c32_47, %c0_48] : memref<72x768xf32, #tpu.memory_space<vmem>>, vector<8x768xf32>
    tpu.vector_store %arg14[%c32_47, %c0_48], %44 {strides = array<i32>} : memref<72x768xf32, #tpu.memory_space<vmem>>, vector<8x768xf32>,
    %c767_i32_49 = arith.constant 767 : i32
    %54 = tpu.dynamic_rotate %44 by %c767_i32_49 dim 1 : vector<8x768xf32>, i32 -> vector<8x768xf32>
    %c40_50 = arith.constant 40 : index
    %c0_51 = arith.constant 0 : index
    %55 = vector.load %arg14[%c40_50, %c0_51] : memref<72x768xf32, #tpu.memory_space<vmem>>, vector<8x768xf32>
    tpu.vector_store %arg14[%c40_50, %c0_51], %54 {strides = array<i32>} : memref<72x768xf32, #tpu.memory_space<vmem>>, vector<8x768xf32>,
    %c751_i32_52 = arith.constant 751 : i32
    %56 = tpu.dynamic_rotate %44 by %c751_i32_52 dim 1 : vector<8x768xf32>, i32 -> vector<8x768xf32>
    %c48_53 = arith.constant 48 : index
    %c0_54 = arith.constant 0 : index
    %57 = vector.load %arg14[%c48_53, %c0_54] : memref<72x768xf32, #tpu.memory_space<vmem>>, vector<8x768xf32>
    tpu.vector_store %arg14[%c48_53, %c0_54], %56 {strides = array<i32>} : memref<72x768xf32, #tpu.memory_space<vmem>>, vector<8x768xf32>,
    %c750_i32_55 = arith.constant 750 : i32
    %58 = tpu.dynamic_rotate %44 by %c750_i32_55 dim 1 : vector<8x768xf32>, i32 -> vector<8x768xf32>
    %c56_56 = arith.constant 56 : index
    %c0_57 = arith.constant 0 : index
    %59 = vector.load %arg14[%c56_56, %c0_57] : memref<72x768xf32, #tpu.memory_space<vmem>>, vector<8x768xf32>
    tpu.vector_store %arg14[%c56_56, %c0_57], %58 {strides = array<i32>} : memref<72x768xf32, #tpu.memory_space<vmem>>, vector<8x768xf32>,
    %c749_i32_58 = arith.constant 749 : i32
    %60 = tpu.dynamic_rotate %44 by %c749_i32_58 dim 1 : vector<8x768xf32>, i32 -> vector<8x768xf32>
    %c64_59 = arith.constant 64 : index
    %c0_60 = arith.constant 0 : index
    %61 = vector.load %arg14[%c64_59, %c0_60] : memref<72x768xf32, #tpu.memory_space<vmem>>, vector<8x768xf32>
    tpu.vector_store %arg14[%c64_59, %c0_60], %60 {strides = array<i32>} : memref<72x768xf32, #tpu.memory_space<vmem>>, vector<8x768xf32>,
    %c0_61 = arith.constant 0 : index
    %c0_62 = arith.constant 0 : index
    %62 = vector.load %arg14[%c0_61, %c0_62] : memref<72x768xf32, #tpu.memory_space<vmem>>, vector<72x768xf32>
    %cst_63 = arith.constant dense<0.000000e+00> : vector<8x768xf32>
    %63 = tpu.matmul %15, %62, %cst_63 {dimension_numbers = #tpu.dot_dimension_numbers<[1], [0], [0], [1], [0, 0, 1, 1], [], []>} : vector<8x72xf32>, vector<72x768xf32>, vector<8x768xf32> -> vector<8x768xf32>
    %64 = arith.addf %63, %8 : vector<8x768xf32>
    %cst_64 = arith.constant 0.000000e+00 : f32
    %65 = vector.broadcast %cst_64 : f32 to vector<8x768xf32>
    %66 = arith.maximumf %64, %65 : vector<8x768xf32>
    %67 = arith.mulf %66, %2 : vector<8x768xf32>
    %c0_65 = arith.constant 0 : index
    %c0_66 = arith.constant 0 : index
    %68 = vector.load %arg13[%c0_65, %c0_66] : memref<8x768xf32, #tpu.memory_space<vmem>>, vector<8x768xf32>
    tpu.vector_store %arg13[%c0_65, %c0_66], %67 {strides = array<i32>} : memref<8x768xf32, #tpu.memory_space<vmem>>, vector<8x768xf32>,
    %c0_67 = arith.constant 0 : index
    %c0_68 = arith.constant 0 : index
    %69 = vector.load %arg12[%c0_67, %c0_68] : memref<8x768xf32, #tpu.memory_space<vmem>>, vector<8x768xf32>
    %c0_69 = arith.constant 0 : index
    %c0_70 = arith.constant 0 : index
    %70 = vector.load %arg13[%c0_69, %c0_70] : memref<8x768xf32, #tpu.memory_space<vmem>>, vector<8x768xf32>
    %c19_i32_71 = arith.constant 19 : i32
    %71 = tpu.dynamic_rotate %70 by %c19_i32_71 dim 1 : vector<8x768xf32>, i32 -> vector<8x768xf32>
    %c0_72 = arith.constant 0 : index
    %c0_73 = arith.constant 0 : index
    %72 = vector.load %arg14[%c0_72, %c0_73] : memref<72x768xf32, #tpu.memory_space<vmem>>, vector<8x768xf32>
    tpu.vector_store %arg14[%c0_72, %c0_73], %71 {strides = array<i32>} : memref<72x768xf32, #tpu.memory_space<vmem>>, vector<8x768xf32>,
    %c18_i32_74 = arith.constant 18 : i32
    %73 = tpu.dynamic_rotate %70 by %c18_i32_74 dim 1 : vector<8x768xf32>, i32 -> vector<8x768xf32>
    %c8_75 = arith.constant 8 : index
    %c0_76 = arith.constant 0 : index
    %74 = vector.load %arg14[%c8_75, %c0_76] : memref<72x768xf32, #tpu.memory_space<vmem>>, vector<8x768xf32>
    tpu.vector_store %arg14[%c8_75, %c0_76], %73 {strides = array<i32>} : memref<72x768xf32, #tpu.memory_space<vmem>>, vector<8x768xf32>,
    %c17_i32_77 = arith.constant 17 : i32
    %75 = tpu.dynamic_rotate %70 by %c17_i32_77 dim 1 : vector<8x768xf32>, i32 -> vector<8x768xf32>
    %c16_78 = arith.constant 16 : index
    %c0_79 = arith.constant 0 : index
    %76 = vector.load %arg14[%c16_78, %c0_79] : memref<72x768xf32, #tpu.memory_space<vmem>>, vector<8x768xf32>
    tpu.vector_store %arg14[%c16_78, %c0_79], %75 {strides = array<i32>} : memref<72x768xf32, #tpu.memory_space<vmem>>, vector<8x768xf32>,
    %c1_i32_80 = arith.constant 1 : i32
    %77 = tpu.dynamic_rotate %70 by %c1_i32_80 dim 1 : vector<8x768xf32>, i32 -> vector<8x768xf32>
    %c24_81 = arith.constant 24 : index
    %c0_82 = arith.constant 0 : index
    %78 = vector.load %arg14[%c24_81, %c0_82] : memref<72x768xf32, #tpu.memory_space<vmem>>, vector<8x768xf32>
    tpu.vector_store %arg14[%c24_81, %c0_82], %77 {strides = array<i32>} : memref<72x768xf32, #tpu.memory_space<vmem>>, vector<8x768xf32>,
    %c32_83 = arith.constant 32 : index
    %c0_84 = arith.constant 0 : index
    %79 = vector.load %arg14[%c32_83, %c0_84] : memref<72x768xf32, #tpu.memory_space<vmem>>, vector<8x768xf32>
    tpu.vector_store %arg14[%c32_83, %c0_84], %70 {strides = array<i32>} : memref<72x768xf32, #tpu.memory_space<vmem>>, vector<8x768xf32>,
    %c767_i32_85 = arith.constant 767 : i32
    %80 = tpu.dynamic_rotate %70 by %c767_i32_85 dim 1 : vector<8x768xf32>, i32 -> vector<8x768xf32>
    %c40_86 = arith.constant 40 : index
    %c0_87 = arith.constant 0 : index
    %81 = vector.load %arg14[%c40_86, %c0_87] : memref<72x768xf32, #tpu.memory_space<vmem>>, vector<8x768xf32>
    tpu.vector_store %arg14[%c40_86, %c0_87], %80 {strides = array<i32>} : memref<72x768xf32, #tpu.memory_space<vmem>>, vector<8x768xf32>,
    %c751_i32_88 = arith.constant 751 : i32
    %82 = tpu.dynamic_rotate %70 by %c751_i32_88 dim 1 : vector<8x768xf32>, i32 -> vector<8x768xf32>
    %c48_89 = arith.constant 48 : index
    %c0_90 = arith.constant 0 : index
    %83 = vector.load %arg14[%c48_89, %c0_90] : memref<72x768xf32, #tpu.memory_space<vmem>>, vector<8x768xf32>
    tpu.vector_store %arg14[%c48_89, %c0_90], %82 {strides = array<i32>} : memref<72x768xf32, #tpu.memory_space<vmem>>, vector<8x768xf32>,
    %c750_i32_91 = arith.constant 750 : i32
    %84 = tpu.dynamic_rotate %70 by %c750_i32_91 dim 1 : vector<8x768xf32>, i32 -> vector<8x768xf32>
    %c56_92 = arith.constant 56 : index
    %c0_93 = arith.constant 0 : index
    %85 = vector.load %arg14[%c56_92, %c0_93] : memref<72x768xf32, #tpu.memory_space<vmem>>, vector<8x768xf32>
    tpu.vector_store %arg14[%c56_92, %c0_93], %84 {strides = array<i32>} : memref<72x768xf32, #tpu.memory_space<vmem>>, vector<8x768xf32>,
    %c749_i32_94 = arith.constant 749 : i32
    %86 = tpu.dynamic_rotate %70 by %c749_i32_94 dim 1 : vector<8x768xf32>, i32 -> vector<8x768xf32>
    %c64_95 = arith.constant 64 : index
    %c0_96 = arith.constant 0 : index
    %87 = vector.load %arg14[%c64_95, %c0_96] : memref<72x768xf32, #tpu.memory_space<vmem>>, vector<8x768xf32>
    tpu.vector_store %arg14[%c64_95, %c0_96], %86 {strides = array<i32>} : memref<72x768xf32, #tpu.memory_space<vmem>>, vector<8x768xf32>,
    %c0_97 = arith.constant 0 : index
    %c0_98 = arith.constant 0 : index
    %88 = vector.load %arg14[%c0_97, %c0_98] : memref<72x768xf32, #tpu.memory_space<vmem>>, vector<72x768xf32>
    %cst_99 = arith.constant dense<0.000000e+00> : vector<8x768xf32>
    %89 = tpu.matmul %16, %88, %cst_99 {dimension_numbers = #tpu.dot_dimension_numbers<[1], [0], [0], [1], [0, 0, 1, 1], [], []>} : vector<8x72xf32>, vector<72x768xf32>, vector<8x768xf32> -> vector<8x768xf32>
    %90 = arith.addf %89, %11 : vector<8x768xf32>
    %cst_100 = arith.constant 0.000000e+00 : f32
    %91 = vector.broadcast %cst_100 : f32 to vector<8x768xf32>
    %92 = arith.maximumf %90, %91 : vector<8x768xf32>
    %93 = arith.mulf %92, %2 : vector<8x768xf32>
    %94 = arith.addf %69, %93 : vector<8x768xf32>
    %c0_101 = arith.constant 0 : index
    %c0_102 = arith.constant 0 : index
    %95 = vector.load %arg12[%c0_101, %c0_102] : memref<8x768xf32, #tpu.memory_space<vmem>>, vector<8x768xf32>
    tpu.vector_store %arg12[%c0_101, %c0_102], %94 {strides = array<i32>} : memref<8x768xf32, #tpu.memory_space<vmem>>, vector<8x768xf32>,
    %c0_103 = arith.constant 0 : index
    %c0_104 = arith.constant 0 : index
    %96 = vector.load %arg12[%c0_103, %c0_104] : memref<8x768xf32, #tpu.memory_space<vmem>>, vector<8x768xf32>
    %c19_i32_105 = arith.constant 19 : i32
    %97 = tpu.dynamic_rotate %96 by %c19_i32_105 dim 1 : vector<8x768xf32>, i32 -> vector<8x768xf32>
    %c0_106 = arith.constant 0 : index
    %c0_107 = arith.constant 0 : index
    %98 = vector.load %arg14[%c0_106, %c0_107] : memref<72x768xf32, #tpu.memory_space<vmem>>, vector<8x768xf32>
    tpu.vector_store %arg14[%c0_106, %c0_107], %97 {strides = array<i32>} : memref<72x768xf32, #tpu.memory_space<vmem>>, vector<8x768xf32>,
    %c18_i32_108 = arith.constant 18 : i32
    %99 = tpu.dynamic_rotate %96 by %c18_i32_108 dim 1 : vector<8x768xf32>, i32 -> vector<8x768xf32>
    %c8_109 = arith.constant 8 : index
    %c0_110 = arith.constant 0 : index
    %100 = vector.load %arg14[%c8_109, %c0_110] : memref<72x768xf32, #tpu.memory_space<vmem>>, vector<8x768xf32>
    tpu.vector_store %arg14[%c8_109, %c0_110], %99 {strides = array<i32>} : memref<72x768xf32, #tpu.memory_space<vmem>>, vector<8x768xf32>,
    %c17_i32_111 = arith.constant 17 : i32
    %101 = tpu.dynamic_rotate %96 by %c17_i32_111 dim 1 : vector<8x768xf32>, i32 -> vector<8x768xf32>
    %c16_112 = arith.constant 16 : index
    %c0_113 = arith.constant 0 : index
    %102 = vector.load %arg14[%c16_112, %c0_113] : memref<72x768xf32, #tpu.memory_space<vmem>>, vector<8x768xf32>
    tpu.vector_store %arg14[%c16_112, %c0_113], %101 {strides = array<i32>} : memref<72x768xf32, #tpu.memory_space<vmem>>, vector<8x768xf32>,
    %c1_i32_114 = arith.constant 1 : i32
    %103 = tpu.dynamic_rotate %96 by %c1_i32_114 dim 1 : vector<8x768xf32>, i32 -> vector<8x768xf32>
    %c24_115 = arith.constant 24 : index
    %c0_116 = arith.constant 0 : index
    %104 = vector.load %arg14[%c24_115, %c0_116] : memref<72x768xf32, #tpu.memory_space<vmem>>, vector<8x768xf32>
    tpu.vector_store %arg14[%c24_115, %c0_116], %103 {strides = array<i32>} : memref<72x768xf32, #tpu.memory_space<vmem>>, vector<8x768xf32>,
    %c32_117 = arith.constant 32 : index
    %c0_118 = arith.constant 0 : index
    %105 = vector.load %arg14[%c32_117, %c0_118] : memref<72x768xf32, #tpu.memory_space<vmem>>, vector<8x768xf32>
    tpu.vector_store %arg14[%c32_117, %c0_118], %96 {strides = array<i32>} : memref<72x768xf32, #tpu.memory_space<vmem>>, vector<8x768xf32>,
    %c767_i32_119 = arith.constant 767 : i32
    %106 = tpu.dynamic_rotate %96 by %c767_i32_119 dim 1 : vector<8x768xf32>, i32 -> vector<8x768xf32>
    %c40_120 = arith.constant 40 : index
    %c0_121 = arith.constant 0 : index
    %107 = vector.load %arg14[%c40_120, %c0_121] : memref<72x768xf32, #tpu.memory_space<vmem>>, vector<8x768xf32>
    tpu.vector_store %arg14[%c40_120, %c0_121], %106 {strides = array<i32>} : memref<72x768xf32, #tpu.memory_space<vmem>>, vector<8x768xf32>,
    %c751_i32_122 = arith.constant 751 : i32
    %108 = tpu.dynamic_rotate %96 by %c751_i32_122 dim 1 : vector<8x768xf32>, i32 -> vector<8x768xf32>
    %c48_123 = arith.constant 48 : index
    %c0_124 = arith.constant 0 : index
    %109 = vector.load %arg14[%c48_123, %c0_124] : memref<72x768xf32, #tpu.memory_space<vmem>>, vector<8x768xf32>
    tpu.vector_store %arg14[%c48_123, %c0_124], %108 {strides = array<i32>} : memref<72x768xf32, #tpu.memory_space<vmem>>, vector<8x768xf32>,
    %c750_i32_125 = arith.constant 750 : i32
    %110 = tpu.dynamic_rotate %96 by %c750_i32_125 dim 1 : vector<8x768xf32>, i32 -> vector<8x768xf32>
    %c56_126 = arith.constant 56 : index
    %c0_127 = arith.constant 0 : index
    %111 = vector.load %arg14[%c56_126, %c0_127] : memref<72x768xf32, #tpu.memory_space<vmem>>, vector<8x768xf32>
    tpu.vector_store %arg14[%c56_126, %c0_127], %110 {strides = array<i32>} : memref<72x768xf32, #tpu.memory_space<vmem>>, vector<8x768xf32>,
    %c749_i32_128 = arith.constant 749 : i32
    %112 = tpu.dynamic_rotate %96 by %c749_i32_128 dim 1 : vector<8x768xf32>, i32 -> vector<8x768xf32>
    %c64_129 = arith.constant 64 : index
    %c0_130 = arith.constant 0 : index
    %113 = vector.load %arg14[%c64_129, %c0_130] : memref<72x768xf32, #tpu.memory_space<vmem>>, vector<8x768xf32>
    tpu.vector_store %arg14[%c64_129, %c0_130], %112 {strides = array<i32>} : memref<72x768xf32, #tpu.memory_space<vmem>>, vector<8x768xf32>,
    %c0_131 = arith.constant 0 : index
    %c0_132 = arith.constant 0 : index
    %114 = vector.load %arg14[%c0_131, %c0_132] : memref<72x768xf32, #tpu.memory_space<vmem>>, vector<72x768xf32>
    %cst_133 = arith.constant dense<0.000000e+00> : vector<8x768xf32>
    %115 = tpu.matmul %15, %114, %cst_133 {dimension_numbers = #tpu.dot_dimension_numbers<[1], [0], [0], [1], [0, 0, 1, 1], [], []>} : vector<8x72xf32>, vector<72x768xf32>, vector<8x768xf32> -> vector<8x768xf32>
    %116 = arith.addf %115, %8 : vector<8x768xf32>
    %cst_134 = arith.constant 0.000000e+00 : f32
    %117 = vector.broadcast %cst_134 : f32 to vector<8x768xf32>
    %118 = arith.maximumf %116, %117 : vector<8x768xf32>
    %119 = arith.mulf %118, %2 : vector<8x768xf32>
    %c0_135 = arith.constant 0 : index
    %c0_136 = arith.constant 0 : index
    %120 = vector.load %arg13[%c0_135, %c0_136] : memref<8x768xf32, #tpu.memory_space<vmem>>, vector<8x768xf32>
    tpu.vector_store %arg13[%c0_135, %c0_136], %119 {strides = array<i32>} : memref<8x768xf32, #tpu.memory_space<vmem>>, vector<8x768xf32>,
    %c0_137 = arith.constant 0 : index
    %c0_138 = arith.constant 0 : index
    %121 = vector.load %arg12[%c0_137, %c0_138] : memref<8x768xf32, #tpu.memory_space<vmem>>, vector<8x768xf32>
    %c0_139 = arith.constant 0 : index
    %c0_140 = arith.constant 0 : index
    %122 = vector.load %arg13[%c0_139, %c0_140] : memref<8x768xf32, #tpu.memory_space<vmem>>, vector<8x768xf32>
    %c19_i32_141 = arith.constant 19 : i32
    %123 = tpu.dynamic_rotate %122 by %c19_i32_141 dim 1 : vector<8x768xf32>, i32 -> vector<8x768xf32>
    %c0_142 = arith.constant 0 : index
    %c0_143 = arith.constant 0 : index
    %124 = vector.load %arg14[%c0_142, %c0_143] : memref<72x768xf32, #tpu.memory_space<vmem>>, vector<8x768xf32>
    tpu.vector_store %arg14[%c0_142, %c0_143], %123 {strides = array<i32>} : memref<72x768xf32, #tpu.memory_space<vmem>>, vector<8x768xf32>,
    %c18_i32_144 = arith.constant 18 : i32
    %125 = tpu.dynamic_rotate %122 by %c18_i32_144 dim 1 : vector<8x768xf32>, i32 -> vector<8x768xf32>
    %c8_145 = arith.constant 8 : index
    %c0_146 = arith.constant 0 : index
    %126 = vector.load %arg14[%c8_145, %c0_146] : memref<72x768xf32, #tpu.memory_space<vmem>>, vector<8x768xf32>
    tpu.vector_store %arg14[%c8_145, %c0_146], %125 {strides = array<i32>} : memref<72x768xf32, #tpu.memory_space<vmem>>, vector<8x768xf32>,
    %c17_i32_147 = arith.constant 17 : i32
    %127 = tpu.dynamic_rotate %122 by %c17_i32_147 dim 1 : vector<8x768xf32>, i32 -> vector<8x768xf32>
    %c16_148 = arith.constant 16 : index
    %c0_149 = arith.constant 0 : index
    %128 = vector.load %arg14[%c16_148, %c0_149] : memref<72x768xf32, #tpu.memory_space<vmem>>, vector<8x768xf32>
    tpu.vector_store %arg14[%c16_148, %c0_149], %127 {strides = array<i32>} : memref<72x768xf32, #tpu.memory_space<vmem>>, vector<8x768xf32>,
    %c1_i32_150 = arith.constant 1 : i32
    %129 = tpu.dynamic_rotate %122 by %c1_i32_150 dim 1 : vector<8x768xf32>, i32 -> vector<8x768xf32>
    %c24_151 = arith.constant 24 : index
    %c0_152 = arith.constant 0 : index
    %130 = vector.load %arg14[%c24_151, %c0_152] : memref<72x768xf32, #tpu.memory_space<vmem>>, vector<8x768xf32>
    tpu.vector_store %arg14[%c24_151, %c0_152], %129 {strides = array<i32>} : memref<72x768xf32, #tpu.memory_space<vmem>>, vector<8x768xf32>,
    %c32_153 = arith.constant 32 : index
    %c0_154 = arith.constant 0 : index
    %131 = vector.load %arg14[%c32_153, %c0_154] : memref<72x768xf32, #tpu.memory_space<vmem>>, vector<8x768xf32>
    tpu.vector_store %arg14[%c32_153, %c0_154], %122 {strides = array<i32>} : memref<72x768xf32, #tpu.memory_space<vmem>>, vector<8x768xf32>,
    %c767_i32_155 = arith.constant 767 : i32
    %132 = tpu.dynamic_rotate %122 by %c767_i32_155 dim 1 : vector<8x768xf32>, i32 -> vector<8x768xf32>
    %c40_156 = arith.constant 40 : index
    %c0_157 = arith.constant 0 : index
    %133 = vector.load %arg14[%c40_156, %c0_157] : memref<72x768xf32, #tpu.memory_space<vmem>>, vector<8x768xf32>
    tpu.vector_store %arg14[%c40_156, %c0_157], %132 {strides = array<i32>} : memref<72x768xf32, #tpu.memory_space<vmem>>, vector<8x768xf32>,
    %c751_i32_158 = arith.constant 751 : i32
    %134 = tpu.dynamic_rotate %122 by %c751_i32_158 dim 1 : vector<8x768xf32>, i32 -> vector<8x768xf32>
    %c48_159 = arith.constant 48 : index
    %c0_160 = arith.constant 0 : index
    %135 = vector.load %arg14[%c48_159, %c0_160] : memref<72x768xf32, #tpu.memory_space<vmem>>, vector<8x768xf32>
    tpu.vector_store %arg14[%c48_159, %c0_160], %134 {strides = array<i32>} : memref<72x768xf32, #tpu.memory_space<vmem>>, vector<8x768xf32>,
    %c750_i32_161 = arith.constant 750 : i32
    %136 = tpu.dynamic_rotate %122 by %c750_i32_161 dim 1 : vector<8x768xf32>, i32 -> vector<8x768xf32>
    %c56_162 = arith.constant 56 : index
    %c0_163 = arith.constant 0 : index
    %137 = vector.load %arg14[%c56_162, %c0_163] : memref<72x768xf32, #tpu.memory_space<vmem>>, vector<8x768xf32>
    tpu.vector_store %arg14[%c56_162, %c0_163], %136 {strides = array<i32>} : memref<72x768xf32, #tpu.memory_space<vmem>>, vector<8x768xf32>,
    %c749_i32_164 = arith.constant 749 : i32
    %138 = tpu.dynamic_rotate %122 by %c749_i32_164 dim 1 : vector<8x768xf32>, i32 -> vector<8x768xf32>
    %c64_165 = arith.constant 64 : index
    %c0_166 = arith.constant 0 : index
    %139 = vector.load %arg14[%c64_165, %c0_166] : memref<72x768xf32, #tpu.memory_space<vmem>>, vector<8x768xf32>
    tpu.vector_store %arg14[%c64_165, %c0_166], %138 {strides = array<i32>} : memref<72x768xf32, #tpu.memory_space<vmem>>, vector<8x768xf32>,
    %c0_167 = arith.constant 0 : index
    %c0_168 = arith.constant 0 : index
    %140 = vector.load %arg14[%c0_167, %c0_168] : memref<72x768xf32, #tpu.memory_space<vmem>>, vector<72x768xf32>
    %cst_169 = arith.constant dense<0.000000e+00> : vector<8x768xf32>
    %141 = tpu.matmul %16, %140, %cst_169 {dimension_numbers = #tpu.dot_dimension_numbers<[1], [0], [0], [1], [0, 0, 1, 1], [], []>} : vector<8x72xf32>, vector<72x768xf32>, vector<8x768xf32> -> vector<8x768xf32>
    %142 = arith.addf %141, %11 : vector<8x768xf32>
    %cst_170 = arith.constant 0.000000e+00 : f32
    %143 = vector.broadcast %cst_170 : f32 to vector<8x768xf32>
    %144 = arith.maximumf %142, %143 : vector<8x768xf32>
    %145 = arith.mulf %144, %2 : vector<8x768xf32>
    %146 = arith.addf %121, %145 : vector<8x768xf32>
    %c0_171 = arith.constant 0 : index
    %c0_172 = arith.constant 0 : index
    %147 = vector.load %arg12[%c0_171, %c0_172] : memref<8x768xf32, #tpu.memory_space<vmem>>, vector<8x768xf32>
    tpu.vector_store %arg12[%c0_171, %c0_172], %146 {strides = array<i32>} : memref<8x768xf32, #tpu.memory_space<vmem>>, vector<8x768xf32>,
    %c0_173 = arith.constant 0 : index
    %c0_174 = arith.constant 0 : index
    %148 = vector.load %arg12[%c0_173, %c0_174] : memref<8x768xf32, #tpu.memory_space<vmem>>, vector<8x768xf32>
    %c0_175 = arith.constant 0 : index
    %c0_176 = arith.constant 0 : index
    %149 = vector.load %arg9[%c0_175, %c0_176] : memref<8x72xf32, #tpu.memory_space<vmem>>, vector<8x72xf32>
    %c19_i32_177 = arith.constant 19 : i32
    %150 = tpu.dynamic_rotate %148 by %c19_i32_177 dim 1 : vector<8x768xf32>, i32 -> vector<8x768xf32>
    %c0_178 = arith.constant 0 : index
    %c0_179 = arith.constant 0 : index
    %151 = vector.load %arg14[%c0_178, %c0_179] : memref<72x768xf32, #tpu.memory_space<vmem>>, vector<8x768xf32>
    tpu.vector_store %arg14[%c0_178, %c0_179], %150 {strides = array<i32>} : memref<72x768xf32, #tpu.memory_space<vmem>>, vector<8x768xf32>,
    %c18_i32_180 = arith.constant 18 : i32
    %152 = tpu.dynamic_rotate %148 by %c18_i32_180 dim 1 : vector<8x768xf32>, i32 -> vector<8x768xf32>
    %c8_181 = arith.constant 8 : index
    %c0_182 = arith.constant 0 : index
    %153 = vector.load %arg14[%c8_181, %c0_182] : memref<72x768xf32, #tpu.memory_space<vmem>>, vector<8x768xf32>
    tpu.vector_store %arg14[%c8_181, %c0_182], %152 {strides = array<i32>} : memref<72x768xf32, #tpu.memory_space<vmem>>, vector<8x768xf32>,
    %c17_i32_183 = arith.constant 17 : i32
    %154 = tpu.dynamic_rotate %148 by %c17_i32_183 dim 1 : vector<8x768xf32>, i32 -> vector<8x768xf32>
    %c16_184 = arith.constant 16 : index
    %c0_185 = arith.constant 0 : index
    %155 = vector.load %arg14[%c16_184, %c0_185] : memref<72x768xf32, #tpu.memory_space<vmem>>, vector<8x768xf32>
    tpu.vector_store %arg14[%c16_184, %c0_185], %154 {strides = array<i32>} : memref<72x768xf32, #tpu.memory_space<vmem>>, vector<8x768xf32>,
    %c1_i32_186 = arith.constant 1 : i32
    %156 = tpu.dynamic_rotate %148 by %c1_i32_186 dim 1 : vector<8x768xf32>, i32 -> vector<8x768xf32>
    %c24_187 = arith.constant 24 : index
    %c0_188 = arith.constant 0 : index
    %157 = vector.load %arg14[%c24_187, %c0_188] : memref<72x768xf32, #tpu.memory_space<vmem>>, vector<8x768xf32>
    tpu.vector_store %arg14[%c24_187, %c0_188], %156 {strides = array<i32>} : memref<72x768xf32, #tpu.memory_space<vmem>>, vector<8x768xf32>,
    %c32_189 = arith.constant 32 : index
    %c0_190 = arith.constant 0 : index
    %158 = vector.load %arg14[%c32_189, %c0_190] : memref<72x768xf32, #tpu.memory_space<vmem>>, vector<8x768xf32>
    tpu.vector_store %arg14[%c32_189, %c0_190], %148 {strides = array<i32>} : memref<72x768xf32, #tpu.memory_space<vmem>>, vector<8x768xf32>,
    %c767_i32_191 = arith.constant 767 : i32
    %159 = tpu.dynamic_rotate %148 by %c767_i32_191 dim 1 : vector<8x768xf32>, i32 -> vector<8x768xf32>
    %c40_192 = arith.constant 40 : index
    %c0_193 = arith.constant 0 : index
    %160 = vector.load %arg14[%c40_192, %c0_193] : memref<72x768xf32, #tpu.memory_space<vmem>>, vector<8x768xf32>
    tpu.vector_store %arg14[%c40_192, %c0_193], %159 {strides = array<i32>} : memref<72x768xf32, #tpu.memory_space<vmem>>, vector<8x768xf32>,
    %c751_i32_194 = arith.constant 751 : i32
    %161 = tpu.dynamic_rotate %148 by %c751_i32_194 dim 1 : vector<8x768xf32>, i32 -> vector<8x768xf32>
    %c48_195 = arith.constant 48 : index
    %c0_196 = arith.constant 0 : index
    %162 = vector.load %arg14[%c48_195, %c0_196] : memref<72x768xf32, #tpu.memory_space<vmem>>, vector<8x768xf32>
    tpu.vector_store %arg14[%c48_195, %c0_196], %161 {strides = array<i32>} : memref<72x768xf32, #tpu.memory_space<vmem>>, vector<8x768xf32>,
    %c750_i32_197 = arith.constant 750 : i32
    %163 = tpu.dynamic_rotate %148 by %c750_i32_197 dim 1 : vector<8x768xf32>, i32 -> vector<8x768xf32>
    %c56_198 = arith.constant 56 : index
    %c0_199 = arith.constant 0 : index
    %164 = vector.load %arg14[%c56_198, %c0_199] : memref<72x768xf32, #tpu.memory_space<vmem>>, vector<8x768xf32>
    tpu.vector_store %arg14[%c56_198, %c0_199], %163 {strides = array<i32>} : memref<72x768xf32, #tpu.memory_space<vmem>>, vector<8x768xf32>,
    %c749_i32_200 = arith.constant 749 : i32
    %165 = tpu.dynamic_rotate %148 by %c749_i32_200 dim 1 : vector<8x768xf32>, i32 -> vector<8x768xf32>
    %c64_201 = arith.constant 64 : index
    %c0_202 = arith.constant 0 : index
    %166 = vector.load %arg14[%c64_201, %c0_202] : memref<72x768xf32, #tpu.memory_space<vmem>>, vector<8x768xf32>
    tpu.vector_store %arg14[%c64_201, %c0_202], %165 {strides = array<i32>} : memref<72x768xf32, #tpu.memory_space<vmem>>, vector<8x768xf32>,
    %c0_203 = arith.constant 0 : index
    %c0_204 = arith.constant 0 : index
    %167 = vector.load %arg14[%c0_203, %c0_204] : memref<72x768xf32, #tpu.memory_space<vmem>>, vector<72x768xf32>
    %cst_205 = arith.constant dense<0.000000e+00> : vector<8x768xf32>
    %168 = tpu.matmul %149, %167, %cst_205 {dimension_numbers = #tpu.dot_dimension_numbers<[1], [0], [0], [1], [0, 0, 1, 1], [], []>} : vector<8x72xf32>, vector<72x768xf32>, vector<8x768xf32> -> vector<8x768xf32>
    %169 = arith.addf %168, %14 : vector<8x768xf32>
    %170 = arith.negf %169 : vector<8x768xf32>
    %171 = math.exp %170 : vector<8x768xf32>
    %cst_206 = arith.constant 1.000000e+00 : f32
    %172 = vector.broadcast %cst_206 : f32 to vector<8x768xf32>
    %173 = arith.addf %172, %171 : vector<8x768xf32>
    %174 = arith.divf %172, %173 : vector<8x768xf32>
    %175 = arith.subf %18, %174 : vector<8x768xf32>
    %c0_207 = arith.constant 0 : index
    %c0_208 = arith.constant 0 : index
    %c0_209 = arith.constant 0 : index
    %176 = vector.load %arg11[%c0_207, %c0_208, %c0_209] : memref<1x8x768xf32, #tpu.memory_space<vmem>>, vector<1x8x768xf32>
    %177 = vector.shape_cast %176 : vector<1x8x768xf32> to vector<8x768xf32>
    %178 = vector.shape_cast %175 : vector<8x768xf32> to vector<1x8x768xf32>
    tpu.vector_store %arg11[%c0_207, %c0_208, %c0_209], %178 {strides = array<i32>} : memref<1x8x768xf32, #tpu.memory_space<vmem>>, vector<1x8x768xf32>,
    return
  }
  func.func @transform_0(%arg0: i32) -> (i32, i32, i32) {
    %c0_i32 = arith.constant 0 : i32
    %c0_i32_0 = arith.constant 0 : i32
    %c0_i32_1 = arith.constant 0 : i32
    return %arg0, %c0_i32, %c0_i32_0 : i32, i32, i32
  }
  func.func @transform_1(%arg0: i32) -> (i32, i32) {
    %c0_i32 = arith.constant 0 : i32
    %c0_i32_0 = arith.constant 0 : i32
    %c0_i32_1 = arith.constant 0 : i32
    return %c0_i32, %c0_i32_0 : i32, i32
  }
  func.func @transform_2(%arg0: i32) -> (i32, i32) {
    %c0_i32 = arith.constant 0 : i32
    %c0_i32_0 = arith.constant 0 : i32
    %c0_i32_1 = arith.constant 0 : i32
    return %c0_i32, %c0_i32_0 : i32, i32
  }
  func.func @transform_3(%arg0: i32) -> (i32, i32) {
    %c0_i32 = arith.constant 0 : i32
    %c0_i32_0 = arith.constant 0 : i32
    %c0_i32_1 = arith.constant 0 : i32
    return %c0_i32, %c0_i32_0 : i32, i32
  }
  func.func @transform_4(%arg0: i32) -> (i32, i32) {
    %c0_i32 = arith.constant 0 : i32
    %c0_i32_0 = arith.constant 0 : i32
    %c0_i32_1 = arith.constant 0 : i32
    return %c0_i32, %c0_i32_0 : i32, i32
  }
  func.func @transform_5(%arg0: i32) -> (i32, i32) {
    %c0_i32 = arith.constant 0 : i32
    %c0_i32_0 = arith.constant 0 : i32
    %c0_i32_1 = arith.constant 0 : i32
    return %c0_i32, %c0_i32_0 : i32, i32
  }
  func.func @transform_6(%arg0: i32) -> (i32, i32) {
    %c0_i32 = arith.constant 0 : i32
    %c0_i32_0 = arith.constant 0 : i32
    %c0_i32_1 = arith.constant 0 : i32
    return %c0_i32, %c0_i32_0 : i32, i32
  }
  func.func @transform_7(%arg0: i32) -> (i32, i32) {
    %c0_i32 = arith.constant 0 : i32
    %c0_i32_0 = arith.constant 0 : i32
    %c0_i32_1 = arith.constant 0 : i32
    return %c0_i32, %c0_i32_0 : i32, i32
  }
  func.func @transform_8(%arg0: i32) -> (i32, i32) {
    %c0_i32 = arith.constant 0 : i32
    %c0_i32_0 = arith.constant 0 : i32
    %c0_i32_1 = arith.constant 0 : i32
    return %c0_i32, %c0_i32_0 : i32, i32
  }
  func.func @transform_9(%arg0: i32) -> (i32, i32) {
    %c0_i32 = arith.constant 0 : i32
    %c0_i32_0 = arith.constant 0 : i32
    %c0_i32_1 = arith.constant 0 : i32
    return %c0_i32, %c0_i32_0 : i32, i32
  }
  func.func @transform_10(%arg0: i32) -> (i32, i32, i32) {
    %c0_i32 = arith.constant 0 : i32
    %c0_i32_0 = arith.constant 0 : i32
    %c0_i32_1 = arith.constant 0 : i32
    return %arg0, %c0_i32, %c0_i32_0 : i32, i32, i32
  }
}

</mosaic_0001>

<llo_original>
// kernel: calibrate_network_forward.1
$region0: #{calibrate_network_forward.1}
  #allocation0 [shape = 'u32[]', space=smem, size = 0x4, offset = 0x4, fixed_abs, tag = 'smem constant byte address 0x4 - core index']
  #allocation1 [shape = 'u32[144,128]{1,0:T(1,128)}', space=vmem, size = 0x12000, scoped, tag = 'internal scratch']
  #allocation2 [shape = 'f32[8,768]{1,0:T(8,128)}', space=vmem, size = 0x6000, scoped, tag = 'scratch operand']
  #allocation3 [shape = 'f32[8,768]{1,0:T(8,128)}', space=vmem, size = 0x6000, scoped, tag = 'scratch operand']
  #allocation4 [shape = 'f32[72,768]{1,0:T(8,128)}', space=vmem, size = 0x36000, scoped, tag = 'scratch operand']
  %s0 = inlined_call_operand.vmem [shape: f32[2,8,768], index: 0, kind: input, shape index: {}]
  %s1 = inlined_call_operand.vmem [shape: f32[1,768], index: 1, kind: input, shape index: {}]
  %s2 = inlined_call_operand.vmem [shape: f32[8,72], index: 2, kind: input, shape index: {}]
  %s3 = inlined_call_operand.vmem [shape: f32[8,1], index: 3, kind: input, shape index: {}]
  %s4 = inlined_call_operand.vmem [shape: f32[8,72], index: 4, kind: input, shape index: {}]
  %s5 = inlined_call_operand.vmem [shape: f32[8,1], index: 5, kind: input, shape index: {}]
  %s6 = inlined_call_operand.vmem [shape: f32[8,72], index: 6, kind: input, shape index: {}]
  %s7 = inlined_call_operand.vmem [shape: f32[8,1], index: 7, kind: input, shape index: {}]
  %s8 = inlined_call_operand.vmem [shape: f32[8,72], index: 8, kind: input, shape index: {}]
  %s9 = inlined_call_operand.vmem [shape: f32[8,1], index: 9, kind: input, shape index: {}]
  %s10 = inlined_call_operand.vmem [shape: f32[2,8,768], index: 10, kind: output, shape index: {}]
  %s11 = sld [smem:[#allocation0]]
  $region73: #{calibrate_network_forward.1} parent=0
    _
  %s13 = ssub.s32 1, %s11
  %s14 = scalar_select 0, %s13, %s11
  loop: start=0, step=1, limit=4
  $region2: #{calibrate_network_forward.1} parent=0 // loop_pre_header
    _
  $region3: #{calibrate_network_forward.1} parent=0 // loop_header
    %s16 = sphi 0, %s20
    %p17 = scmp.ge.s32.totalorder %s16, 4
    %s26 = sphi 0, %s28
    %s29 = sphi 0, %s26
    %s30 = sphi 0, %s29
    %s46 = sphi 0, %s30
    %s50 = sphi 0, %s50
    %s52 = sphi 0, %s50
    %s53 = sphi 0, %s52
    %s67 = sphi 0, %s53
    %s71 = sphi 0, %s71
    %s73 = sphi 0, %s71
    %s74 = sphi 0, %s73
    %s88 = sphi 0, %s74
    %s92 = sphi 0, %s92
    %s94 = sphi 0, %s92
    %s95 = sphi 0, %s94
    %s109 = sphi 0, %s95
    %s113 = sphi 0, %s113
    %s115 = sphi 0, %s113
    %s116 = sphi 0, %s115
    %s130 = sphi 0, %s116
    %s134 = sphi 0, %s134
    %s136 = sphi 0, %s134
    %s137 = sphi 0, %s136
    %s151 = sphi 0, %s137
    %s155 = sphi 0, %s155
    %s157 = sphi 0, %s155
    %s158 = sphi 0, %s157
    %s172 = sphi 0, %s158
    %s176 = sphi 0, %s176
    %s178 = sphi 0, %s176
    %s179 = sphi 0, %s178
    %s193 = sphi 0, %s179
    %s197 = sphi 0, %s197
    %s199 = sphi 0, %s197
    %s200 = sphi 0, %s199
    %s214 = sphi 0, %s200
    %s218 = sphi 0, %s218
    %s220 = sphi 0, %s218
    %s221 = sphi 0, %s220
    %s235 = sphi 0, %s221
    %s241 = sphi 0, %s243
    %s244 = sphi 0, %s241
    %s245 = sphi 0, %s244
    %s261 = sphi 0, %s245
  $region4: #{calibrate_network_forward.1} parent=0 // loop_header_branch
    %19 = sbr.rel (%p17) target = $region8
  $region5: #{calibrate_network_forward.1} parent=0 // loop_body
    %s21 = ssub.s32 %s16, 1
    %s22 = ssub.s32 %s16, 2
    %s23 = sadd.s32 %s16, 1
    %s24 = ssub.s32 %s16, %s23
    %p25 = scmp.eq.s32.totalorder %s24, 0
    %s27 = sadd.s32 %s26, 1
    %s28 = scalar_select %p25, %s26, %s27
    %p31 = pneg %p25
    %p32 = scmp.eq.s32.totalorder %s16, 1
    %p33 = por %p31, %p32
    %p34 = scmp.ne.s32.totalorder %s26, %s29
    %p35 = scmp.eq.s32.totalorder %s16, 0
    %p36 = por %p34, %p35
    %p37 = scmp.ne.s32.totalorder %s26, %s29
    %p38 = scmp.eq.s32.totalorder %s21, 1
    %p39 = por %p37, %p38
    %p40 = scmp.ne.s32.totalorder %s29, %s30
    %p41 = scmp.eq.s32.totalorder %s21, 0
    %p42 = por %p40, %p41
    %p43 = scmp.ne.s32.totalorder %s29, %s30
    %p44 = scmp.eq.s32.totalorder %s22, 1
    %p45 = por %p43, %p44
    %p47 = scmp.ne.s32.totalorder %s30, %s46
    %p48 = scmp.eq.s32.totalorder %s22, 0
    %p49 = por %p47, %p48
    %s51 = sadd.s32 %s50, 1
    %p54 = scmp.eq.s32.totalorder %s16, 1
    %p55 = scmp.ne.s32.totalorder %s50, %s52
    %p56 = scmp.eq.s32.totalorder %s16, 0
    %p57 = por %p55, %p56
    %p58 = scmp.ne.s32.totalorder %s50, %s52
    %p59 = scmp.eq.s32.totalorder %s21, 1
    %p60 = por %p58, %p59
    %p61 = scmp.ne.s32.totalorder %s52, %s53
    %p62 = scmp.eq.s32.totalorder %s21, 0
    %p63 = por %p61, %p62
    %p64 = scmp.ne.s32.totalorder %s52, %s53
    %p65 = scmp.eq.s32.totalorder %s22, 1
    %p66 = por %p64, %p65
    %p68 = scmp.ne.s32.totalorder %s53, %s67
    %p69 = scmp.eq.s32.totalorder %s22, 0
    %p70 = por %p68, %p69
    %s72 = sadd.s32 %s71, 1
    %p75 = scmp.eq.s32.totalorder %s16, 1
    %p76 = scmp.ne.s32.totalorder %s71, %s73
    %p77 = scmp.eq.s32.totalorder %s16, 0
    %p78 = por %p76, %p77
    %p79 = scmp.ne.s32.totalorder %s71, %s73
    %p80 = scmp.eq.s32.totalorder %s21, 1
    %p81 = por %p79, %p80
    %p82 = scmp.ne.s32.totalorder %s73, %s74
    %p83 = scmp.eq.s32.totalorder %s21, 0
    %p84 = por %p82, %p83
    %p85 = scmp.ne.s32.totalorder %s73, %s74
    %p86 = scmp.eq.s32.totalorder %s22, 1
    %p87 = por %p85, %p86
    %p89 = scmp.ne.s32.totalorder %s74, %s88
    %p90 = scmp.eq.s32.totalorder %s22, 0
    %p91 = por %p89, %p90
    %s93 = sadd.s32 %s92, 1
    %p96 = scmp.eq.s32.totalorder %s16, 1
    %p97 = scmp.ne.s32.totalorder %s92, %s94
    %p98 = scmp.eq.s32.totalorder %s16, 0
    %p99 = por %p97, %p98
    %p100 = scmp.ne.s32.totalorder %s92, %s94
    %p101 = scmp.eq.s32.totalorder %s21, 1
    %p102 = por %p100, %p101
    %p103 = scmp.ne.s32.totalorder %s94, %s95
    %p104 = scmp.eq.s32.totalorder %s21, 0
    %p105 = por %p103, %p104
    %p106 = scmp.ne.s32.totalorder %s94, %s95
    %p107 = scmp.eq.s32.totalorder %s22, 1
    %p108 = por %p106, %p107
    %p110 = scmp.ne.s32.totalorder %s95, %s109
    %p111 = scmp.eq.s32.totalorder %s22, 0
    %p112 = por %p110, %p111
    %s114 = sadd.s32 %s113, 1
    %p117 = scmp.eq.s32.totalorder %s16, 1
    %p118 = scmp.ne.s32.totalorder %s113, %s115
    %p119 = scmp.eq.s32.totalorder %s16, 0
    %p120 = por %p118, %p119
    %p121 = scmp.ne.s32.totalorder %s113, %s115
    %p122 = scmp.eq.s32.totalorder %s21, 1
    %p123 = por %p121, %p122
    %p124 = scmp.ne.s32.totalorder %s115, %s116
    %p125 = scmp.eq.s32.totalorder %s21, 0
    %p126 = por %p124, %p125
    %p127 = scmp.ne.s32.totalorder %s115, %s116
    %p128 = scmp.eq.s32.totalorder %s22, 1
    %p129 = por %p127, %p128
    %p131 = scmp.ne.s32.totalorder %s116, %s130
    %p132 = scmp.eq.s32.totalorder %s22, 0
    %p133 = por %p131, %p132
    %s135 = sadd.s32 %s134, 1
    %p138 = scmp.eq.s32.totalorder %s16, 1
    %p139 = scmp.ne.s32.totalorder %s134, %s136
    %p140 = scmp.eq.s32.totalorder %s16, 0
    %p141 = por %p139, %p140
    %p142 = scmp.ne.s32.totalorder %s134, %s136
    %p143 = scmp.eq.s32.totalorder %s21, 1
    %p144 = por %p142, %p143
    %p145 = scmp.ne.s32.totalorder %s136, %s137
    %p146 = scmp.eq.s32.totalorder %s21, 0
    %p147 = por %p145, %p146
    %p148 = scmp.ne.s32.totalorder %s136, %s137
    %p149 = scmp.eq.s32.totalorder %s22, 1
    %p150 = por %p148, %p149
    %p152 = scmp.ne.s32.totalorder %s137, %s151
    %p153 = scmp.eq.s32.totalorder %s22, 0
    %p154 = por %p152, %p153
    %s156 = sadd.s32 %s155, 1
    %p159 = scmp.eq.s32.totalorder %s16, 1
    %p160 = scmp.ne.s32.totalorder %s155, %s157
    %p161 = scmp.eq.s32.totalorder %s16, 0
    %p162 = por %p160, %p161
    %p163 = scmp.ne.s32.totalorder %s155, %s157
    %p164 = scmp.eq.s32.totalorder %s21, 1
    %p165 = por %p163, %p164
    %p166 = scmp.ne.s32.totalorder %s157, %s158
    %p167 = scmp.eq.s32.totalorder %s21, 0
    %p168 = por %p166, %p167
    %p169 = scmp.ne.s32.totalorder %s157, %s158
    %p170 = scmp.eq.s32.totalorder %s22, 1
    %p171 = por %p169, %p170
    %p173 = scmp.ne.s32.totalorder %s158, %s172
    %p174 = scmp.eq.s32.totalorder %s22, 0
    %p175 = por %p173, %p174
    %s177 = sadd.s32 %s176, 1
    %p180 = scmp.eq.s32.totalorder %s16, 1
    %p181 = scmp.ne.s32.totalorder %s176, %s178
    %p182 = scmp.eq.s32.totalorder %s16, 0
    %p183 = por %p181, %p182
    %p184 = scmp.ne.s32.totalorder %s176, %s178
    %p185 = scmp.eq.s32.totalorder %s21, 1
    %p186 = por %p184, %p185
    %p187 = scmp.ne.s32.totalorder %s178, %s179
    %p188 = scmp.eq.s32.totalorder %s21, 0
    %p189 = por %p187, %p188
    %p190 = scmp.ne.s32.totalorder %s178, %s179
    %p191 = scmp.eq.s32.totalorder %s22, 1
    %p192 = por %p190, %p191
    %p194 = scmp.ne.s32.totalorder %s179, %s193
    %p195 = scmp.eq.s32.totalorder %s22, 0
    %p196 = por %p194, %p195
    %s198 = sadd.s32 %s197, 1
    %p201 = scmp.eq.s32.totalorder %s16, 1
    %p202 = scmp.ne.s32.totalorder %s197, %s199
    %p203 = scmp.eq.s32.totalorder %s16, 0
    %p204 = por %p202, %p203
    %p205 = scmp.ne.s32.totalorder %s197, %s199
    %p206 = scmp.eq.s32.totalorder %s21, 1
    %p207 = por %p205, %p206
    %p208 = scmp.ne.s32.totalorder %s199, %s200
    %p209 = scmp.eq.s32.totalorder %s21, 0
    %p210 = por %p208, %p209
    %p211 = scmp.ne.s32.totalorder %s199, %s200
    %p212 = scmp.eq.s32.totalorder %s22, 1
    %p213 = por %p211, %p212
    %p215 = scmp.ne.s32.totalorder %s200, %s214
    %p216 = scmp.eq.s32.totalorder %s22, 0
    %p217 = por %p215, %p216
    %s219 = sadd.s32 %s218, 1
    %p222 = scmp.eq.s32.totalorder %s16, 1
    %p223 = scmp.ne.s32.totalorder %s218, %s220
    %p224 = scmp.eq.s32.totalorder %s16, 0
    %p225 = por %p223, %p224
    %p226 = scmp.ne.s32.totalorder %s218, %s220
    %p227 = scmp.eq.s32.totalorder %s21, 1
    %p228 = por %p226, %p227
    %p229 = scmp.ne.s32.totalorder %s220, %s221
    %p230 = scmp.eq.s32.totalorder %s21, 0
    %p231 = por %p229, %p230
    %p232 = scmp.ne.s32.totalorder %s220, %s221
    %p233 = scmp.eq.s32.totalorder %s22, 1
    %p234 = por %p232, %p233
    %p236 = scmp.ne.s32.totalorder %s221, %s235
    %p237 = scmp.eq.s32.totalorder %s22, 0
    %p238 = por %p236, %p237
    %s239 = ssub.s32 %s16, %s23
    %p240 = scmp.eq.s32.totalorder %s239, 0
    %s242 = sadd.s32 %s241, 1
    %s243 = scalar_select %p240, %s241, %s242
    %p246 = pneg %p240
    %p247 = scmp.eq.s32.totalorder %s16, 1
    %p248 = por %p246, %p247
    %p249 = scmp.ne.s32.totalorder %s241, %s244
    %p250 = scmp.eq.s32.totalorder %s16, 0
    %p251 = por %p249, %p250
    %p252 = scmp.ne.s32.totalorder %s241, %s244
    %p253 = scmp.eq.s32.totalorder %s21, 1
    %p254 = por %p252, %p253
    %p255 = scmp.ne.s32.totalorder %s244, %s245
    %p256 = scmp.eq.s32.totalorder %s21, 0
    %p257 = por %p255, %p256
    %p258 = scmp.ne.s32.totalorder %s244, %s245
    %p259 = scmp.eq.s32.totalorder %s22, 1
    %p260 = por %p258, %p259
    %p262 = scmp.ne.s32.totalorder %s245, %s261
    %p263 = scmp.eq.s32.totalorder %s22, 0
    %p264 = por %p262, %p263
    %p265 = scmp.le.s32.totalorder 1, %s16
    %p266 = scmp.lt.s32.totalorder %s16, 3
    %p267 = pnand %p265, %p266
    %p268 = pneg %p267
    // Predicated region
    $region9: #{calibrate_network_forward.1} parent=5 // pred_check
      _
    $region10: #{calibrate_network_forward.1} parent=5 // pred_check_branch
      %270 = sbr.rel (%p267) target = $region12
    $region11: #{calibrate_network_forward.1} parent=5 // pred_region
      %s271 = ssub.s32 %s16, 1
      // Predicated region
      $region13: #{calibrate_network_forward.1} parent=11 // pred_check
        %p272 = pneg %p63
      $region14: #{calibrate_network_forward.1} parent=11 // pred_check_branch
        %274 = sbr.rel (%p272) target = $region16
      $region15: #{calibrate_network_forward.1} parent=11 // pred_region
        _
      $region16: #{calibrate_network_forward.1} parent=11 // pred_fallthru
        _
      // Predicated region
      $region17: #{calibrate_network_forward.1} parent=11 // pred_check
        %p275 = pneg %p84
      $region18: #{calibrate_network_forward.1} parent=11 // pred_check_branch
        %277 = sbr.rel (%p275) target = $region20
      $region19: #{calibrate_network_forward.1} parent=11 // pred_region
        _
      $region20: #{calibrate_network_forward.1} parent=11 // pred_fallthru
        _
      // Predicated region
      $region21: #{calibrate_network_forward.1} parent=11 // pred_check
        %p278 = pneg %p105
      $region22: #{calibrate_network_forward.1} parent=11 // pred_check_branch
        %280 = sbr.rel (%p278) target = $region24
      $region23: #{calibrate_network_forward.1} parent=11 // pred_region
        _
      $region24: #{calibrate_network_forward.1} parent=11 // pred_fallthru
        _
      // Predicated region
      $region25: #{calibrate_network_forward.1} parent=11 // pred_check
        %p281 = pneg %p126
      $region26: #{calibrate_network_forward.1} parent=11 // pred_check_branch
        %283 = sbr.rel (%p281) target = $region28
      $region27: #{calibrate_network_forward.1} parent=11 // pred_region
        _
      $region28: #{calibrate_network_forward.1} parent=11 // pred_fallthru
        _
      // Predicated region
      $region29: #{calibrate_network_forward.1} parent=11 // pred_check
        %p284 = pneg %p147
      $region30: #{calibrate_network_forward.1} parent=11 // pred_check_branch
        %286 = sbr.rel (%p284) target = $region32
      $region31: #{calibrate_network_forward.1} parent=11 // pred_region
        _
      $region32: #{calibrate_network_forward.1} parent=11 // pred_fallthru
        _
      // Predicated region
      $region33: #{calibrate_network_forward.1} parent=11 // pred_check
        %p287 = pneg %p168
      $region34: #{calibrate_network_forward.1} parent=11 // pred_check_branch
        %289 = sbr.rel (%p287) target = $region36
      $region35: #{calibrate_network_forward.1} parent=11 // pred_region
        _
      $region36: #{calibrate_network_forward.1} parent=11 // pred_fallthru
        _
      // Predicated region
      $region37: #{calibrate_network_forward.1} parent=11 // pred_check
        %p290 = pneg %p189
      $region38: #{calibrate_network_forward.1} parent=11 // pred_check_branch
        %292 = sbr.rel (%p290) target = $region40
      $region39: #{calibrate_network_forward.1} parent=11 // pred_region
        _
      $region40: #{calibrate_network_forward.1} parent=11 // pred_fallthru
        _
      // Predicated region
      $region41: #{calibrate_network_forward.1} parent=11 // pred_check
        %p293 = pneg %p210
      $region42: #{calibrate_network_forward.1} parent=11 // pred_check_branch
        %295 = sbr.rel (%p293) target = $region44
      $region43: #{calibrate_network_forward.1} parent=11 // pred_region
        _
      $region44: #{calibrate_network_forward.1} parent=11 // pred_fallthru
        _
      // Predicated region
      $region45: #{calibrate_network_forward.1} parent=11 // pred_check
        %p296 = pneg %p231
      $region46: #{calibrate_network_forward.1} parent=11 // pred_check_branch
        %298 = sbr.rel (%p296) target = $region48
      $region47: #{calibrate_network_forward.1} parent=11 // pred_region
        _
      $region48: #{calibrate_network_forward.1} parent=11 // pred_fallthru
        _
    $region12: #{calibrate_network_forward.1} parent=5 // pred_fallthru
      _
    %p299 = scmp.lt.s32.totalorder %s16, 2
    // Predicated region
    $region49: #{calibrate_network_forward.1} parent=5 // pred_check
      %p300 = pneg %p299
    $region50: #{calibrate_network_forward.1} parent=5 // pred_check_branch
      %302 = sbr.rel (%p300) target = $region52
    $region51: #{calibrate_network_forward.1} parent=5 // pred_region
      // Predicated region
      $region53: #{calibrate_network_forward.1} parent=51 // pred_check
        %p303 = pneg %p36
      $region54: #{calibrate_network_forward.1} parent=51 // pred_check_branch
        %305 = sbr.rel (%p303) target = $region56
      $region55: #{calibrate_network_forward.1} parent=51 // pred_region
        %p306 = scmp.lt.s32.totalorder %s16, 1
        %s307 = scalar_select %p306, %s16, 1
        %s308 = smul.addr %s307, 6
        %s309 = smul.addr %s308, 8
        %s310 = scalar_lea.vmem %s0, %s309
      $region56: #{calibrate_network_forward.1} parent=51 // pred_fallthru
        _
    $region52: #{calibrate_network_forward.1} parent=5 // pred_fallthru
      _
    %p311 = scmp.le.s32.totalorder 1, %s16
    %p312 = scmp.lt.s32.totalorder %s16, 3
    %p313 = pnand %p311, %p312
    %p314 = pneg %p313
    // Predicated region
    $region57: #{calibrate_network_forward.1} parent=5 // pred_check
      _
    $region58: #{calibrate_network_forward.1} parent=5 // pred_check_branch
      %316 = sbr.rel (%p313) target = $region60
    $region59: #{calibrate_network_forward.1} parent=5 // pred_region
      %s317 = ssub.s32 %s16, 1
      %p318 = scmp.lt.s32.totalorder %s21, 1
      %s319 = scalar_select %p318, %s21, 1
      %s320 = smul.addr %s319, 6
      %s321 = smul.addr %s320, 8
      %s322 = scalar_lea.vmem %s0, %s321
      %p323 = pneg %p42
      %p324 = pneg %p39
      %p325 = pneg %p63
      %p326 = pneg %p60
      %p327 = pneg %p84
      %p328 = pneg %p81
      %p329 = pneg %p105
      %p330 = pneg %p102
      %p331 = pneg %p126
      %p332 = pneg %p123
      %p333 = pneg %p147
      %p334 = pneg %p144
      %p335 = pneg %p168
      %p336 = pneg %p165
      %p337 = pneg %p189
      %p338 = pneg %p186
      %p339 = pneg %p210
      %p340 = pneg %p207
      %p341 = pneg %p231
      %p342 = pneg %p228
      %p343 = pneg %p257
      %p344 = pneg %p254
      %p345 = scmp.lt.s32.totalorder %s21, 1
      %s346 = scalar_select %p345, %s21, 1
      %s347 = smul.addr %s346, 6
      %s348 = smul.addr %s347, 8
      %s349 = scalar_lea.vmem %s10, %s348
      %p350 = scmp.lt.s32.totalorder %s21, 1
      %s351 = scalar_select %p350, %s21, 1
      %s352 = smul.addr %s351, 6
      %s353 = smul.addr %s352, 8
      %s354 = scalar_lea.vmem %s0, %s353
      %p355 = scmp.lt.s32.totalorder %s21, 1
      %s356 = scalar_select %p355, %s21, 1
      %s357 = smul.addr %s356, 6
      %s358 = smul.addr %s357, 8
      %s359 = scalar_lea.vmem %s10, %s358
      %v360 = vld [vmem:[%s1] sm:$0x3f]
      %v362 = vlaneseq
      %v363 = vshrl.u32 %v362, 7
      %v364 = vsub.s32 0, %v363
      %v365 = vrot.slane %v360, %v364
      %v366 = vlaneseq
      %v367 = vshrl.u32 %v366, 7
      %v368 = vsub.s32 1, %v367
      %v369 = vrot.slane %v360, %v368
      %v370 = vlaneseq
      %v371 = vshrl.u32 %v370, 7
      %v372 = vsub.s32 2, %v371
      %v373 = vrot.slane %v360, %v372
      %v374 = vlaneseq
      %v375 = vshrl.u32 %v374, 7
      %v376 = vsub.s32 3, %v375
      %v377 = vrot.slane %v360, %v376
      %v378 = vlaneseq
      %v379 = vshrl.u32 %v378, 7
      %v380 = vsub.s32 4, %v379
      %v381 = vrot.slane %v360, %v380
      %v382 = vlaneseq
      %v383 = vshrl.u32 %v382, 7
      %v384 = vsub.s32 5, %v383
      %v385 = vrot.slane %v360, %v384
      %v392 = vld [vmem:[%s3] sm:$0xff]
      %394 = vset.pattern.permute.xlu0 0
      %395 = vperm.xlu0 %394, %v392
      %v396 = vpop.permute.xlu0 %395
      %v398 = vld [vmem:[%s5] sm:$0xff]
      %400 = vset.pattern.permute.xlu0 0
      %401 = vperm.xlu0 %400, %v398
      %v402 = vpop.permute.xlu0 %401
      %v404 = vld [vmem:[%s7] sm:$0xff]
      %406 = vset.pattern.permute.xlu0 0
      %407 = vperm.xlu0 %406, %v404
      %v408 = vpop.permute.xlu0 %407
      %v410 = vld [vmem:[%s9] sm:$0xff]
      %412 = vset.pattern.permute.xlu0 0
      %413 = vperm.xlu0 %412, %v410
      %v414 = vpop.permute.xlu0 %413
      %v416 = vld [vmem:[%s4] sm:$0xff]
      %v417 = vld [vmem:[%s6] sm:$0xff]
      %v418 = vld [vmem:[%s354] sm:$0xff]
      %v419 = vld [vmem:[%s354 + $0x8] sm:$0xff]
      %v420 = vld [vmem:[%s354 + $0x10] sm:$0xff]
      %v421 = vld [vmem:[%s354 + $0x18] sm:$0xff]
      %v422 = vld [vmem:[%s354 + $0x20] sm:$0xff]
      %v423 = vld [vmem:[%s354 + $0x28] sm:$0xff]
      %v424 = vld [vmem:[%s2] sm:$0xff]
      %425 = vrot.lane.b32.xlu0 %v418, 19
      %v426 = vpop.permute.xlu0 %425
      %427 = vrot.lane.b32.xlu0 %v419, 19
      %v428 = vpop.permute.xlu0 %427
      %429 = vrot.lane.b32.xlu0 %v420, 19
      %v430 = vpop.permute.xlu0 %429
      %431 = vrot.lane.b32.xlu0 %v421, 19
      %v432 = vpop.permute.xlu0 %431
      %433 = vrot.lane.b32.xlu0 %v422, 19
      %v434 = vpop.permute.xlu0 %433
      %435 = vrot.lane.b32.xlu0 %v423, 19
      %v436 = vpop.permute.xlu0 %435
      %v437 = vlaneseq
      %v438 = vand.u32 %v437, 127
      %vm439 = vcmp.lt.s32.totalorder %v438, 19
      %v440 = vsel %vm439, %v434, %v436
      %v441 = vsel %vm439, %v432, %v434
      %v442 = vsel %vm439, %v430, %v432
      %v443 = vsel %vm439, %v428, %v430
      %v444 = vsel %vm439, %v426, %v428
      %v445 = vsel %vm439, %v436, %v426
      %446 = vst [vmem:[#allocation4] sm:$0xff] %v445
      %447 = vst [vmem:[#allocation4 + $0x8] sm:$0xff] %v444
      %448 = vst [vmem:[#allocation4 + $0x10] sm:$0xff] %v443
      %449 = vst [vmem:[#allocation4 + $0x18] sm:$0xff] %v442
      %450 = vst [vmem:[#allocation4 + $0x20] sm:$0xff] %v441
      %451 = vst [vmem:[#allocation4 + $0x28] sm:$0xff] %v440
      %452 = vrot.lane.b32.xlu0 %v418, 18
      %v453 = vpop.permute.xlu0 %452
      %454 = vrot.lane.b32.xlu0 %v419, 18
      %v455 = vpop.permute.xlu0 %454
      %456 = vrot.lane.b32.xlu0 %v420, 18
      %v457 = vpop.permute.xlu0 %456
      %458 = vrot.lane.b32.xlu0 %v421, 18
      %v459 = vpop.permute.xlu0 %458
      %460 = vrot.lane.b32.xlu0 %v422, 18
      %v461 = vpop.permute.xlu0 %460
      %462 = vrot.lane.b32.xlu0 %v423, 18
      %v463 = vpop.permute.xlu0 %462
      %vm464 = vcmp.lt.s32.totalorder %v438, 18
      %v465 = vsel %vm464, %v461, %v463
      %v466 = vsel %vm464, %v459, %v461
      %v467 = vsel %vm464, %v457, %v459
      %v468 = vsel %vm464, %v455, %v457
      %v469 = vsel %vm464, %v453, %v455
      %v470 = vsel %vm464, %v463, %v453
      %471 = vst [vmem:[#allocation4 + $0x30] sm:$0xff] %v470
      %472 = vst [vmem:[#allocation4 + $0x38] sm:$0xff] %v469
      %473 = vst [vmem:[#allocation4 + $0x40] sm:$0xff] %v468
      %474 = vst [vmem:[#allocation4 + $0x48] sm:$0xff] %v467
      %475 = vst [vmem:[#allocation4 + $0x50] sm:$0xff] %v466
      %476 = vst [vmem:[#allocation4 + $0x58] sm:$0xff] %v465
      %477 = vrot.lane.b32.xlu0 %v418, 17
      %v478 = vpop.permute.xlu0 %477
      %479 = vrot.lane.b32.xlu0 %v419, 17
      %v480 = vpop.permute.xlu0 %479
      %481 = vrot.lane.b32.xlu0 %v420, 17
      %v482 = vpop.permute.xlu0 %481
      %483 = vrot.lane.b32.xlu0 %v421, 17
      %v484 = vpop.permute.xlu0 %483
      %485 = vrot.lane.b32.xlu0 %v422, 17
      %v486 = vpop.permute.xlu0 %485
      %487 = vrot.lane.b32.xlu0 %v423, 17
      %v488 = vpop.permute.xlu0 %487
      %vm489 = vcmp.lt.s32.totalorder %v438, 17
      %v490 = vsel %vm489, %v486, %v488
      %v491 = vsel %vm489, %v484, %v486
      %v492 = vsel %vm489, %v482, %v484
      %v493 = vsel %vm489, %v480, %v482
      %v494 = vsel %vm489, %v478, %v480
      %v495 = vsel %vm489, %v488, %v478
      %496 = vst [vmem:[#allocation4 + $0x60] sm:$0xff] %v495
      %497 = vst [vmem:[#allocation4 + $0x68] sm:$0xff] %v494
      %498 = vst [vmem:[#allocation4 + $0x70] sm:$0xff] %v493
      %499 = vst [vmem:[#allocation4 + $0x78] sm:$0xff] %v492
      %500 = vst [vmem:[#allocation4 + $0x80] sm:$0xff] %v491
      %501 = vst [vmem:[#allocation4 + $0x88] sm:$0xff] %v490
      %502 = vrot.lane.b32.xlu0 %v418, 1
      %v503 = vpop.permute.xlu0 %502
      %504 = vrot.lane.b32.xlu0 %v419, 1
      %v505 = vpop.permute.xlu0 %504
      %506 = vrot.lane.b32.xlu0 %v420, 1
      %v507 = vpop.permute.xlu0 %506
      %508 = vrot.lane.b32.xlu0 %v421, 1
      %v509 = vpop.permute.xlu0 %508
      %510 = vrot.lane.b32.xlu0 %v422, 1
      %v511 = vpop.permute.xlu0 %510
      %512 = vrot.lane.b32.xlu0 %v423, 1
      %v513 = vpop.permute.xlu0 %512
      %vm514 = vcmp.lt.s32.totalorder %v438, 1
      %v515 = vsel %vm514, %v511, %v513
      %v516 = vsel %vm514, %v509, %v511
      %v517 = vsel %vm514, %v507, %v509
      %v518 = vsel %vm514, %v505, %v507
      %v519 = vsel %vm514, %v503, %v505
      %v520 = vsel %vm514, %v513, %v503
      %521 = vst [vmem:[#allocation4 + $0x90] sm:$0xff] %v520
      %522 = vst [vmem:[#allocation4 + $0x98] sm:$0xff] %v519
      %523 = vst [vmem:[#allocation4 + $0xa0] sm:$0xff] %v518
      %524 = vst [vmem:[#allocation4 + $0xa8] sm:$0xff] %v517
      %525 = vst [vmem:[#allocation4 + $0xb0] sm:$0xff] %v516
      %526 = vst [vmem:[#allocation4 + $0xb8] sm:$0xff] %v515
      %527 = vst [vmem:[#allocation4 + $0xc0] sm:$0xff] %v418
      %528 = vst [vmem:[#allocation4 + $0xc8] sm:$0xff] %v419
      %529 = vst [vmem:[#allocation4 + $0xd0] sm:$0xff] %v420
      %530 = vst [vmem:[#allocation4 + $0xd8] sm:$0xff] %v421
      %531 = vst [vmem:[#allocation4 + $0xe0] sm:$0xff] %v422
      %532 = vst [vmem:[#allocation4 + $0xe8] sm:$0xff] %v423
      %533 = vrot.lane.b32.xlu0 %v418, 127
      %v534 = vpop.permute.xlu0 %533
      %535 = vrot.lane.b32.xlu0 %v419, 127
      %v536 = vpop.permute.xlu0 %535
      %537 = vrot.lane.b32.xlu0 %v420, 127
      %v538 = vpop.permute.xlu0 %537
      %539 = vrot.lane.b32.xlu0 %v421, 127
      %v540 = vpop.permute.xlu0 %539
      %541 = vrot.lane.b32.xlu0 %v422, 127
      %v542 = vpop.permute.xlu0 %541
      %543 = vrot.lane.b32.xlu0 %v423, 127
      %v544 = vpop.permute.xlu0 %543
      %vm545 = vcmp.lt.s32.totalorder %v438, 127
      %v546 = vsel %vm545, %v542, %v544
      %v547 = vsel %vm545, %v540, %v542
      %v548 = vsel %vm545, %v538, %v540
      %v549 = vsel %vm545, %v536, %v538
      %v550 = vsel %vm545, %v534, %v536
      %v551 = vsel %vm545, %v544, %v534
      %552 = vst [vmem:[#allocation4 + $0xf0] sm:$0xff] %v550
      %553 = vst [vmem:[#allocation4 + $0xf8] sm:$0xff] %v549
      %554 = vst [vmem:[#allocation4 + $0x100] sm:$0xff] %v548
      %555 = vst [vmem:[#allocation4 + $0x108] sm:$0xff] %v547
      %556 = vst [vmem:[#allocation4 + $0x110] sm:$0xff] %v546
      %557 = vst [vmem:[#allocation4 + $0x118] sm:$0xff] %v551
      %558 = vrot.lane.b32.xlu0 %v418, 111
      %v559 = vpop.permute.xlu0 %558
      %560 = vrot.lane.b32.xlu0 %v419, 111
      %v561 = vpop.permute.xlu0 %560
      %562 = vrot.lane.b32.xlu0 %v420, 111
      %v563 = vpop.permute.xlu0 %562
      %564 = vrot.lane.b32.xlu0 %v421, 111
      %v565 = vpop.permute.xlu0 %564
      %566 = vrot.lane.b32.xlu0 %v422, 111
      %v567 = vpop.permute.xlu0 %566
      %568 = vrot.lane.b32.xlu0 %v423, 111
      %v569 = vpop.permute.xlu0 %568
      %vm570 = vcmp.lt.s32.totalorder %v438, 111
      %v571 = vsel %vm570, %v567, %v569
      %v572 = vsel %vm570, %v565, %v567
      %v573 = vsel %vm570, %v563, %v565
      %v574 = vsel %vm570, %v561, %v563
      %v575 = vsel %vm570, %v559, %v561
      %v576 = vsel %vm570, %v569, %v559
      %577 = vst [vmem:[#allocation4 + $0x120] sm:$0xff] %v575
      %578 = vst [vmem:[#allocation4 + $0x128] sm:$0xff] %v574
      %579 = vst [vmem:[#allocation4 + $0x130] sm:$0xff] %v573
      %580 = vst [vmem:[#allocation4 + $0x138] sm:$0xff] %v572
      %581 = vst [vmem:[#allocation4 + $0x140] sm:$0xff] %v571
      %582 = vst [vmem:[#allocation4 + $0x148] sm:$0xff] %v576
      %583 = vrot.lane.b32.xlu0 %v418, 110
      %v584 = vpop.permute.xlu0 %583
      %585 = vrot.lane.b32.xlu0 %v419, 110
      %v586 = vpop.permute.xlu0 %585
      %587 = vrot.lane.b32.xlu0 %v420, 110
      %v588 = vpop.permute.xlu0 %587
      %589 = vrot.lane.b32.xlu0 %v421, 110
      %v590 = vpop.permute.xlu0 %589
      %591 = vrot.lane.b32.xlu0 %v422, 110
      %v592 = vpop.permute.xlu0 %591
      %593 = vrot.lane.b32.xlu0 %v423, 110
      %v594 = vpop.permute.xlu0 %593
      %vm595 = vcmp.lt.s32.totalorder %v438, 110
      %v596 = vsel %vm595, %v592, %v594
      %v597 = vsel %vm595, %v590, %v592
      %v598 = vsel %vm595, %v588, %v590
      %v599 = vsel %vm595, %v586, %v588
      %v600 = vsel %vm595, %v584, %v586
      %v601 = vsel %vm595, %v594, %v584
      %602 = vst [vmem:[#allocation4 + $0x150] sm:$0xff] %v600
      %603 = vst [vmem:[#allocation4 + $0x158] sm:$0xff] %v599
      %604 = vst [vmem:[#allocation4 + $0x160] sm:$0xff] %v598
      %605 = vst [vmem:[#allocation4 + $0x168] sm:$0xff] %v597
      %606 = vst [vmem:[#allocation4 + $0x170] sm:$0xff] %v596
      %607 = vst [vmem:[#allocation4 + $0x178] sm:$0xff] %v601
      %608 = vrot.lane.b32.xlu0 %v418, 109
      %v609 = vpop.permute.xlu0 %608
      %610 = vrot.lane.b32.xlu0 %v419, 109
      %v611 = vpop.permute.xlu0 %610
      %612 = vrot.lane.b32.xlu0 %v420, 109
      %v613 = vpop.permute.xlu0 %612
      %614 = vrot.lane.b32.xlu0 %v421, 109
      %v615 = vpop.permute.xlu0 %614
      %616 = vrot.lane.b32.xlu0 %v422, 109
      %v617 = vpop.permute.xlu0 %616
      %618 = vrot.lane.b32.xlu0 %v423, 109
      %v619 = vpop.permute.xlu0 %618
      %vm620 = vcmp.lt.s32.totalorder %v438, 109
      %v621 = vsel %vm620, %v617, %v619
      %v622 = vsel %vm620, %v615, %v617
      %v623 = vsel %vm620, %v613, %v615
      %v624 = vsel %vm620, %v611, %v613
      %v625 = vsel %vm620, %v609, %v611
      %v626 = vsel %vm620, %v619, %v609
      %627 = vst [vmem:[#allocation4 + $0x180] sm:$0xff] %v625
      %628 = vst [vmem:[#allocation4 + $0x188] sm:$0xff] %v624
      %629 = vst [vmem:[#allocation4 + $0x190] sm:$0xff] %v623
      %630 = vst [vmem:[#allocation4 + $0x198] sm:$0xff] %v622
      %631 = vst [vmem:[#allocation4 + $0x1a0] sm:$0xff] %v621
      %632 = vst [vmem:[#allocation4 + $0x1a8] sm:$0xff] %v626
      %v633 = vld [vmem:[#allocation4] sm:$0xff]
      %v634 = vld [vmem:[#allocation4 + $0x8] sm:$0xff]
      %v635 = vld [vmem:[#allocation4 + $0x10] sm:$0xff]
      %v636 = vld [vmem:[#allocation4 + $0x18] sm:$0xff]
      %v637 = vld [vmem:[#allocation4 + $0x20] sm:$0xff]
      %v638 = vld [vmem:[#allocation4 + $0x28] sm:$0xff]
      %v639 = vld [vmem:[#allocation4 + $0x30] sm:$0xff]
      %v640 = vld [vmem:[#allocation4 + $0x38] sm:$0xff]
      %v641 = vld [vmem:[#allocation4 + $0x40] sm:$0xff]
      %v642 = vld [vmem:[#allocation4 + $0x48] sm:$0xff]
      %v643 = vld [vmem:[#allocation4 + $0x50] sm:$0xff]
      %v644 = vld [vmem:[#allocation4 + $0x58] sm:$0xff]
      %v645 = vld [vmem:[#allocation4 + $0x60] sm:$0xff]
      %v646 = vld [vmem:[#allocation4 + $0x68] sm:$0xff]
      %v647 = vld [vmem:[#allocation4 + $0x70] sm:$0xff]
      %v648 = vld [vmem:[#allocation4 + $0x78] sm:$0xff]
      %v649 = vld [vmem:[#allocation4 + $0x80] sm:$0xff]
      %v650 = vld [vmem:[#allocation4 + $0x88] sm:$0xff]
      %v651 = vld [vmem:[#allocation4 + $0x90] sm:$0xff]
      %v652 = vld [vmem:[#allocation4 + $0x98] sm:$0xff]
      %v653 = vld [vmem:[#allocation4 + $0xa0] sm:$0xff]
      %v654 = vld [vmem:[#allocation4 + $0xa8] sm:$0xff]
      %v655 = vld [vmem:[#allocation4 + $0xb0] sm:$0xff]
      %v656 = vld [vmem:[#allocation4 + $0xb8] sm:$0xff]
      %v657 = vld [vmem:[#allocation4 + $0xc0] sm:$0xff]
      %v658 = vld [vmem:[#allocation4 + $0xc8] sm:$0xff]
      %v659 = vld [vmem:[#allocation4 + $0xd0] sm:$0xff]
      %v660 = vld [vmem:[#allocation4 + $0xd8] sm:$0xff]
      %v661 = vld [vmem:[#allocation4 + $0xe0] sm:$0xff]
      %v662 = vld [vmem:[#allocation4 + $0xe8] sm:$0xff]
      %v663 = vld [vmem:[#allocation4 + $0xf0] sm:$0xff]
      %v664 = vld [vmem:[#allocation4 + $0xf8] sm:$0xff]
      %v665 = vld [vmem:[#allocation4 + $0x100] sm:$0xff]
      %v666 = vld [vmem:[#allocation4 + $0x108] sm:$0xff]
      %v667 = vld [vmem:[#allocation4 + $0x110] sm:$0xff]
      %v668 = vld [vmem:[#allocation4 + $0x118] sm:$0xff]
      %v669 = vld [vmem:[#allocation4 + $0x120] sm:$0xff]
      %v670 = vld [vmem:[#allocation4 + $0x128] sm:$0xff]
      %v671 = vld [vmem:[#allocation4 + $0x130] sm:$0xff]
      %v672 = vld [vmem:[#allocation4 + $0x138] sm:$0xff]
      %v673 = vld [vmem:[#allocation4 + $0x140] sm:$0xff]
      %v674 = vld [vmem:[#allocation4 + $0x148] sm:$0xff]
      %v675 = vld [vmem:[#allocation4 + $0x150] sm:$0xff]
      %v676 = vld [vmem:[#allocation4 + $0x158] sm:$0xff]
      %v677 = vld [vmem:[#allocation4 + $0x160] sm:$0xff]
      %v678 = vld [vmem:[#allocation4 + $0x168] sm:$0xff]
      %v679 = vld [vmem:[#allocation4 + $0x170] sm:$0xff]
      %v680 = vld [vmem:[#allocation4 + $0x178] sm:$0xff]
      %v681 = vld [vmem:[#allocation4 + $0x180] sm:$0xff]
      %v682 = vld [vmem:[#allocation4 + $0x188] sm:$0xff]
      %v683 = vld [vmem:[#allocation4 + $0x190] sm:$0xff]
      %v684 = vld [vmem:[#allocation4 + $0x198] sm:$0xff]
      %v685 = vld [vmem:[#allocation4 + $0x1a0] sm:$0xff]
      %v686 = vld [vmem:[#allocation4 + $0x1a8] sm:$0xff]
      %vm687 = vcmask 588800
      %v689 = vsel %vm687, %v424, 0
      %691 = vmatprep.subr.mxu0 0.0
      %692 = vmatpush1.msra.mxu0 0.0
      %693 = vmatprep.subr.mxu0 0.0
      %694 = vmatpush1.msra.mxu0 0.0
      %695 = vmatprep.subr.mxu0 0.0
      %696 = vmatpush1.msra.mxu0 0.0
      %697 = vmatprep.subr.mxu0 0.0
      %698 = vmatpush1.msra.mxu0 0.0
      %699 = vmatprep.subr.mxu0 0.0
      %700 = vmatpush1.msra.mxu0 0.0
      %701 = vmatprep.subr.mxu0 0.0
      %702 = vmatpush1.msra.mxu0 0.0
      %703 = vmatprep.subr.mxu0 0.0
      %704 = vmatpush1.msra.mxu0 0.0
      %705 = vmatprep.subr.mxu0 %v682
      %706 = vmatpush1.msra.mxu0 %v681
      %707 = vmatprep.subr.mxu0 %v676
      %708 = vmatpush1.msra.mxu0 %v675
      %709 = vmatprep.subr.mxu0 %v670
      %710 = vmatpush1.msra.mxu0 %v669
      %711 = vmatprep.subr.mxu0 %v664
      %712 = vmatpush1.msra.mxu0 %v663
      %713 = vmatprep.subr.mxu0 %v658
      %714 = vmatpush1.msra.mxu0 %v657
      %715 = vmatprep.subr.mxu0 %v652
      %716 = vmatpush1.msra.mxu0 %v651
      %717 = vmatprep.subr.mxu0 %v646
      %718 = vmatpush1.msra.mxu0 %v645
      %719 = vmatprep.subr.mxu0 %v640
      %720 = vmatpush1.msra.mxu0 %v639
      %721 = vmatprep.subr.mxu0 %v634
      %722 = vmatpush1.msra.mxu0 %v633
      %723 = vmatprep.subr.mxu0 0.0
      %724 = vmatpush2.msra.mxu0 0.0
      %725 = vmatprep.subr.mxu0 0.0
      %726 = vmatpush2.msra.mxu0 0.0
      %727 = vmatprep.subr.mxu0 0.0
      %728 = vmatpush2.msra.mxu0 0.0
      %729 = vmatprep.subr.mxu0 0.0
      %730 = vmatpush2.msra.mxu0 0.0
      %731 = vmatprep.subr.mxu0 0.0
      %732 = vmatpush2.msra.mxu0 0.0
      %733 = vmatprep.subr.mxu0 0.0
      %734 = vmatpush2.msra.mxu0 0.0
      %735 = vmatprep.subr.mxu0 0.0
      %736 = vmatpush2.msra.mxu0 0.0
      %737 = vmatprep.subr.mxu0 0.0
      %738 = vmatpush2.msra.mxu0 0.0
      %739 = vmatprep.subr.mxu0 0.0
      %740 = vmatpush2.msra.mxu0 0.0
      %741 = vmatprep.subr.mxu0 0.0
      %742 = vmatpush2.msra.mxu0 0.0
      %743 = vmatprep.subr.mxu0 0.0
      %744 = vmatpush2.msra.mxu0 0.0
      %745 = vmatprep.subr.mxu0 0.0
      %746 = vmatpush2.msra.mxu0 0.0
      %747 = vmatprep.subr.mxu0 0.0
      %748 = vmatpush2.msra.mxu0 0.0
      %749 = vmatprep.subr.mxu0 0.0
      %750 = vmatpush2.msra.mxu0 0.0
      %751 = vmatprep.subr.mxu0 0.0
      %752 = vmatpush2.msra.mxu0 0.0
      %753 = vmatprep.subr.mxu0 0.0
      %754 = vmatpush2.msra.mxu0 0.0
      %755 = vmatprep.mubr.f32.mxu0 0.0
      %756 = vmatmul.mubr.f32.gmra.mxu0 %v689
      %v757 = vpop.f32.mrf.mxu0
      %v758 = vadd.f32 %v396, %v757
      %v759 = vpop.f32.mrf.mxu0
      %v760 = vadd.f32 %v396, %v759
      %761 = vdwg.mxu0
      %762 = vmatprep.subr.mxu0 0.0
      %763 = vmatpush1.msra.mxu0 0.0
      %764 = vmatprep.subr.mxu0 0.0
      %765 = vmatpush1.msra.mxu0 0.0
      %766 = vmatprep.subr.mxu0 0.0
      %767 = vmatpush1.msra.mxu0 0.0
      %768 = vmatprep.subr.mxu0 0.0
      %769 = vmatpush1.msra.mxu0 0.0
      %770 = vmatprep.subr.mxu0 0.0
      %771 = vmatpush1.msra.mxu0 0.0
      %772 = vmatprep.subr.mxu0 0.0
      %773 = vmatpush1.msra.mxu0 0.0
      %774 = vmatprep.subr.mxu0 0.0
      %775 = vmatpush1.msra.mxu0 0.0
      %776 = vmatprep.subr.mxu0 %v684
      %777 = vmatpush1.msra.mxu0 %v683
      %778 = vmatprep.subr.mxu0 %v678
      %779 = vmatpush1.msra.mxu0 %v677
      %780 = vmatprep.subr.mxu0 %v672
      %781 = vmatpush1.msra.mxu0 %v671
      %782 = vmatprep.subr.mxu0 %v666
      %783 = vmatpush1.msra.mxu0 %v665
      %784 = vmatprep.subr.mxu0 %v660
      %785 = vmatpush1.msra.mxu0 %v659
      %786 = vmatprep.subr.mxu0 %v654
      %787 = vmatpush1.msra.mxu0 %v653
      %788 = vmatprep.subr.mxu0 %v648
      %789 = vmatpush1.msra.mxu0 %v647
      %790 = vmatprep.subr.mxu0 %v642
      %791 = vmatpush1.msra.mxu0 %v641
      %792 = vmatprep.subr.mxu0 %v636
      %793 = vmatpush1.msra.mxu0 %v635
      %794 = vmatprep.subr.mxu0 0.0
      %795 = vmatpush2.msra.mxu0 0.0
      %796 = vmatprep.subr.mxu0 0.0
      %797 = vmatpush2.msra.mxu0 0.0
      %798 = vmatprep.subr.mxu0 0.0
      %799 = vmatpush2.msra.mxu0 0.0
      %800 = vmatprep.subr.mxu0 0.0
      %801 = vmatpush2.msra.mxu0 0.0
      %802 = vmatprep.subr.mxu0 0.0
      %803 = vmatpush2.msra.mxu0 0.0
      %804 = vmatprep.subr.mxu0 0.0
      %805 = vmatpush2.msra.mxu0 0.0
      %806 = vmatprep.subr.mxu0 0.0
      %807 = vmatpush2.msra.mxu0 0.0
      %808 = vmatprep.subr.mxu0 0.0
      %809 = vmatpush2.msra.mxu0 0.0
      %810 = vmatprep.subr.mxu0 0.0
      %811 = vmatpush2.msra.mxu0 0.0
      %812 = vmatprep.subr.mxu0 0.0
      %813 = vmatpush2.msra.mxu0 0.0
      %814 = vmatprep.subr.mxu0 0.0
      %815 = vmatpush2.msra.mxu0 0.0
      %816 = vmatprep.subr.mxu0 0.0
      %817 = vmatpush2.msra.mxu0 0.0
      %818 = vmatprep.subr.mxu0 0.0
      %819 = vmatpush2.msra.mxu0 0.0
      %820 = vmatprep.subr.mxu0 0.0
      %821 = vmatpush2.msra.mxu0 0.0
      %822 = vmatprep.subr.mxu0 0.0
      %823 = vmatpush2.msra.mxu0 0.0
      %824 = vmatprep.subr.mxu0 0.0
      %825 = vmatpush2.msra.mxu0 0.0
      %826 = vmatprep.mubr.f32.mxu0 0.0
      %827 = vmatmul.mubr.f32.gmra.mxu0 %v689
      %v828 = vpop.f32.mrf.mxu0
      %v829 = vadd.f32 %v396, %v828
      %v830 = vpop.f32.mrf.mxu0
      %v831 = vadd.f32 %v396, %v830
      %832 = vdwg.mxu0
      %833 = vmatprep.subr.mxu0 0.0
      %834 = vmatpush1.msra.mxu0 0.0
      %835 = vmatprep.subr.mxu0 0.0
      %836 = vmatpush1.msra.mxu0 0.0
      %837 = vmatprep.subr.mxu0 0.0
      %838 = vmatpush1.msra.mxu0 0.0
      %839 = vmatprep.subr.mxu0 0.0
      %840 = vmatpush1.msra.mxu0 0.0
      %841 = vmatprep.subr.mxu0 0.0
      %842 = vmatpush1.msra.mxu0 0.0
      %843 = vmatprep.subr.mxu0 0.0
      %844 = vmatpush1.msra.mxu0 0.0
      %845 = vmatprep.subr.mxu0 0.0
      %846 = vmatpush1.msra.mxu0 0.0
      %847 = vmatprep.subr.mxu0 %v686
      %848 = vmatpush1.msra.mxu0 %v685
      %849 = vmatprep.subr.mxu0 %v680
      %850 = vmatpush1.msra.mxu0 %v679
      %851 = vmatprep.subr.mxu0 %v674
      %852 = vmatpush1.msra.mxu0 %v673
      %853 = vmatprep.subr.mxu0 %v668
      %854 = vmatpush1.msra.mxu0 %v667
      %855 = vmatprep.subr.mxu0 %v662
      %856 = vmatpush1.msra.mxu0 %v661
      %857 = vmatprep.subr.mxu0 %v656
      %858 = vmatpush1.msra.mxu0 %v655
      %859 = vmatprep.subr.mxu0 %v650
      %860 = vmatpush1.msra.mxu0 %v649
      %861 = vmatprep.subr.mxu0 %v644
      %862 = vmatpush1.msra.mxu0 %v643
      %863 = vmatprep.subr.mxu0 %v638
      %864 = vmatpush1.msra.mxu0 %v637
      %865 = vmatprep.subr.mxu0 0.0
      %866 = vmatpush2.msra.mxu0 0.0
      %867 = vmatprep.subr.mxu0 0.0
      %868 = vmatpush2.msra.mxu0 0.0
      %869 = vmatprep.subr.mxu0 0.0
      %870 = vmatpush2.msra.mxu0 0.0
      %871 = vmatprep.subr.mxu0 0.0
      %872 = vmatpush2.msra.mxu0 0.0
      %873 = vmatprep.subr.mxu0 0.0
      %874 = vmatpush2.msra.mxu0 0.0
      %875 = vmatprep.subr.mxu0 0.0
      %876 = vmatpush2.msra.mxu0 0.0
      %877 = vmatprep.subr.mxu0 0.0
      %878 = vmatpush2.msra.mxu0 0.0
      %879 = vmatprep.subr.mxu0 0.0
      %880 = vmatpush2.msra.mxu0 0.0
      %881 = vmatprep.subr.mxu0 0.0
      %882 = vmatpush2.msra.mxu0 0.0
      %883 = vmatprep.subr.mxu0 0.0
      %884 = vmatpush2.msra.mxu0 0.0
      %885 = vmatprep.subr.mxu0 0.0
      %886 = vmatpush2.msra.mxu0 0.0
      %887 = vmatprep.subr.mxu0 0.0
      %888 = vmatpush2.msra.mxu0 0.0
      %889 = vmatprep.subr.mxu0 0.0
      %890 = vmatpush2.msra.mxu0 0.0
      %891 = vmatprep.subr.mxu0 0.0
      %892 = vmatpush2.msra.mxu0 0.0
      %893 = vmatprep.subr.mxu0 0.0
      %894 = vmatpush2.msra.mxu0 0.0
      %895 = vmatprep.subr.mxu0 0.0
      %896 = vmatpush2.msra.mxu0 0.0
      %897 = vmatprep.mubr.f32.mxu0 0.0
      %898 = vmatmul.mubr.f32.gmra.mxu0 %v689
      %v899 = vpop.f32.mrf.mxu0
      %v900 = vadd.f32 %v396, %v899
      %v901 = vpop.f32.mrf.mxu0
      %v902 = vadd.f32 %v396, %v901
      %903 = vdwg.mxu0
      %v904 = vmax.f32 %v758, 0.0
      %v905 = vmax.f32 %v760, 0.0
      %v906 = vmax.f32 %v829, 0.0
      %v907 = vmax.f32 %v831, 0.0
      %v908 = vmax.f32 %v900, 0.0
      %v909 = vmax.f32 %v902, 0.0
      %v910 = vmul.f32 %v904, %v365
      %v911 = vmul.f32 %v905, %v369
      %v912 = vmul.f32 %v906, %v373
      %v913 = vmul.f32 %v907, %v377
      %v914 = vmul.f32 %v908, %v381
      %v915 = vmul.f32 %v909, %v385
      %916 = vst [vmem:[#allocation2] sm:$0xff] %v910
      %917 = vst [vmem:[#allocation2 + $0x8] sm:$0xff] %v911
      %918 = vst [vmem:[#allocation2 + $0x10] sm:$0xff] %v912
      %919 = vst [vmem:[#allocation2 + $0x18] sm:$0xff] %v913
      %920 = vst [vmem:[#allocation2 + $0x20] sm:$0xff] %v914
      %921 = vst [vmem:[#allocation2 + $0x28] sm:$0xff] %v915
      %v922 = vld [vmem:[#allocation2] sm:$0xff]
      %v923 = vld [vmem:[#allocation2 + $0x8] sm:$0xff]
      %v924 = vld [vmem:[#allocation2 + $0x10] sm:$0xff]
      %v925 = vld [vmem:[#allocation2 + $0x18] sm:$0xff]
      %v926 = vld [vmem:[#allocation2 + $0x20] sm:$0xff]
      %v927 = vld [vmem:[#allocation2 + $0x28] sm:$0xff]
      %928 = vrot.lane.b32.xlu0 %v922, 19
      %v929 = vpop.permute.xlu0 %928
      %930 = vrot.lane.b32.xlu0 %v923, 19
      %v931 = vpop.permute.xlu0 %930
      %932 = vrot.lane.b32.xlu0 %v924, 19
      %v933 = vpop.permute.xlu0 %932
      %934 = vrot.lane.b32.xlu0 %v925, 19
      %v935 = vpop.permute.xlu0 %934
      %936 = vrot.lane.b32.xlu0 %v926, 19
      %v937 = vpop.permute.xlu0 %936
      %938 = vrot.lane.b32.xlu0 %v927, 19
      %v939 = vpop.permute.xlu0 %938
      %v940 = vsel %vm439, %v937, %v939
      %v941 = vsel %vm439, %v935, %v937
      %v942 = vsel %vm439, %v933, %v935
      %v943 = vsel %vm439, %v931, %v933
      %v944 = vsel %vm439, %v929, %v931
      %v945 = vsel %vm439, %v939, %v929
      %946 = vst [vmem:[#allocation4] sm:$0xff] %v945
      %947 = vst [vmem:[#allocation4 + $0x8] sm:$0xff] %v944
      %948 = vst [vmem:[#allocation4 + $0x10] sm:$0xff] %v943
      %949 = vst [vmem:[#allocation4 + $0x18] sm:$0xff] %v942
      %950 = vst [vmem:[#allocation4 + $0x20] sm:$0xff] %v941
      %951 = vst [vmem:[#allocation4 + $0x28] sm:$0xff] %v940
      %952 = vrot.lane.b32.xlu0 %v922, 18
      %v953 = vpop.permute.xlu0 %952
      %954 = vrot.lane.b32.xlu0 %v923, 18
      %v955 = vpop.permute.xlu0 %954
      %956 = vrot.lane.b32.xlu0 %v924, 18
      %v957 = vpop.permute.xlu0 %956
      %958 = vrot.lane.b32.xlu0 %v925, 18
      %v959 = vpop.permute.xlu0 %958
      %960 = vrot.lane.b32.xlu0 %v926, 18
      %v961 = vpop.permute.xlu0 %960
      %962 = vrot.lane.b32.xlu0 %v927, 18
      %v963 = vpop.permute.xlu0 %962
      %v964 = vsel %vm464, %v961, %v963
      %v965 = vsel %vm464, %v959, %v961
      %v966 = vsel %vm464, %v957, %v959
      %v967 = vsel %vm464, %v955, %v957
      %v968 = vsel %vm464, %v953, %v955
      %v969 = vsel %vm464, %v963, %v953
      %970 = vst [vmem:[#allocation4 + $0x30] sm:$0xff] %v969
      %971 = vst [vmem:[#allocation4 + $0x38] sm:$0xff] %v968
      %972 = vst [vmem:[#allocation4 + $0x40] sm:$0xff] %v967
      %973 = vst [vmem:[#allocation4 + $0x48] sm:$0xff] %v966
      %974 = vst [vmem:[#allocation4 + $0x50] sm:$0xff] %v965
      %975 = vst [vmem:[#allocation4 + $0x58] sm:$0xff] %v964
      %976 = vrot.lane.b32.xlu0 %v922, 17
      %v977 = vpop.permute.xlu0 %976
      %978 = vrot.lane.b32.xlu0 %v923, 17
      %v979 = vpop.permute.xlu0 %978
      %980 = vrot.lane.b32.xlu0 %v924, 17
      %v981 = vpop.permute.xlu0 %980
      %982 = vrot.lane.b32.xlu0 %v925, 17
      %v983 = vpop.permute.xlu0 %982
      %984 = vrot.lane.b32.xlu0 %v926, 17
      %v985 = vpop.permute.xlu0 %984
      %986 = vrot.lane.b32.xlu0 %v927, 17
      %v987 = vpop.permute.xlu0 %986
      %v988 = vsel %vm489, %v985, %v987
      %v989 = vsel %vm489, %v983, %v985
      %v990 = vsel %vm489, %v981, %v983
      %v991 = vsel %vm489, %v979, %v981
      %v992 = vsel %vm489, %v977, %v979
      %v993 = vsel %vm489, %v987, %v977
      %994 = vst [vmem:[#allocation4 + $0x60] sm:$0xff] %v993
      %995 = vst [vmem:[#allocation4 + $0x68] sm:$0xff] %v992
      %996 = vst [vmem:[#allocation4 + $0x70] sm:$0xff] %v991
      %997 = vst [vmem:[#allocation4 + $0x78] sm:$0xff] %v990
      %998 = vst [vmem:[#allocation4 + $0x80] sm:$0xff] %v989
      %999 = vst [vmem:[#allocation4 + $0x88] sm:$0xff] %v988
      %1000 = vrot.lane.b32.xlu0 %v922, 1
      %v1001 = vpop.permute.xlu0 %1000
      %1002 = vrot.lane.b32.xlu0 %v923, 1
      %v1003 = vpop.permute.xlu0 %1002
      %1004 = vrot.lane.b32.xlu0 %v924, 1
      %v1005 = vpop.permute.xlu0 %1004
      %1006 = vrot.lane.b32.xlu0 %v925, 1
      %v1007 = vpop.permute.xlu0 %1006
      %1008 = vrot.lane.b32.xlu0 %v926, 1
      %v1009 = vpop.permute.xlu0 %1008
      %1010 = vrot.lane.b32.xlu0 %v927, 1
      %v1011 = vpop.permute.xlu0 %1010
      %v1012 = vsel %vm514, %v1009, %v1011
      %v1013 = vsel %vm514, %v1007, %v1009
      %v1014 = vsel %vm514, %v1005, %v1007
      %v1015 = vsel %vm514, %v1003, %v1005
      %v1016 = vsel %vm514, %v1001, %v1003
      %v1017 = vsel %vm514, %v1011, %v1001
      %1018 = vst [vmem:[#allocation4 + $0x90] sm:$0xff] %v1017
      %1019 = vst [vmem:[#allocation4 + $0x98] sm:$0xff] %v1016
      %1020 = vst [vmem:[#allocation4 + $0xa0] sm:$0xff] %v1015
      %1021 = vst [vmem:[#allocation4 + $0xa8] sm:$0xff] %v1014
      %1022 = vst [vmem:[#allocation4 + $0xb0] sm:$0xff] %v1013
      %1023 = vst [vmem:[#allocation4 + $0xb8] sm:$0xff] %v1012
      %1024 = vst [vmem:[#allocation4 + $0xc0] sm:$0xff] %v922
      %1025 = vst [vmem:[#allocation4 + $0xc8] sm:$0xff] %v923
      %1026 = vst [vmem:[#allocation4 + $0xd0] sm:$0xff] %v924
      %1027 = vst [vmem:[#allocation4 + $0xd8] sm:$0xff] %v925
      %1028 = vst [vmem:[#allocation4 + $0xe0] sm:$0xff] %v926
      %1029 = vst [vmem:[#allocation4 + $0xe8] sm:$0xff] %v927
      %1030 = vrot.lane.b32.xlu0 %v922, 127
      %v1031 = vpop.permute.xlu0 %1030
      %1032 = vrot.lane.b32.xlu0 %v923, 127
      %v1033 = vpop.permute.xlu0 %1032
      %1034 = vrot.lane.b32.xlu0 %v924, 127
      %v1035 = vpop.permute.xlu0 %1034
      %1036 = vrot.lane.b32.xlu0 %v925, 127
      %v1037 = vpop.permute.xlu0 %1036
      %1038 = vrot.lane.b32.xlu0 %v926, 127
      %v1039 = vpop.permute.xlu0 %1038
      %1040 = vrot.lane.b32.xlu0 %v927, 127
      %v1041 = vpop.permute.xlu0 %1040
      %v1042 = vsel %vm545, %v1039, %v1041
      %v1043 = vsel %vm545, %v1037, %v1039
      %v1044 = vsel %vm545, %v1035, %v1037
      %v1045 = vsel %vm545, %v1033, %v1035
      %v1046 = vsel %vm545, %v1031, %v1033
      %v1047 = vsel %vm545, %v1041, %v1031
      %1048 = vst [vmem:[#allocation4 + $0xf0] sm:$0xff] %v1046
      %1049 = vst [vmem:[#allocation4 + $0xf8] sm:$0xff] %v1045
      %1050 = vst [vmem:[#allocation4 + $0x100] sm:$0xff] %v1044
      %1051 = vst [vmem:[#allocation4 + $0x108] sm:$0xff] %v1043
      %1052 = vst [vmem:[#allocation4 + $0x110] sm:$0xff] %v1042
      %1053 = vst [vmem:[#allocation4 + $0x118] sm:$0xff] %v1047
      %1054 = vrot.lane.b32.xlu0 %v922, 111
      %v1055 = vpop.permute.xlu0 %1054
      %1056 = vrot.lane.b32.xlu0 %v923, 111
      %v1057 = vpop.permute.xlu0 %1056
      %1058 = vrot.lane.b32.xlu0 %v924, 111
      %v1059 = vpop.permute.xlu0 %1058
      %1060 = vrot.lane.b32.xlu0 %v925, 111
      %v1061 = vpop.permute.xlu0 %1060
      %1062 = vrot.lane.b32.xlu0 %v926, 111
      %v1063 = vpop.permute.xlu0 %1062
      %1064 = vrot.lane.b32.xlu0 %v927, 111
      %v1065 = vpop.permute.xlu0 %1064
      %v1066 = vsel %vm570, %v1063, %v1065
      %v1067 = vsel %vm570, %v1061, %v1063
      %v1068 = vsel %vm570, %v1059, %v1061
      %v1069 = vsel %vm570, %v1057, %v1059
      %v1070 = vsel %vm570, %v1055, %v1057
      %v1071 = vsel %vm570, %v1065, %v1055
      %1072 = vst [vmem:[#allocation4 + $0x120] sm:$0xff] %v1070
      %1073 = vst [vmem:[#allocation4 + $0x128] sm:$0xff] %v1069
      %1074 = vst [vmem:[#allocation4 + $0x130] sm:$0xff] %v1068
      %1075 = vst [vmem:[#allocation4 + $0x138] sm:$0xff] %v1067
      %1076 = vst [vmem:[#allocation4 + $0x140] sm:$0xff] %v1066
      %1077 = vst [vmem:[#allocation4 + $0x148] sm:$0xff] %v1071
      %1078 = vrot.lane.b32.xlu0 %v922, 110
      %v1079 = vpop.permute.xlu0 %1078
      %1080 = vrot.lane.b32.xlu0 %v923, 110
      %v1081 = vpop.permute.xlu0 %1080
      %1082 = vrot.lane.b32.xlu0 %v924, 110
      %v1083 = vpop.permute.xlu0 %1082
      %1084 = vrot.lane.b32.xlu0 %v925, 110
      %v1085 = vpop.permute.xlu0 %1084
      %1086 = vrot.lane.b32.xlu0 %v926, 110
      %v1087 = vpop.permute.xlu0 %1086
      %1088 = vrot.lane.b32.xlu0 %v927, 110
      %v1089 = vpop.permute.xlu0 %1088
      %v1090 = vsel %vm595, %v1087, %v1089
      %v1091 = vsel %vm595, %v1085, %v1087
      %v1092 = vsel %vm595, %v1083, %v1085
      %v1093 = vsel %vm595, %v1081, %v1083
      %v1094 = vsel %vm595, %v1079, %v1081
      %v1095 = vsel %vm595, %v1089, %v1079
      %1096 = vst [vmem:[#allocation4 + $0x150] sm:$0xff] %v1094
      %1097 = vst [vmem:[#allocation4 + $0x158] sm:$0xff] %v1093
      %1098 = vst [vmem:[#allocation4 + $0x160] sm:$0xff] %v1092
      %1099 = vst [vmem:[#allocation4 + $0x168] sm:$0xff] %v1091
      %1100 = vst [vmem:[#allocation4 + $0x170] sm:$0xff] %v1090
      %1101 = vst [vmem:[#allocation4 + $0x178] sm:$0xff] %v1095
      %1102 = vrot.lane.b32.xlu0 %v922, 109
      %v1103 = vpop.permute.xlu0 %1102
      %1104 = vrot.lane.b32.xlu0 %v923, 109
      %v1105 = vpop.permute.xlu0 %1104
      %1106 = vrot.lane.b32.xlu0 %v924, 109
      %v1107 = vpop.permute.xlu0 %1106
      %1108 = vrot.lane.b32.xlu0 %v925, 109
      %v1109 = vpop.permute.xlu0 %1108
      %1110 = vrot.lane.b32.xlu0 %v926, 109
      %v1111 = vpop.permute.xlu0 %1110
      %1112 = vrot.lane.b32.xlu0 %v927, 109
      %v1113 = vpop.permute.xlu0 %1112
      %v1114 = vsel %vm620, %v1111, %v1113
      %v1115 = vsel %vm620, %v1109, %v1111
      %v1116 = vsel %vm620, %v1107, %v1109
      %v1117 = vsel %vm620, %v1105, %v1107
      %v1118 = vsel %vm620, %v1103, %v1105
      %v1119 = vsel %vm620, %v1113, %v1103
      %1120 = vst [vmem:[#allocation4 + $0x180] sm:$0xff] %v1118
      %1121 = vst [vmem:[#allocation4 + $0x188] sm:$0xff] %v1117
      %1122 = vst [vmem:[#allocation4 + $0x190] sm:$0xff] %v1116
      %1123 = vst [vmem:[#allocation4 + $0x198] sm:$0xff] %v1115
      %1124 = vst [vmem:[#allocation4 + $0x1a0] sm:$0xff] %v1114
      %1125 = vst [vmem:[#allocation4 + $0x1a8] sm:$0xff] %v1119
      %v1126 = vld [vmem:[#allocation4] sm:$0xff]
      %v1127 = vld [vmem:[#allocation4 + $0x8] sm:$0xff]
      %v1128 = vld [vmem:[#allocation4 + $0x10] sm:$0xff]
      %v1129 = vld [vmem:[#allocation4 + $0x18] sm:$0xff]
      %v1130 = vld [vmem:[#allocation4 + $0x20] sm:$0xff]
      %v1131 = vld [vmem:[#allocation4 + $0x28] sm:$0xff]
      %v1132 = vld [vmem:[#allocation4 + $0x30] sm:$0xff]
      %v1133 = vld [vmem:[#allocation4 + $0x38] sm:$0xff]
      %v1134 = vld [vmem:[#allocation4 + $0x40] sm:$0xff]
      %v1135 = vld [vmem:[#allocation4 + $0x48] sm:$0xff]
      %v1136 = vld [vmem:[#allocation4 + $0x50] sm:$0xff]
      %v1137 = vld [vmem:[#allocation4 + $0x58] sm:$0xff]
      %v1138 = vld [vmem:[#allocation4 + $0x60] sm:$0xff]
      %v1139 = vld [vmem:[#allocation4 + $0x68] sm:$0xff]
      %v1140 = vld [vmem:[#allocation4 + $0x70] sm:$0xff]
      %v1141 = vld [vmem:[#allocation4 + $0x78] sm:$0xff]
      %v1142 = vld [vmem:[#allocation4 + $0x80] sm:$0xff]
      %v1143 = vld [vmem:[#allocation4 + $0x88] sm:$0xff]
      %v1144 = vld [vmem:[#allocation4 + $0x90] sm:$0xff]
      %v1145 = vld [vmem:[#allocation4 + $0x98] sm:$0xff]
      %v1146 = vld [vmem:[#allocation4 + $0xa0] sm:$0xff]
      %v1147 = vld [vmem:[#allocation4 + $0xa8] sm:$0xff]
      %v1148 = vld [vmem:[#allocation4 + $0xb0] sm:$0xff]
      %v1149 = vld [vmem:[#allocation4 + $0xb8] sm:$0xff]
      %v1150 = vld [vmem:[#allocation4 + $0xc0] sm:$0xff]
      %v1151 = vld [vmem:[#allocation4 + $0xc8] sm:$0xff]
      %v1152 = vld [vmem:[#allocation4 + $0xd0] sm:$0xff]
      %v1153 = vld [vmem:[#allocation4 + $0xd8] sm:$0xff]
      %v1154 = vld [vmem:[#allocation4 + $0xe0] sm:$0xff]
      %v1155 = vld [vmem:[#allocation4 + $0xe8] sm:$0xff]
      %v1156 = vld [vmem:[#allocation4 + $0xf0] sm:$0xff]
      %v1157 = vld [vmem:[#allocation4 + $0xf8] sm:$0xff]
      %v1158 = vld [vmem:[#allocation4 + $0x100] sm:$0xff]
      %v1159 = vld [vmem:[#allocation4 + $0x108] sm:$0xff]
      %v1160 = vld [vmem:[#allocation4 + $0x110] sm:$0xff]
      %v1161 = vld [vmem:[#allocation4 + $0x118] sm:$0xff]
      %v1162 = vld [vmem:[#allocation4 + $0x120] sm:$0xff]
      %v1163 = vld [vmem:[#allocation4 + $0x128] sm:$0xff]
      %v1164 = vld [vmem:[#allocation4 + $0x130] sm:$0xff]
      %v1165 = vld [vmem:[#allocation4 + $0x138] sm:$0xff]
      %v1166 = vld [vmem:[#allocation4 + $0x140] sm:$0xff]
      %v1167 = vld [vmem:[#allocation4 + $0x148] sm:$0xff]
      %v1168 = vld [vmem:[#allocation4 + $0x150] sm:$0xff]
      %v1169 = vld [vmem:[#allocation4 + $0x158] sm:$0xff]
      %v1170 = vld [vmem:[#allocation4 + $0x160] sm:$0xff]
      %v1171 = vld [vmem:[#allocation4 + $0x168] sm:$0xff]
      %v1172 = vld [vmem:[#allocation4 + $0x170] sm:$0xff]
      %v1173 = vld [vmem:[#allocation4 + $0x178] sm:$0xff]
      %v1174 = vld [vmem:[#allocation4 + $0x180] sm:$0xff]
      %v1175 = vld [vmem:[#allocation4 + $0x188] sm:$0xff]
      %v1176 = vld [vmem:[#allocation4 + $0x190] sm:$0xff]
      %v1177 = vld [vmem:[#allocation4 + $0x198] sm:$0xff]
      %v1178 = vld [vmem:[#allocation4 + $0x1a0] sm:$0xff]
      %v1179 = vld [vmem:[#allocation4 + $0x1a8] sm:$0xff]
      %v1181 = vsel %vm687, %v416, 0
      %1183 = vmatprep.subr.mxu0 0.0
      %1184 = vmatpush1.msra.mxu0 0.0
      %1185 = vmatprep.subr.mxu0 0.0
      %1186 = vmatpush1.msra.mxu0 0.0
      %1187 = vmatprep.subr.mxu0 0.0
      %1188 = vmatpush1.msra.mxu0 0.0
      %1189 = vmatprep.subr.mxu0 0.0
      %1190 = vmatpush1.msra.mxu0 0.0
      %1191 = vmatprep.subr.mxu0 0.0
      %1192 = vmatpush1.msra.mxu0 0.0
      %1193 = vmatprep.subr.mxu0 0.0
      %1194 = vmatpush1.msra.mxu0 0.0
      %1195 = vmatprep.subr.mxu0 0.0
      %1196 = vmatpush1.msra.mxu0 0.0
      %1197 = vmatprep.subr.mxu0 %v1175
      %1198 = vmatpush1.msra.mxu0 %v1174
      %1199 = vmatprep.subr.mxu0 %v1169
      %1200 = vmatpush1.msra.mxu0 %v1168
      %1201 = vmatprep.subr.mxu0 %v1163
      %1202 = vmatpush1.msra.mxu0 %v1162
      %1203 = vmatprep.subr.mxu0 %v1157
      %1204 = vmatpush1.msra.mxu0 %v1156
      %1205 = vmatprep.subr.mxu0 %v1151
      %1206 = vmatpush1.msra.mxu0 %v1150
      %1207 = vmatprep.subr.mxu0 %v1145
      %1208 = vmatpush1.msra.mxu0 %v1144
      %1209 = vmatprep.subr.mxu0 %v1139
      %1210 = vmatpush1.msra.mxu0 %v1138
      %1211 = vmatprep.subr.mxu0 %v1133
      %1212 = vmatpush1.msra.mxu0 %v1132
      %1213 = vmatprep.subr.mxu0 %v1127
      %1214 = vmatpush1.msra.mxu0 %v1126
      %1215 = vmatprep.subr.mxu0 0.0
      %1216 = vmatpush2.msra.mxu0 0.0
      %1217 = vmatprep.subr.mxu0 0.0
      %1218 = vmatpush2.msra.mxu0 0.0
      %1219 = vmatprep.subr.mxu0 0.0
      %1220 = vmatpush2.msra.mxu0 0.0
      %1221 = vmatprep.subr.mxu0 0.0
      %1222 = vmatpush2.msra.mxu0 0.0
      %1223 = vmatprep.subr.mxu0 0.0
      %1224 = vmatpush2.msra.mxu0 0.0
      %1225 = vmatprep.subr.mxu0 0.0
      %1226 = vmatpush2.msra.mxu0 0.0
      %1227 = vmatprep.subr.mxu0 0.0
      %1228 = vmatpush2.msra.mxu0 0.0
      %1229 = vmatprep.subr.mxu0 0.0
      %1230 = vmatpush2.msra.mxu0 0.0
      %1231 = vmatprep.subr.mxu0 0.0
      %1232 = vmatpush2.msra.mxu0 0.0
      %1233 = vmatprep.subr.mxu0 0.0
      %1234 = vmatpush2.msra.mxu0 0.0
      %1235 = vmatprep.subr.mxu0 0.0
      %1236 = vmatpush2.msra.mxu0 0.0
      %1237 = vmatprep.subr.mxu0 0.0
      %1238 = vmatpush2.msra.mxu0 0.0
      %1239 = vmatprep.subr.mxu0 0.0
      %1240 = vmatpush2.msra.mxu0 0.0
      %1241 = vmatprep.subr.mxu0 0.0
      %1242 = vmatpush2.msra.mxu0 0.0
      %1243 = vmatprep.subr.mxu0 0.0
      %1244 = vmatpush2.msra.mxu0 0.0
      %1245 = vmatprep.subr.mxu0 0.0
      %1246 = vmatpush2.msra.mxu0 0.0
      %1247 = vmatprep.mubr.f32.mxu0 0.0
      %1248 = vmatmul.mubr.f32.gmra.mxu0 %v1181
      %v1249 = vpop.f32.mrf.mxu0
      %v1250 = vadd.f32 %v402, %v1249
      %v1251 = vpop.f32.mrf.mxu0
      %v1252 = vadd.f32 %v402, %v1251
      %1253 = vdwg.mxu0
      %1254 = vmatprep.subr.mxu0 0.0
      %1255 = vmatpush1.msra.mxu0 0.0
      %1256 = vmatprep.subr.mxu0 0.0
      %1257 = vmatpush1.msra.mxu0 0.0
      %1258 = vmatprep.subr.mxu0 0.0
      %1259 = vmatpush1.msra.mxu0 0.0
      %1260 = vmatprep.subr.mxu0 0.0
      %1261 = vmatpush1.msra.mxu0 0.0
      %1262 = vmatprep.subr.mxu0 0.0
      %1263 = vmatpush1.msra.mxu0 0.0
      %1264 = vmatprep.subr.mxu0 0.0
      %1265 = vmatpush1.msra.mxu0 0.0
      %1266 = vmatprep.subr.mxu0 0.0
      %1267 = vmatpush1.msra.mxu0 0.0
      %1268 = vmatprep.subr.mxu0 %v1177
      %1269 = vmatpush1.msra.mxu0 %v1176
      %1270 = vmatprep.subr.mxu0 %v1171
      %1271 = vmatpush1.msra.mxu0 %v1170
      %1272 = vmatprep.subr.mxu0 %v1165
      %1273 = vmatpush1.msra.mxu0 %v1164
      %1274 = vmatprep.subr.mxu0 %v1159
      %1275 = vmatpush1.msra.mxu0 %v1158
      %1276 = vmatprep.subr.mxu0 %v1153
      %1277 = vmatpush1.msra.mxu0 %v1152
      %1278 = vmatprep.subr.mxu0 %v1147
      %1279 = vmatpush1.msra.mxu0 %v1146
      %1280 = vmatprep.subr.mxu0 %v1141
      %1281 = vmatpush1.msra.mxu0 %v1140
      %1282 = vmatprep.subr.mxu0 %v1135
      %1283 = vmatpush1.msra.mxu0 %v1134
      %1284 = vmatprep.subr.mxu0 %v1129
      %1285 = vmatpush1.msra.mxu0 %v1128
      %1286 = vmatprep.subr.mxu0 0.0
      %1287 = vmatpush2.msra.mxu0 0.0
      %1288 = vmatprep.subr.mxu0 0.0
      %1289 = vmatpush2.msra.mxu0 0.0
      %1290 = vmatprep.subr.mxu0 0.0
      %1291 = vmatpush2.msra.mxu0 0.0
      %1292 = vmatprep.subr.mxu0 0.0
      %1293 = vmatpush2.msra.mxu0 0.0
      %1294 = vmatprep.subr.mxu0 0.0
      %1295 = vmatpush2.msra.mxu0 0.0
      %1296 = vmatprep.subr.mxu0 0.0
      %1297 = vmatpush2.msra.mxu0 0.0
      %1298 = vmatprep.subr.mxu0 0.0
      %1299 = vmatpush2.msra.mxu0 0.0
      %1300 = vmatprep.subr.mxu0 0.0
      %1301 = vmatpush2.msra.mxu0 0.0
      %1302 = vmatprep.subr.mxu0 0.0
      %1303 = vmatpush2.msra.mxu0 0.0
      %1304 = vmatprep.subr.mxu0 0.0
      %1305 = vmatpush2.msra.mxu0 0.0
      %1306 = vmatprep.subr.mxu0 0.0
      %1307 = vmatpush2.msra.mxu0 0.0
      %1308 = vmatprep.subr.mxu0 0.0
      %1309 = vmatpush2.msra.mxu0 0.0
      %1310 = vmatprep.subr.mxu0 0.0
      %1311 = vmatpush2.msra.mxu0 0.0
      %1312 = vmatprep.subr.mxu0 0.0
      %1313 = vmatpush2.msra.mxu0 0.0
      %1314 = vmatprep.subr.mxu0 0.0
      %1315 = vmatpush2.msra.mxu0 0.0
      %1316 = vmatprep.subr.mxu0 0.0
      %1317 = vmatpush2.msra.mxu0 0.0
      %1318 = vmatprep.mubr.f32.mxu0 0.0
      %1319 = vmatmul.mubr.f32.gmra.mxu0 %v1181
      %v1320 = vpop.f32.mrf.mxu0
      %v1321 = vadd.f32 %v402, %v1320
      %v1322 = vpop.f32.mrf.mxu0
      %v1323 = vadd.f32 %v402, %v1322
      %1324 = vdwg.mxu0
      %1325 = vmatprep.subr.mxu0 0.0
      %1326 = vmatpush1.msra.mxu0 0.0
      %1327 = vmatprep.subr.mxu0 0.0
      %1328 = vmatpush1.msra.mxu0 0.0
      %1329 = vmatprep.subr.mxu0 0.0
      %1330 = vmatpush1.msra.mxu0 0.0
      %1331 = vmatprep.subr.mxu0 0.0
      %1332 = vmatpush1.msra.mxu0 0.0
      %1333 = vmatprep.subr.mxu0 0.0
      %1334 = vmatpush1.msra.mxu0 0.0
      %1335 = vmatprep.subr.mxu0 0.0
      %1336 = vmatpush1.msra.mxu0 0.0
      %1337 = vmatprep.subr.mxu0 0.0
      %1338 = vmatpush1.msra.mxu0 0.0
      %1339 = vmatprep.subr.mxu0 %v1179
      %1340 = vmatpush1.msra.mxu0 %v1178
      %1341 = vmatprep.subr.mxu0 %v1173
      %1342 = vmatpush1.msra.mxu0 %v1172
      %1343 = vmatprep.subr.mxu0 %v1167
      %1344 = vmatpush1.msra.mxu0 %v1166
      %1345 = vmatprep.subr.mxu0 %v1161
      %1346 = vmatpush1.msra.mxu0 %v1160
      %1347 = vmatprep.subr.mxu0 %v1155
      %1348 = vmatpush1.msra.mxu0 %v1154
      %1349 = vmatprep.subr.mxu0 %v1149
      %1350 = vmatpush1.msra.mxu0 %v1148
      %1351 = vmatprep.subr.mxu0 %v1143
      %1352 = vmatpush1.msra.mxu0 %v1142
      %1353 = vmatprep.subr.mxu0 %v1137
      %1354 = vmatpush1.msra.mxu0 %v1136
      %1355 = vmatprep.subr.mxu0 %v1131
      %1356 = vmatpush1.msra.mxu0 %v1130
      %1357 = vmatprep.subr.mxu0 0.0
      %1358 = vmatpush2.msra.mxu0 0.0
      %1359 = vmatprep.subr.mxu0 0.0
      %1360 = vmatpush2.msra.mxu0 0.0
      %1361 = vmatprep.subr.mxu0 0.0
      %1362 = vmatpush2.msra.mxu0 0.0
      %1363 = vmatprep.subr.mxu0 0.0
      %1364 = vmatpush2.msra.mxu0 0.0
      %1365 = vmatprep.subr.mxu0 0.0
      %1366 = vmatpush2.msra.mxu0 0.0
      %1367 = vmatprep.subr.mxu0 0.0
      %1368 = vmatpush2.msra.mxu0 0.0
      %1369 = vmatprep.subr.mxu0 0.0
      %1370 = vmatpush2.msra.mxu0 0.0
      %1371 = vmatprep.subr.mxu0 0.0
      %1372 = vmatpush2.msra.mxu0 0.0
      %1373 = vmatprep.subr.mxu0 0.0
      %1374 = vmatpush2.msra.mxu0 0.0
      %1375 = vmatprep.subr.mxu0 0.0
      %1376 = vmatpush2.msra.mxu0 0.0
      %1377 = vmatprep.subr.mxu0 0.0
      %1378 = vmatpush2.msra.mxu0 0.0
      %1379 = vmatprep.subr.mxu0 0.0
      %1380 = vmatpush2.msra.mxu0 0.0
      %1381 = vmatprep.subr.mxu0 0.0
      %1382 = vmatpush2.msra.mxu0 0.0
      %1383 = vmatprep.subr.mxu0 0.0
      %1384 = vmatpush2.msra.mxu0 0.0
      %1385 = vmatprep.subr.mxu0 0.0
      %1386 = vmatpush2.msra.mxu0 0.0
      %1387 = vmatprep.subr.mxu0 0.0
      %1388 = vmatpush2.msra.mxu0 0.0
      %1389 = vmatprep.mubr.f32.mxu0 0.0
      %1390 = vmatmul.mubr.f32.gmra.mxu0 %v1181
      %v1391 = vpop.f32.mrf.mxu0
      %v1392 = vadd.f32 %v402, %v1391
      %v1393 = vpop.f32.mrf.mxu0
      %v1394 = vadd.f32 %v402, %v1393
      %1395 = vdwg.mxu0
      %v1396 = vmax.f32 %v1250, 0.0
      %v1397 = vmax.f32 %v1252, 0.0
      %v1398 = vmax.f32 %v1321, 0.0
      %v1399 = vmax.f32 %v1323, 0.0
      %v1400 = vmax.f32 %v1392, 0.0
      %v1401 = vmax.f32 %v1394, 0.0
      %v1402 = vmul.f32 %v1396, %v365
      %v1403 = vmul.f32 %v1397, %v369
      %v1404 = vmul.f32 %v1398, %v373
      %v1405 = vmul.f32 %v1399, %v377
      %v1406 = vmul.f32 %v1400, %v381
      %v1407 = vmul.f32 %v1401, %v385
      %1408 = vst [vmem:[#allocation3] sm:$0xff] %v1402
      %1409 = vst [vmem:[#allocation3 + $0x8] sm:$0xff] %v1403
      %1410 = vst [vmem:[#allocation3 + $0x10] sm:$0xff] %v1404
      %1411 = vst [vmem:[#allocation3 + $0x18] sm:$0xff] %v1405
      %1412 = vst [vmem:[#allocation3 + $0x20] sm:$0xff] %v1406
      %1413 = vst [vmem:[#allocation3 + $0x28] sm:$0xff] %v1407
      %v1414 = vld [vmem:[#allocation2] sm:$0xff]
      %v1415 = vld [vmem:[#allocation2 + $0x8] sm:$0xff]
      %v1416 = vld [vmem:[#allocation2 + $0x10] sm:$0xff]
      %v1417 = vld [vmem:[#allocation2 + $0x18] sm:$0xff]
      %v1418 = vld [vmem:[#allocation2 + $0x20] sm:$0xff]
      %v1419 = vld [vmem:[#allocation2 + $0x28] sm:$0xff]
      %v1420 = vld [vmem:[#allocation3] sm:$0xff]
      %v1421 = vld [vmem:[#allocation3 + $0x8] sm:$0xff]
      %v1422 = vld [vmem:[#allocation3 + $0x10] sm:$0xff]
      %v1423 = vld [vmem:[#allocation3 + $0x18] sm:$0xff]
      %v1424 = vld [vmem:[#allocation3 + $0x20] sm:$0xff]
      %v1425 = vld [vmem:[#allocation3 + $0x28] sm:$0xff]
      %1426 = vrot.lane.b32.xlu0 %v1420, 19
      %v1427 = vpop.permute.xlu0 %1426
      %1428 = vrot.lane.b32.xlu0 %v1421, 19
      %v1429 = vpop.permute.xlu0 %1428
      %1430 = vrot.lane.b32.xlu0 %v1422, 19
      %v1431 = vpop.permute.xlu0 %1430
      %1432 = vrot.lane.b32.xlu0 %v1423, 19
      %v1433 = vpop.permute.xlu0 %1432
      %1434 = vrot.lane.b32.xlu0 %v1424, 19
      %v1435 = vpop.permute.xlu0 %1434
      %1436 = vrot.lane.b32.xlu0 %v1425, 19
      %v1437 = vpop.permute.xlu0 %1436
      %v1438 = vsel %vm439, %v1435, %v1437
      %v1439 = vsel %vm439, %v1433, %v1435
      %v1440 = vsel %vm439, %v1431, %v1433
      %v1441 = vsel %vm439, %v1429, %v1431
      %v1442 = vsel %vm439, %v1427, %v1429
      %v1443 = vsel %vm439, %v1437, %v1427
      %1444 = vst [vmem:[#allocation4] sm:$0xff] %v1443
      %1445 = vst [vmem:[#allocation4 + $0x8] sm:$0xff] %v1442
      %1446 = vst [vmem:[#allocation4 + $0x10] sm:$0xff] %v1441
      %1447 = vst [vmem:[#allocation4 + $0x18] sm:$0xff] %v1440
      %1448 = vst [vmem:[#allocation4 + $0x20] sm:$0xff] %v1439
      %1449 = vst [vmem:[#allocation4 + $0x28] sm:$0xff] %v1438
      %1450 = vrot.lane.b32.xlu0 %v1420, 18
      %v1451 = vpop.permute.xlu0 %1450
      %1452 = vrot.lane.b32.xlu0 %v1421, 18
      %v1453 = vpop.permute.xlu0 %1452
      %1454 = vrot.lane.b32.xlu0 %v1422, 18
      %v1455 = vpop.permute.xlu0 %1454
      %1456 = vrot.lane.b32.xlu0 %v1423, 18
      %v1457 = vpop.permute.xlu0 %1456
      %1458 = vrot.lane.b32.xlu0 %v1424, 18
      %v1459 = vpop.permute.xlu0 %1458
      %1460 = vrot.lane.b32.xlu0 %v1425, 18
      %v1461 = vpop.permute.xlu0 %1460
      %v1462 = vsel %vm464, %v1459, %v1461
      %v1463 = vsel %vm464, %v1457, %v1459
      %v1464 = vsel %vm464, %v1455, %v1457
      %v1465 = vsel %vm464, %v1453, %v1455
      %v1466 = vsel %vm464, %v1451, %v1453
      %v1467 = vsel %vm464, %v1461, %v1451
      %1468 = vst [vmem:[#allocation4 + $0x30] sm:$0xff] %v1467
      %1469 = vst [vmem:[#allocation4 + $0x38] sm:$0xff] %v1466
      %1470 = vst [vmem:[#allocation4 + $0x40] sm:$0xff] %v1465
      %1471 = vst [vmem:[#allocation4 + $0x48] sm:$0xff] %v1464
      %1472 = vst [vmem:[#allocation4 + $0x50] sm:$0xff] %v1463
      %1473 = vst [vmem:[#allocation4 + $0x58] sm:$0xff] %v1462
      %1474 = vrot.lane.b32.xlu0 %v1420, 17
      %v1475 = vpop.permute.xlu0 %1474
      %1476 = vrot.lane.b32.xlu0 %v1421, 17
      %v1477 = vpop.permute.xlu0 %1476
      %1478 = vrot.lane.b32.xlu0 %v1422, 17
      %v1479 = vpop.permute.xlu0 %1478
      %1480 = vrot.lane.b32.xlu0 %v1423, 17
      %v1481 = vpop.permute.xlu0 %1480
      %1482 = vrot.lane.b32.xlu0 %v1424, 17
      %v1483 = vpop.permute.xlu0 %1482
      %1484 = vrot.lane.b32.xlu0 %v1425, 17
      %v1485 = vpop.permute.xlu0 %1484
      %v1486 = vsel %vm489, %v1483, %v1485
      %v1487 = vsel %vm489, %v1481, %v1483
      %v1488 = vsel %vm489, %v1479, %v1481
      %v1489 = vsel %vm489, %v1477, %v1479
      %v1490 = vsel %vm489, %v1475, %v1477
      %v1491 = vsel %vm489, %v1485, %v1475
      %1492 = vst [vmem:[#allocation4 + $0x60] sm:$0xff] %v1491
      %1493 = vst [vmem:[#allocation4 + $0x68] sm:$0xff] %v1490
      %1494 = vst [vmem:[#allocation4 + $0x70] sm:$0xff] %v1489
      %1495 = vst [vmem:[#allocation4 + $0x78] sm:$0xff] %v1488
      %1496 = vst [vmem:[#allocation4 + $0x80] sm:$0xff] %v1487
      %1497 = vst [vmem:[#allocation4 + $0x88] sm:$0xff] %v1486
      %1498 = vrot.lane.b32.xlu0 %v1420, 1
      %v1499 = vpop.permute.xlu0 %1498
      %1500 = vrot.lane.b32.xlu0 %v1421, 1
      %v1501 = vpop.permute.xlu0 %1500
      %1502 = vrot.lane.b32.xlu0 %v1422, 1
      %v1503 = vpop.permute.xlu0 %1502
      %1504 = vrot.lane.b32.xlu0 %v1423, 1
      %v1505 = vpop.permute.xlu0 %1504
      %1506 = vrot.lane.b32.xlu0 %v1424, 1
      %v1507 = vpop.permute.xlu0 %1506
      %1508 = vrot.lane.b32.xlu0 %v1425, 1
      %v1509 = vpop.permute.xlu0 %1508
      %v1510 = vsel %vm514, %v1507, %v1509
      %v1511 = vsel %vm514, %v1505, %v1507
      %v1512 = vsel %vm514, %v1503, %v1505
      %v1513 = vsel %vm514, %v1501, %v1503
      %v1514 = vsel %vm514, %v1499, %v1501
      %v1515 = vsel %vm514, %v1509, %v1499
      %1516 = vst [vmem:[#allocation4 + $0x90] sm:$0xff] %v1515
      %1517 = vst [vmem:[#allocation4 + $0x98] sm:$0xff] %v1514
      %1518 = vst [vmem:[#allocation4 + $0xa0] sm:$0xff] %v1513
      %1519 = vst [vmem:[#allocation4 + $0xa8] sm:$0xff] %v1512
      %1520 = vst [vmem:[#allocation4 + $0xb0] sm:$0xff] %v1511
      %1521 = vst [vmem:[#allocation4 + $0xb8] sm:$0xff] %v1510
      %1522 = vst [vmem:[#allocation4 + $0xc0] sm:$0xff] %v1420
      %1523 = vst [vmem:[#allocation4 + $0xc8] sm:$0xff] %v1421
      %1524 = vst [vmem:[#allocation4 + $0xd0] sm:$0xff] %v1422
      %1525 = vst [vmem:[#allocation4 + $0xd8] sm:$0xff] %v1423
      %1526 = vst [vmem:[#allocation4 + $0xe0] sm:$0xff] %v1424
      %1527 = vst [vmem:[#allocation4 + $0xe8] sm:$0xff] %v1425
      %1528 = vrot.lane.b32.xlu0 %v1420, 127
      %v1529 = vpop.permute.xlu0 %1528
      %1530 = vrot.lane.b32.xlu0 %v1421, 127
      %v1531 = vpop.permute.xlu0 %1530
      %1532 = vrot.lane.b32.xlu0 %v1422, 127
      %v1533 = vpop.permute.xlu0 %1532
      %1534 = vrot.lane.b32.xlu0 %v1423, 127
      %v1535 = vpop.permute.xlu0 %1534
      %1536 = vrot.lane.b32.xlu0 %v1424, 127
      %v1537 = vpop.permute.xlu0 %1536
      %1538 = vrot.lane.b32.xlu0 %v1425, 127
      %v1539 = vpop.permute.xlu0 %1538
      %v1540 = vsel %vm545, %v1537, %v1539
      %v1541 = vsel %vm545, %v1535, %v1537
      %v1542 = vsel %vm545, %v1533, %v1535
      %v1543 = vsel %vm545, %v1531, %v1533
      %v1544 = vsel %vm545, %v1529, %v1531
      %v1545 = vsel %vm545, %v1539, %v1529
      %1546 = vst [vmem:[#allocation4 + $0xf0] sm:$0xff] %v1544
      %1547 = vst [vmem:[#allocation4 + $0xf8] sm:$0xff] %v1543
      %1548 = vst [vmem:[#allocation4 + $0x100] sm:$0xff] %v1542
      %1549 = vst [vmem:[#allocation4 + $0x108] sm:$0xff] %v1541
      %1550 = vst [vmem:[#allocation4 + $0x110] sm:$0xff] %v1540
      %1551 = vst [vmem:[#allocation4 + $0x118] sm:$0xff] %v1545
      %1552 = vrot.lane.b32.xlu0 %v1420, 111
      %v1553 = vpop.permute.xlu0 %1552
      %1554 = vrot.lane.b32.xlu0 %v1421, 111
      %v1555 = vpop.permute.xlu0 %1554
      %1556 = vrot.lane.b32.xlu0 %v1422, 111
      %v1557 = vpop.permute.xlu0 %1556
      %1558 = vrot.lane.b32.xlu0 %v1423, 111
      %v1559 = vpop.permute.xlu0 %1558
      %1560 = vrot.lane.b32.xlu0 %v1424, 111
      %v1561 = vpop.permute.xlu0 %1560
      %1562 = vrot.lane.b32.xlu0 %v1425, 111
      %v1563 = vpop.permute.xlu0 %1562
      %v1564 = vsel %vm570, %v1561, %v1563
      %v1565 = vsel %vm570, %v1559, %v1561
      %v1566 = vsel %vm570, %v1557, %v1559
      %v1567 = vsel %vm570, %v1555, %v1557
      %v1568 = vsel %vm570, %v1553, %v1555
      %v1569 = vsel %vm570, %v1563, %v1553
      %1570 = vst [vmem:[#allocation4 + $0x120] sm:$0xff] %v1568
      %1571 = vst [vmem:[#allocation4 + $0x128] sm:$0xff] %v1567
      %1572 = vst [vmem:[#allocation4 + $0x130] sm:$0xff] %v1566
      %1573 = vst [vmem:[#allocation4 + $0x138] sm:$0xff] %v1565
      %1574 = vst [vmem:[#allocation4 + $0x140] sm:$0xff] %v1564
      %1575 = vst [vmem:[#allocation4 + $0x148] sm:$0xff] %v1569
      %1576 = vrot.lane.b32.xlu0 %v1420, 110
      %v1577 = vpop.permute.xlu0 %1576
      %1578 = vrot.lane.b32.xlu0 %v1421, 110
      %v1579 = vpop.permute.xlu0 %1578
      %1580 = vrot.lane.b32.xlu0 %v1422, 110
      %v1581 = vpop.permute.xlu0 %1580
      %1582 = vrot.lane.b32.xlu0 %v1423, 110
      %v1583 = vpop.permute.xlu0 %1582
      %1584 = vrot.lane.b32.xlu0 %v1424, 110
      %v1585 = vpop.permute.xlu0 %1584
      %1586 = vrot.lane.b32.xlu0 %v1425, 110
      %v1587 = vpop.permute.xlu0 %1586
      %v1588 = vsel %vm595, %v1585, %v1587
      %v1589 = vsel %vm595, %v1583, %v1585
      %v1590 = vsel %vm595, %v1581, %v1583
      %v1591 = vsel %vm595, %v1579, %v1581
      %v1592 = vsel %vm595, %v1577, %v1579
      %v1593 = vsel %vm595, %v1587, %v1577
      %1594 = vst [vmem:[#allocation4 + $0x150] sm:$0xff] %v1592
      %1595 = vst [vmem:[#allocation4 + $0x158] sm:$0xff] %v1591
      %1596 = vst [vmem:[#allocation4 + $0x160] sm:$0xff] %v1590
      %1597 = vst [vmem:[#allocation4 + $0x168] sm:$0xff] %v1589
      %1598 = vst [vmem:[#allocation4 + $0x170] sm:$0xff] %v1588
      %1599 = vst [vmem:[#allocation4 + $0x178] sm:$0xff] %v1593
      %1600 = vrot.lane.b32.xlu0 %v1420, 109
      %v1601 = vpop.permute.xlu0 %1600
      %1602 = vrot.lane.b32.xlu0 %v1421, 109
      %v1603 = vpop.permute.xlu0 %1602
      %1604 = vrot.lane.b32.xlu0 %v1422, 109
      %v1605 = vpop.permute.xlu0 %1604
      %1606 = vrot.lane.b32.xlu0 %v1423, 109
      %v1607 = vpop.permute.xlu0 %1606
      %1608 = vrot.lane.b32.xlu0 %v1424, 109
      %v1609 = vpop.permute.xlu0 %1608
      %1610 = vrot.lane.b32.xlu0 %v1425, 109
      %v1611 = vpop.permute.xlu0 %1610
      %v1612 = vsel %vm620, %v1609, %v1611
      %v1613 = vsel %vm620, %v1607, %v1609
      %v1614 = vsel %vm620, %v1605, %v1607
      %v1615 = vsel %vm620, %v1603, %v1605
      %v1616 = vsel %vm620, %v1601, %v1603
      %v1617 = vsel %vm620, %v1611, %v1601
      %1618 = vst [vmem:[#allocation4 + $0x180] sm:$0xff] %v1616
      %1619 = vst [vmem:[#allocation4 + $0x188] sm:$0xff] %v1615
      %1620 = vst [vmem:[#allocation4 + $0x190] sm:$0xff] %v1614
      %1621 = vst [vmem:[#allocation4 + $0x198] sm:$0xff] %v1613
      %1622 = vst [vmem:[#allocation4 + $0x1a0] sm:$0xff] %v1612
      %1623 = vst [vmem:[#allocation4 + $0x1a8] sm:$0xff] %v1617
      %v1624 = vld [vmem:[#allocation4] sm:$0xff]
      %v1625 = vld [vmem:[#allocation4 + $0x8] sm:$0xff]
      %v1626 = vld [vmem:[#allocation4 + $0x10] sm:$0xff]
      %v1627 = vld [vmem:[#allocation4 + $0x18] sm:$0xff]
      %v1628 = vld [vmem:[#allocation4 + $0x20] sm:$0xff]
      %v1629 = vld [vmem:[#allocation4 + $0x28] sm:$0xff]
      %v1630 = vld [vmem:[#allocation4 + $0x30] sm:$0xff]
      %v1631 = vld [vmem:[#allocation4 + $0x38] sm:$0xff]
      %v1632 = vld [vmem:[#allocation4 + $0x40] sm:$0xff]
      %v1633 = vld [vmem:[#allocation4 + $0x48] sm:$0xff]
      %v1634 = vld [vmem:[#allocation4 + $0x50] sm:$0xff]
      %v1635 = vld [vmem:[#allocation4 + $0x58] sm:$0xff]
      %v1636 = vld [vmem:[#allocation4 + $0x60] sm:$0xff]
      %v1637 = vld [vmem:[#allocation4 + $0x68] sm:$0xff]
      %v1638 = vld [vmem:[#allocation4 + $0x70] sm:$0xff]
      %v1639 = vld [vmem:[#allocation4 + $0x78] sm:$0xff]
      %v1640 = vld [vmem:[#allocation4 + $0x80] sm:$0xff]
      %v1641 = vld [vmem:[#allocation4 + $0x88] sm:$0xff]
      %v1642 = vld [vmem:[#allocation4 + $0x90] sm:$0xff]
      %v1643 = vld [vmem:[#allocation4 + $0x98] sm:$0xff]
      %v1644 = vld [vmem:[#allocation4 + $0xa0] sm:$0xff]
      %v1645 = vld [vmem:[#allocation4 + $0xa8] sm:$0xff]
      %v1646 = vld [vmem:[#allocation4 + $0xb0] sm:$0xff]
      %v1647 = vld [vmem:[#allocation4 + $0xb8] sm:$0xff]
      %v1648 = vld [vmem:[#allocation4 + $0xc0] sm:$0xff]
      %v1649 = vld [vmem:[#allocation4 + $0xc8] sm:$0xff]
      %v1650 = vld [vmem:[#allocation4 + $0xd0] sm:$0xff]
      %v1651 = vld [vmem:[#allocation4 + $0xd8] sm:$0xff]
      %v1652 = vld [vmem:[#allocation4 + $0xe0] sm:$0xff]
      %v1653 = vld [vmem:[#allocation4 + $0xe8] sm:$0xff]
      %v1654 = vld [vmem:[#allocation4 + $0xf0] sm:$0xff]
      %v1655 = vld [vmem:[#allocation4 + $0xf8] sm:$0xff]
      %v1656 = vld [vmem:[#allocation4 + $0x100] sm:$0xff]
      %v1657 = vld [vmem:[#allocation4 + $0x108] sm:$0xff]
      %v1658 = vld [vmem:[#allocation4 + $0x110] sm:$0xff]
      %v1659 = vld [vmem:[#allocation4 + $0x118] sm:$0xff]
      %v1660 = vld [vmem:[#allocation4 + $0x120] sm:$0xff]
      %v1661 = vld [vmem:[#allocation4 + $0x128] sm:$0xff]
      %v1662 = vld [vmem:[#allocation4 + $0x130] sm:$0xff]
      %v1663 = vld [vmem:[#allocation4 + $0x138] sm:$0xff]
      %v1664 = vld [vmem:[#allocation4 + $0x140] sm:$0xff]
      %v1665 = vld [vmem:[#allocation4 + $0x148] sm:$0xff]
      %v1666 = vld [vmem:[#allocation4 + $0x150] sm:$0xff]
      %v1667 = vld [vmem:[#allocation4 + $0x158] sm:$0xff]
      %v1668 = vld [vmem:[#allocation4 + $0x160] sm:$0xff]
      %v1669 = vld [vmem:[#allocation4 + $0x168] sm:$0xff]
      %v1670 = vld [vmem:[#allocation4 + $0x170] sm:$0xff]
      %v1671 = vld [vmem:[#allocation4 + $0x178] sm:$0xff]
      %v1672 = vld [vmem:[#allocation4 + $0x180] sm:$0xff]
      %v1673 = vld [vmem:[#allocation4 + $0x188] sm:$0xff]
      %v1674 = vld [vmem:[#allocation4 + $0x190] sm:$0xff]
      %v1675 = vld [vmem:[#allocation4 + $0x198] sm:$0xff]
      %v1676 = vld [vmem:[#allocation4 + $0x1a0] sm:$0xff]
      %v1677 = vld [vmem:[#allocation4 + $0x1a8] sm:$0xff]
      %v1679 = vsel %vm687, %v417, 0
      %1681 = vmatprep.subr.mxu0 0.0
      %1682 = vmatpush1.msra.mxu0 0.0
      %1683 = vmatprep.subr.mxu0 0.0
      %1684 = vmatpush1.msra.mxu0 0.0
      %1685 = vmatprep.subr.mxu0 0.0
      %1686 = vmatpush1.msra.mxu0 0.0
      %1687 = vmatprep.subr.mxu0 0.0
      %1688 = vmatpush1.msra.mxu0 0.0
      %1689 = vmatprep.subr.mxu0 0.0
      %1690 = vmatpush1.msra.mxu0 0.0
      %1691 = vmatprep.subr.mxu0 0.0
      %1692 = vmatpush1.msra.mxu0 0.0
      %1693 = vmatprep.subr.mxu0 0.0
      %1694 = vmatpush1.msra.mxu0 0.0
      %1695 = vmatprep.subr.mxu0 %v1673
      %1696 = vmatpush1.msra.mxu0 %v1672
      %1697 = vmatprep.subr.mxu0 %v1667
      %1698 = vmatpush1.msra.mxu0 %v1666
      %1699 = vmatprep.subr.mxu0 %v1661
      %1700 = vmatpush1.msra.mxu0 %v1660
      %1701 = vmatprep.subr.mxu0 %v1655
      %1702 = vmatpush1.msra.mxu0 %v1654
      %1703 = vmatprep.subr.mxu0 %v1649
      %1704 = vmatpush1.msra.mxu0 %v1648
      %1705 = vmatprep.subr.mxu0 %v1643
      %1706 = vmatpush1.msra.mxu0 %v1642
      %1707 = vmatprep.subr.mxu0 %v1637
      %1708 = vmatpush1.msra.mxu0 %v1636
      %1709 = vmatprep.subr.mxu0 %v1631
      %1710 = vmatpush1.msra.mxu0 %v1630
      %1711 = vmatprep.subr.mxu0 %v1625
      %1712 = vmatpush1.msra.mxu0 %v1624
      %1713 = vmatprep.subr.mxu0 0.0
      %1714 = vmatpush2.msra.mxu0 0.0
      %1715 = vmatprep.subr.mxu0 0.0
      %1716 = vmatpush2.msra.mxu0 0.0
      %1717 = vmatprep.subr.mxu0 0.0
      %1718 = vmatpush2.msra.mxu0 0.0
      %1719 = vmatprep.subr.mxu0 0.0
      %1720 = vmatpush2.msra.mxu0 0.0
      %1721 = vmatprep.subr.mxu0 0.0
      %1722 = vmatpush2.msra.mxu0 0.0
      %1723 = vmatprep.subr.mxu0 0.0
      %1724 = vmatpush2.msra.mxu0 0.0
      %1725 = vmatprep.subr.mxu0 0.0
      %1726 = vmatpush2.msra.mxu0 0.0
      %1727 = vmatprep.subr.mxu0 0.0
      %1728 = vmatpush2.msra.mxu0 0.0
      %1729 = vmatprep.subr.mxu0 0.0
      %1730 = vmatpush2.msra.mxu0 0.0
      %1731 = vmatprep.subr.mxu0 0.0
      %1732 = vmatpush2.msra.mxu0 0.0
      %1733 = vmatprep.subr.mxu0 0.0
      %1734 = vmatpush2.msra.mxu0 0.0
      %1735 = vmatprep.subr.mxu0 0.0
      %1736 = vmatpush2.msra.mxu0 0.0
      %1737 = vmatprep.subr.mxu0 0.0
      %1738 = vmatpush2.msra.mxu0 0.0
      %1739 = vmatprep.subr.mxu0 0.0
      %1740 = vmatpush2.msra.mxu0 0.0
      %1741 = vmatprep.subr.mxu0 0.0
      %1742 = vmatpush2.msra.mxu0 0.0
      %1743 = vmatprep.subr.mxu0 0.0
      %1744 = vmatpush2.msra.mxu0 0.0
      %1745 = vmatprep.mubr.f32.mxu0 0.0
      %1746 = vmatmul.mubr.f32.gmra.mxu0 %v1679
      %v1747 = vpop.f32.mrf.mxu0
      %v1748 = vadd.f32 %v408, %v1747
      %v1749 = vpop.f32.mrf.mxu0
      %v1750 = vadd.f32 %v408, %v1749
      %1751 = vdwg.mxu0
      %1752 = vmatprep.subr.mxu0 0.0
      %1753 = vmatpush1.msra.mxu0 0.0
      %1754 = vmatprep.subr.mxu0 0.0
      %1755 = vmatpush1.msra.mxu0 0.0
      %1756 = vmatprep.subr.mxu0 0.0
      %1757 = vmatpush1.msra.mxu0 0.0
      %1758 = vmatprep.subr.mxu0 0.0
      %1759 = vmatpush1.msra.mxu0 0.0
      %1760 = vmatprep.subr.mxu0 0.0
      %1761 = vmatpush1.msra.mxu0 0.0
      %1762 = vmatprep.subr.mxu0 0.0
      %1763 = vmatpush1.msra.mxu0 0.0
      %1764 = vmatprep.subr.mxu0 0.0
      %1765 = vmatpush1.msra.mxu0 0.0
      %1766 = vmatprep.subr.mxu0 %v1675
      %1767 = vmatpush1.msra.mxu0 %v1674
      %1768 = vmatprep.subr.mxu0 %v1669
      %1769 = vmatpush1.msra.mxu0 %v1668
      %1770 = vmatprep.subr.mxu0 %v1663
      %1771 = vmatpush1.msra.mxu0 %v1662
      %1772 = vmatprep.subr.mxu0 %v1657
      %1773 = vmatpush1.msra.mxu0 %v1656
      %1774 = vmatprep.subr.mxu0 %v1651
      %1775 = vmatpush1.msra.mxu0 %v1650
      %1776 = vmatprep.subr.mxu0 %v1645
      %1777 = vmatpush1.msra.mxu0 %v1644
      %1778 = vmatprep.subr.mxu0 %v1639
      %1779 = vmatpush1.msra.mxu0 %v1638
      %1780 = vmatprep.subr.mxu0 %v1633
      %1781 = vmatpush1.msra.mxu0 %v1632
      %1782 = vmatprep.subr.mxu0 %v1627
      %1783 = vmatpush1.msra.mxu0 %v1626
      %1784 = vmatprep.subr.mxu0 0.0
      %1785 = vmatpush2.msra.mxu0 0.0
      %1786 = vmatprep.subr.mxu0 0.0
      %1787 = vmatpush2.msra.mxu0 0.0
      %1788 = vmatprep.subr.mxu0 0.0
      %1789 = vmatpush2.msra.mxu0 0.0
      %1790 = vmatprep.subr.mxu0 0.0
      %1791 = vmatpush2.msra.mxu0 0.0
      %1792 = vmatprep.subr.mxu0 0.0
      %1793 = vmatpush2.msra.mxu0 0.0
      %1794 = vmatprep.subr.mxu0 0.0
      %1795 = vmatpush2.msra.mxu0 0.0
      %1796 = vmatprep.subr.mxu0 0.0
      %1797 = vmatpush2.msra.mxu0 0.0
      %1798 = vmatprep.subr.mxu0 0.0
      %1799 = vmatpush2.msra.mxu0 0.0
      %1800 = vmatprep.subr.mxu0 0.0
      %1801 = vmatpush2.msra.mxu0 0.0
      %1802 = vmatprep.subr.mxu0 0.0
      %1803 = vmatpush2.msra.mxu0 0.0
      %1804 = vmatprep.subr.mxu0 0.0
      %1805 = vmatpush2.msra.mxu0 0.0
      %1806 = vmatprep.subr.mxu0 0.0
      %1807 = vmatpush2.msra.mxu0 0.0
      %1808 = vmatprep.subr.mxu0 0.0
      %1809 = vmatpush2.msra.mxu0 0.0
      %1810 = vmatprep.subr.mxu0 0.0
      %1811 = vmatpush2.msra.mxu0 0.0
      %1812 = vmatprep.subr.mxu0 0.0
      %1813 = vmatpush2.msra.mxu0 0.0
      %1814 = vmatprep.subr.mxu0 0.0
      %1815 = vmatpush2.msra.mxu0 0.0
      %1816 = vmatprep.mubr.f32.mxu0 0.0
      %1817 = vmatmul.mubr.f32.gmra.mxu0 %v1679
      %v1818 = vpop.f32.mrf.mxu0
      %v1819 = vadd.f32 %v408, %v1818
      %v1820 = vpop.f32.mrf.mxu0
      %v1821 = vadd.f32 %v408, %v1820
      %1822 = vdwg.mxu0
      %1823 = vmatprep.subr.mxu0 0.0
      %1824 = vmatpush1.msra.mxu0 0.0
      %1825 = vmatprep.subr.mxu0 0.0
      %1826 = vmatpush1.msra.mxu0 0.0
      %1827 = vmatprep.subr.mxu0 0.0
      %1828 = vmatpush1.msra.mxu0 0.0
      %1829 = vmatprep.subr.mxu0 0.0
      %1830 = vmatpush1.msra.mxu0 0.0
      %1831 = vmatprep.subr.mxu0 0.0
      %1832 = vmatpush1.msra.mxu0 0.0
      %1833 = vmatprep.subr.mxu0 0.0
      %1834 = vmatpush1.msra.mxu0 0.0
      %1835 = vmatprep.subr.mxu0 0.0
      %1836 = vmatpush1.msra.mxu0 0.0
      %1837 = vmatprep.subr.mxu0 %v1677
      %1838 = vmatpush1.msra.mxu0 %v1676
      %1839 = vmatprep.subr.mxu0 %v1671
      %1840 = vmatpush1.msra.mxu0 %v1670
      %1841 = vmatprep.subr.mxu0 %v1665
      %1842 = vmatpush1.msra.mxu0 %v1664
      %1843 = vmatprep.subr.mxu0 %v1659
      %1844 = vmatpush1.msra.mxu0 %v1658
      %1845 = vmatprep.subr.mxu0 %v1653
      %1846 = vmatpush1.msra.mxu0 %v1652
      %1847 = vmatprep.subr.mxu0 %v1647
      %1848 = vmatpush1.msra.mxu0 %v1646
      %1849 = vmatprep.subr.mxu0 %v1641
      %1850 = vmatpush1.msra.mxu0 %v1640
      %1851 = vmatprep.subr.mxu0 %v1635
      %1852 = vmatpush1.msra.mxu0 %v1634
      %1853 = vmatprep.subr.mxu0 %v1629
      %1854 = vmatpush1.msra.mxu0 %v1628
      %1855 = vmatprep.subr.mxu0 0.0
      %1856 = vmatpush2.msra.mxu0 0.0
      %1857 = vmatprep.subr.mxu0 0.0
      %1858 = vmatpush2.msra.mxu0 0.0
      %1859 = vmatprep.subr.mxu0 0.0
      %1860 = vmatpush2.msra.mxu0 0.0
      %1861 = vmatprep.subr.mxu0 0.0
      %1862 = vmatpush2.msra.mxu0 0.0
      %1863 = vmatprep.subr.mxu0 0.0
      %1864 = vmatpush2.msra.mxu0 0.0
      %1865 = vmatprep.subr.mxu0 0.0
      %1866 = vmatpush2.msra.mxu0 0.0
      %1867 = vmatprep.subr.mxu0 0.0
      %1868 = vmatpush2.msra.mxu0 0.0
      %1869 = vmatprep.subr.mxu0 0.0
      %1870 = vmatpush2.msra.mxu0 0.0
      %1871 = vmatprep.subr.mxu0 0.0
      %1872 = vmatpush2.msra.mxu0 0.0
      %1873 = vmatprep.subr.mxu0 0.0
      %1874 = vmatpush2.msra.mxu0 0.0
      %1875 = vmatprep.subr.mxu0 0.0
      %1876 = vmatpush2.msra.mxu0 0.0
      %1877 = vmatprep.subr.mxu0 0.0
      %1878 = vmatpush2.msra.mxu0 0.0
      %1879 = vmatprep.subr.mxu0 0.0
      %1880 = vmatpush2.msra.mxu0 0.0
      %1881 = vmatprep.subr.mxu0 0.0
      %1882 = vmatpush2.msra.mxu0 0.0
      %1883 = vmatprep.subr.mxu0 0.0
      %1884 = vmatpush2.msra.mxu0 0.0
      %1885 = vmatprep.subr.mxu0 0.0
      %1886 = vmatpush2.msra.mxu0 0.0
      %1887 = vmatprep.mubr.f32.mxu0 0.0
      %1888 = vmatmul.mubr.f32.gmra.mxu0 %v1679
      %v1889 = vpop.f32.mrf.mxu0
      %v1890 = vadd.f32 %v408, %v1889
      %v1891 = vpop.f32.mrf.mxu0
      %v1892 = vadd.f32 %v408, %v1891
      %1893 = vdwg.mxu0
      %v1894 = vmax.f32 %v1748, 0.0
      %v1895 = vmax.f32 %v1750, 0.0
      %v1896 = vmax.f32 %v1819, 0.0
      %v1897 = vmax.f32 %v1821, 0.0
      %v1898 = vmax.f32 %v1890, 0.0
      %v1899 = vmax.f32 %v1892, 0.0
      %v1900 = vmul.f32 %v1894, %v365
      %v1901 = vmul.f32 %v1895, %v369
      %v1902 = vmul.f32 %v1896, %v373
      %v1903 = vmul.f32 %v1897, %v377
      %v1904 = vmul.f32 %v1898, %v381
      %v1905 = vmul.f32 %v1899, %v385
      %v1906 = vadd.f32 %v1414, %v1900
      %v1907 = vadd.f32 %v1415, %v1901
      %v1908 = vadd.f32 %v1416, %v1902
      %v1909 = vadd.f32 %v1417, %v1903
      %v1910 = vadd.f32 %v1418, %v1904
      %v1911 = vadd.f32 %v1419, %v1905
      %1912 = vst [vmem:[#allocation2] sm:$0xff] %v1906
      %1913 = vst [vmem:[#allocation2 + $0x8] sm:$0xff] %v1907
      %1914 = vst [vmem:[#allocation2 + $0x10] sm:$0xff] %v1908
      %1915 = vst [vmem:[#allocation2 + $0x18] sm:$0xff] %v1909
      %1916 = vst [vmem:[#allocation2 + $0x20] sm:$0xff] %v1910
      %1917 = vst [vmem:[#allocation2 + $0x28] sm:$0xff] %v1911
      %v1918 = vld [vmem:[#allocation2] sm:$0xff]
      %v1919 = vld [vmem:[#allocation2 + $0x8] sm:$0xff]
      %v1920 = vld [vmem:[#allocation2 + $0x10] sm:$0xff]
      %v1921 = vld [vmem:[#allocation2 + $0x18] sm:$0xff]
      %v1922 = vld [vmem:[#allocation2 + $0x20] sm:$0xff]
      %v1923 = vld [vmem:[#allocation2 + $0x28] sm:$0xff]
      %1924 = vrot.lane.b32.xlu0 %v1918, 19
      %v1925 = vpop.permute.xlu0 %1924
      %1926 = vrot.lane.b32.xlu0 %v1919, 19
      %v1927 = vpop.permute.xlu0 %1926
      %1928 = vrot.lane.b32.xlu0 %v1920, 19
      %v1929 = vpop.permute.xlu0 %1928
      %1930 = vrot.lane.b32.xlu0 %v1921, 19
      %v1931 = vpop.permute.xlu0 %1930
      %1932 = vrot.lane.b32.xlu0 %v1922, 19
      %v1933 = vpop.permute.xlu0 %1932
      %1934 = vrot.lane.b32.xlu0 %v1923, 19
      %v1935 = vpop.permute.xlu0 %1934
      %v1936 = vsel %vm439, %v1933, %v1935
      %v1937 = vsel %vm439, %v1931, %v1933
      %v1938 = vsel %vm439, %v1929, %v1931
      %v1939 = vsel %vm439, %v1927, %v1929
      %v1940 = vsel %vm439, %v1925, %v1927
      %v1941 = vsel %vm439, %v1935, %v1925
      %1942 = vst [vmem:[#allocation4] sm:$0xff] %v1941
      %1943 = vst [vmem:[#allocation4 + $0x8] sm:$0xff] %v1940
      %1944 = vst [vmem:[#allocation4 + $0x10] sm:$0xff] %v1939
      %1945 = vst [vmem:[#allocation4 + $0x18] sm:$0xff] %v1938
      %1946 = vst [vmem:[#allocation4 + $0x20] sm:$0xff] %v1937
      %1947 = vst [vmem:[#allocation4 + $0x28] sm:$0xff] %v1936
      %1948 = vrot.lane.b32.xlu0 %v1918, 18
      %v1949 = vpop.permute.xlu0 %1948
      %1950 = vrot.lane.b32.xlu0 %v1919, 18
      %v1951 = vpop.permute.xlu0 %1950
      %1952 = vrot.lane.b32.xlu0 %v1920, 18
      %v1953 = vpop.permute.xlu0 %1952
      %1954 = vrot.lane.b32.xlu0 %v1921, 18
      %v1955 = vpop.permute.xlu0 %1954
      %1956 = vrot.lane.b32.xlu0 %v1922, 18
      %v1957 = vpop.permute.xlu0 %1956
      %1958 = vrot.lane.b32.xlu0 %v1923, 18
      %v1959 = vpop.permute.xlu0 %1958
      %v1960 = vsel %vm464, %v1957, %v1959
      %v1961 = vsel %vm464, %v1955, %v1957
      %v1962 = vsel %vm464, %v1953, %v1955
      %v1963 = vsel %vm464, %v1951, %v1953
      %v1964 = vsel %vm464, %v1949, %v1951
      %v1965 = vsel %vm464, %v1959, %v1949
      %1966 = vst [vmem:[#allocation4 + $0x30] sm:$0xff] %v1965
      %1967 = vst [vmem:[#allocation4 + $0x38] sm:$0xff] %v1964
      %1968 = vst [vmem:[#allocation4 + $0x40] sm:$0xff] %v1963
      %1969 = vst [vmem:[#allocation4 + $0x48] sm:$0xff] %v1962
      %1970 = vst [vmem:[#allocation4 + $0x50] sm:$0xff] %v1961
      %1971 = vst [vmem:[#allocation4 + $0x58] sm:$0xff] %v1960
      %1972 = vrot.lane.b32.xlu0 %v1918, 17
      %v1973 = vpop.permute.xlu0 %1972
      %1974 = vrot.lane.b32.xlu0 %v1919, 17
      %v1975 = vpop.permute.xlu0 %1974
      %1976 = vrot.lane.b32.xlu0 %v1920, 17
      %v1977 = vpop.permute.xlu0 %1976
      %1978 = vrot.lane.b32.xlu0 %v1921, 17
      %v1979 = vpop.permute.xlu0 %1978
      %1980 = vrot.lane.b32.xlu0 %v1922, 17
      %v1981 = vpop.permute.xlu0 %1980
      %1982 = vrot.lane.b32.xlu0 %v1923, 17
      %v1983 = vpop.permute.xlu0 %1982
      %v1984 = vsel %vm489, %v1981, %v1983
      %v1985 = vsel %vm489, %v1979, %v1981
      %v1986 = vsel %vm489, %v1977, %v1979
      %v1987 = vsel %vm489, %v1975, %v1977
      %v1988 = vsel %vm489, %v1973, %v1975
      %v1989 = vsel %vm489, %v1983, %v1973
      %1990 = vst [vmem:[#allocation4 + $0x60] sm:$0xff] %v1989
      %1991 = vst [vmem:[#allocation4 + $0x68] sm:$0xff] %v1988
      %1992 = vst [vmem:[#allocation4 + $0x70] sm:$0xff] %v1987
      %1993 = vst [vmem:[#allocation4 + $0x78] sm:$0xff] %v1986
      %1994 = vst [vmem:[#allocation4 + $0x80] sm:$0xff] %v1985
      %1995 = vst [vmem:[#allocation4 + $0x88] sm:$0xff] %v1984
      %1996 = vrot.lane.b32.xlu0 %v1918, 1
      %v1997 = vpop.permute.xlu0 %1996
      %1998 = vrot.lane.b32.xlu0 %v1919, 1
      %v1999 = vpop.permute.xlu0 %1998
      %2000 = vrot.lane.b32.xlu0 %v1920, 1
      %v2001 = vpop.permute.xlu0 %2000
      %2002 = vrot.lane.b32.xlu0 %v1921, 1
      %v2003 = vpop.permute.xlu0 %2002
      %2004 = vrot.lane.b32.xlu0 %v1922, 1
      %v2005 = vpop.permute.xlu0 %2004
      %2006 = vrot.lane.b32.xlu0 %v1923, 1
      %v2007 = vpop.permute.xlu0 %2006
      %v2008 = vsel %vm514, %v2005, %v2007
      %v2009 = vsel %vm514, %v2003, %v2005
      %v2010 = vsel %vm514, %v2001, %v2003
      %v2011 = vsel %vm514, %v1999, %v2001
      %v2012 = vsel %vm514, %v1997, %v1999
      %v2013 = vsel %vm514, %v2007, %v1997
      %2014 = vst [vmem:[#allocation4 + $0x90] sm:$0xff] %v2013
      %2015 = vst [vmem:[#allocation4 + $0x98] sm:$0xff] %v2012
      %2016 = vst [vmem:[#allocation4 + $0xa0] sm:$0xff] %v2011
      %2017 = vst [vmem:[#allocation4 + $0xa8] sm:$0xff] %v2010
      %2018 = vst [vmem:[#allocation4 + $0xb0] sm:$0xff] %v2009
      %2019 = vst [vmem:[#allocation4 + $0xb8] sm:$0xff] %v2008
      %2020 = vst [vmem:[#allocation4 + $0xc0] sm:$0xff] %v1918
      %2021 = vst [vmem:[#allocation4 + $0xc8] sm:$0xff] %v1919
      %2022 = vst [vmem:[#allocation4 + $0xd0] sm:$0xff] %v1920
      %2023 = vst [vmem:[#allocation4 + $0xd8] sm:$0xff] %v1921
      %2024 = vst [vmem:[#allocation4 + $0xe0] sm:$0xff] %v1922
      %2025 = vst [vmem:[#allocation4 + $0xe8] sm:$0xff] %v1923
      %2026 = vrot.lane.b32.xlu0 %v1918, 127
      %v2027 = vpop.permute.xlu0 %2026
      %2028 = vrot.lane.b32.xlu0 %v1919, 127
      %v2029 = vpop.permute.xlu0 %2028
      %2030 = vrot.lane.b32.xlu0 %v1920, 127
      %v2031 = vpop.permute.xlu0 %2030
      %2032 = vrot.lane.b32.xlu0 %v1921, 127
      %v2033 = vpop.permute.xlu0 %2032
      %2034 = vrot.lane.b32.xlu0 %v1922, 127
      %v2035 = vpop.permute.xlu0 %2034
      %2036 = vrot.lane.b32.xlu0 %v1923, 127
      %v2037 = vpop.permute.xlu0 %2036
      %v2038 = vsel %vm545, %v2035, %v2037
      %v2039 = vsel %vm545, %v2033, %v2035
      %v2040 = vsel %vm545, %v2031, %v2033
      %v2041 = vsel %vm545, %v2029, %v2031
      %v2042 = vsel %vm545, %v2027, %v2029
      %v2043 = vsel %vm545, %v2037, %v2027
      %2044 = vst [vmem:[#allocation4 + $0xf0] sm:$0xff] %v2042
      %2045 = vst [vmem:[#allocation4 + $0xf8] sm:$0xff] %v2041
      %2046 = vst [vmem:[#allocation4 + $0x100] sm:$0xff] %v2040
      %2047 = vst [vmem:[#allocation4 + $0x108] sm:$0xff] %v2039
      %2048 = vst [vmem:[#allocation4 + $0x110] sm:$0xff] %v2038
      %2049 = vst [vmem:[#allocation4 + $0x118] sm:$0xff] %v2043
      %2050 = vrot.lane.b32.xlu0 %v1918, 111
      %v2051 = vpop.permute.xlu0 %2050
      %2052 = vrot.lane.b32.xlu0 %v1919, 111
      %v2053 = vpop.permute.xlu0 %2052
      %2054 = vrot.lane.b32.xlu0 %v1920, 111
      %v2055 = vpop.permute.xlu0 %2054
      %2056 = vrot.lane.b32.xlu0 %v1921, 111
      %v2057 = vpop.permute.xlu0 %2056
      %2058 = vrot.lane.b32.xlu0 %v1922, 111
      %v2059 = vpop.permute.xlu0 %2058
      %2060 = vrot.lane.b32.xlu0 %v1923, 111
      %v2061 = vpop.permute.xlu0 %2060
      %v2062 = vsel %vm570, %v2059, %v2061
      %v2063 = vsel %vm570, %v2057, %v2059
      %v2064 = vsel %vm570, %v2055, %v2057
      %v2065 = vsel %vm570, %v2053, %v2055
      %v2066 = vsel %vm570, %v2051, %v2053
      %v2067 = vsel %vm570, %v2061, %v2051
      %2068 = vst [vmem:[#allocation4 + $0x120] sm:$0xff] %v2066
      %2069 = vst [vmem:[#allocation4 + $0x128] sm:$0xff] %v2065
      %2070 = vst [vmem:[#allocation4 + $0x130] sm:$0xff] %v2064
      %2071 = vst [vmem:[#allocation4 + $0x138] sm:$0xff] %v2063
      %2072 = vst [vmem:[#allocation4 + $0x140] sm:$0xff] %v2062
      %2073 = vst [vmem:[#allocation4 + $0x148] sm:$0xff] %v2067
      %2074 = vrot.lane.b32.xlu0 %v1918, 110
      %v2075 = vpop.permute.xlu0 %2074
      %2076 = vrot.lane.b32.xlu0 %v1919, 110
      %v2077 = vpop.permute.xlu0 %2076
      %2078 = vrot.lane.b32.xlu0 %v1920, 110
      %v2079 = vpop.permute.xlu0 %2078
      %2080 = vrot.lane.b32.xlu0 %v1921, 110
      %v2081 = vpop.permute.xlu0 %2080
      %2082 = vrot.lane.b32.xlu0 %v1922, 110
      %v2083 = vpop.permute.xlu0 %2082
      %2084 = vrot.lane.b32.xlu0 %v1923, 110
      %v2085 = vpop.permute.xlu0 %2084
      %v2086 = vsel %vm595, %v2083, %v2085
      %v2087 = vsel %vm595, %v2081, %v2083
      %v2088 = vsel %vm595, %v2079, %v2081
      %v2089 = vsel %vm595, %v2077, %v2079
      %v2090 = vsel %vm595, %v2075, %v2077
      %v2091 = vsel %vm595, %v2085, %v2075
      %2092 = vst [vmem:[#allocation4 + $0x150] sm:$0xff] %v2090
      %2093 = vst [vmem:[#allocation4 + $0x158] sm:$0xff] %v2089
      %2094 = vst [vmem:[#allocation4 + $0x160] sm:$0xff] %v2088
      %2095 = vst [vmem:[#allocation4 + $0x168] sm:$0xff] %v2087
      %2096 = vst [vmem:[#allocation4 + $0x170] sm:$0xff] %v2086
      %2097 = vst [vmem:[#allocation4 + $0x178] sm:$0xff] %v2091
      %2098 = vrot.lane.b32.xlu0 %v1918, 109
      %v2099 = vpop.permute.xlu0 %2098
      %2100 = vrot.lane.b32.xlu0 %v1919, 109
      %v2101 = vpop.permute.xlu0 %2100
      %2102 = vrot.lane.b32.xlu0 %v1920, 109
      %v2103 = vpop.permute.xlu0 %2102
      %2104 = vrot.lane.b32.xlu0 %v1921, 109
      %v2105 = vpop.permute.xlu0 %2104
      %2106 = vrot.lane.b32.xlu0 %v1922, 109
      %v2107 = vpop.permute.xlu0 %2106
      %2108 = vrot.lane.b32.xlu0 %v1923, 109
      %v2109 = vpop.permute.xlu0 %2108
      %v2110 = vsel %vm620, %v2107, %v2109
      %v2111 = vsel %vm620, %v2105, %v2107
      %v2112 = vsel %vm620, %v2103, %v2105
      %v2113 = vsel %vm620, %v2101, %v2103
      %v2114 = vsel %vm620, %v2099, %v2101
      %v2115 = vsel %vm620, %v2109, %v2099
      %2116 = vst [vmem:[#allocation4 + $0x180] sm:$0xff] %v2114
      %2117 = vst [vmem:[#allocation4 + $0x188] sm:$0xff] %v2113
      %2118 = vst [vmem:[#allocation4 + $0x190] sm:$0xff] %v2112
      %2119 = vst [vmem:[#allocation4 + $0x198] sm:$0xff] %v2111
      %2120 = vst [vmem:[#allocation4 + $0x1a0] sm:$0xff] %v2110
      %2121 = vst [vmem:[#allocation4 + $0x1a8] sm:$0xff] %v2115
      %v2122 = vld [vmem:[#allocation4] sm:$0xff]
      %v2123 = vld [vmem:[#allocation4 + $0x8] sm:$0xff]
      %v2124 = vld [vmem:[#allocation4 + $0x10] sm:$0xff]
      %v2125 = vld [vmem:[#allocation4 + $0x18] sm:$0xff]
      %v2126 = vld [vmem:[#allocation4 + $0x20] sm:$0xff]
      %v2127 = vld [vmem:[#allocation4 + $0x28] sm:$0xff]
      %v2128 = vld [vmem:[#allocation4 + $0x30] sm:$0xff]
      %v2129 = vld [vmem:[#allocation4 + $0x38] sm:$0xff]
      %v2130 = vld [vmem:[#allocation4 + $0x40] sm:$0xff]
      %v2131 = vld [vmem:[#allocation4 + $0x48] sm:$0xff]
      %v2132 = vld [vmem:[#allocation4 + $0x50] sm:$0xff]
      %v2133 = vld [vmem:[#allocation4 + $0x58] sm:$0xff]
      %v2134 = vld [vmem:[#allocation4 + $0x60] sm:$0xff]
      %v2135 = vld [vmem:[#allocation4 + $0x68] sm:$0xff]
      %v2136 = vld [vmem:[#allocation4 + $0x70] sm:$0xff]
      %v2137 = vld [vmem:[#allocation4 + $0x78] sm:$0xff]
      %v2138 = vld [vmem:[#allocation4 + $0x80] sm:$0xff]
      %v2139 = vld [vmem:[#allocation4 + $0x88] sm:$0xff]
      %v2140 = vld [vmem:[#allocation4 + $0x90] sm:$0xff]
      %v2141 = vld [vmem:[#allocation4 + $0x98] sm:$0xff]
      %v2142 = vld [vmem:[#allocation4 + $0xa0] sm:$0xff]
      %v2143 = vld [vmem:[#allocation4 + $0xa8] sm:$0xff]
      %v2144 = vld [vmem:[#allocation4 + $0xb0] sm:$0xff]
      %v2145 = vld [vmem:[#allocation4 + $0xb8] sm:$0xff]
      %v2146 = vld [vmem:[#allocation4 + $0xc0] sm:$0xff]
      %v2147 = vld [vmem:[#allocation4 + $0xc8] sm:$0xff]
      %v2148 = vld [vmem:[#allocation4 + $0xd0] sm:$0xff]
      %v2149 = vld [vmem:[#allocation4 + $0xd8] sm:$0xff]
      %v2150 = vld [vmem:[#allocation4 + $0xe0] sm:$0xff]
      %v2151 = vld [vmem:[#allocation4 + $0xe8] sm:$0xff]
      %v2152 = vld [vmem:[#allocation4 + $0xf0] sm:$0xff]
      %v2153 = vld [vmem:[#allocation4 + $0xf8] sm:$0xff]
      %v2154 = vld [vmem:[#allocation4 + $0x100] sm:$0xff]
      %v2155 = vld [vmem:[#allocation4 + $0x108] sm:$0xff]
      %v2156 = vld [vmem:[#allocation4 + $0x110] sm:$0xff]
      %v2157 = vld [vmem:[#allocation4 + $0x118] sm:$0xff]
      %v2158 = vld [vmem:[#allocation4 + $0x120] sm:$0xff]
      %v2159 = vld [vmem:[#allocation4 + $0x128] sm:$0xff]
      %v2160 = vld [vmem:[#allocation4 + $0x130] sm:$0xff]
      %v2161 = vld [vmem:[#allocation4 + $0x138] sm:$0xff]
      %v2162 = vld [vmem:[#allocation4 + $0x140] sm:$0xff]
      %v2163 = vld [vmem:[#allocation4 + $0x148] sm:$0xff]
      %v2164 = vld [vmem:[#allocation4 + $0x150] sm:$0xff]
      %v2165 = vld [vmem:[#allocation4 + $0x158] sm:$0xff]
      %v2166 = vld [vmem:[#allocation4 + $0x160] sm:$0xff]
      %v2167 = vld [vmem:[#allocation4 + $0x168] sm:$0xff]
      %v2168 = vld [vmem:[#allocation4 + $0x170] sm:$0xff]
      %v2169 = vld [vmem:[#allocation4 + $0x178] sm:$0xff]
      %v2170 = vld [vmem:[#allocation4 + $0x180] sm:$0xff]
      %v2171 = vld [vmem:[#allocation4 + $0x188] sm:$0xff]
      %v2172 = vld [vmem:[#allocation4 + $0x190] sm:$0xff]
      %v2173 = vld [vmem:[#allocation4 + $0x198] sm:$0xff]
      %v2174 = vld [vmem:[#allocation4 + $0x1a0] sm:$0xff]
      %v2175 = vld [vmem:[#allocation4 + $0x1a8] sm:$0xff]
      %2176 = vmatprep.subr.mxu0 0.0
      %2177 = vmatpush1.msra.mxu0 0.0
      %2178 = vmatprep.subr.mxu0 0.0
      %2179 = vmatpush1.msra.mxu0 0.0
      %2180 = vmatprep.subr.mxu0 0.0
      %2181 = vmatpush1.msra.mxu0 0.0
      %2182 = vmatprep.subr.mxu0 0.0
      %2183 = vmatpush1.msra.mxu0 0.0
      %2184 = vmatprep.subr.mxu0 0.0
      %2185 = vmatpush1.msra.mxu0 0.0
      %2186 = vmatprep.subr.mxu0 0.0
      %2187 = vmatpush1.msra.mxu0 0.0
      %2188 = vmatprep.subr.mxu0 0.0
      %2189 = vmatpush1.msra.mxu0 0.0
      %2190 = vmatprep.subr.mxu0 %v2171
      %2191 = vmatpush1.msra.mxu0 %v2170
      %2192 = vmatprep.subr.mxu0 %v2165
      %2193 = vmatpush1.msra.mxu0 %v2164
      %2194 = vmatprep.subr.mxu0 %v2159
      %2195 = vmatpush1.msra.mxu0 %v2158
      %2196 = vmatprep.subr.mxu0 %v2153
      %2197 = vmatpush1.msra.mxu0 %v2152
      %2198 = vmatprep.subr.mxu0 %v2147
      %2199 = vmatpush1.msra.mxu0 %v2146
      %2200 = vmatprep.subr.mxu0 %v2141
      %2201 = vmatpush1.msra.mxu0 %v2140
      %2202 = vmatprep.subr.mxu0 %v2135
      %2203 = vmatpush1.msra.mxu0 %v2134
      %2204 = vmatprep.subr.mxu0 %v2129
      %2205 = vmatpush1.msra.mxu0 %v2128
      %2206 = vmatprep.subr.mxu0 %v2123
      %2207 = vmatpush1.msra.mxu0 %v2122
      %2208 = vmatprep.subr.mxu0 0.0
      %2209 = vmatpush2.msra.mxu0 0.0
      %2210 = vmatprep.subr.mxu0 0.0
      %2211 = vmatpush2.msra.mxu0 0.0
      %2212 = vmatprep.subr.mxu0 0.0
      %2213 = vmatpush2.msra.mxu0 0.0
      %2214 = vmatprep.subr.mxu0 0.0
      %2215 = vmatpush2.msra.mxu0 0.0
      %2216 = vmatprep.subr.mxu0 0.0
      %2217 = vmatpush2.msra.mxu0 0.0
      %2218 = vmatprep.subr.mxu0 0.0
      %2219 = vmatpush2.msra.mxu0 0.0
      %2220 = vmatprep.subr.mxu0 0.0
      %2221 = vmatpush2.msra.mxu0 0.0
      %2222 = vmatprep.subr.mxu0 0.0
      %2223 = vmatpush2.msra.mxu0 0.0
      %2224 = vmatprep.subr.mxu0 0.0
      %2225 = vmatpush2.msra.mxu0 0.0
      %2226 = vmatprep.subr.mxu0 0.0
      %2227 = vmatpush2.msra.mxu0 0.0
      %2228 = vmatprep.subr.mxu0 0.0
      %2229 = vmatpush2.msra.mxu0 0.0
      %2230 = vmatprep.subr.mxu0 0.0
      %2231 = vmatpush2.msra.mxu0 0.0
      %2232 = vmatprep.subr.mxu0 0.0
      %2233 = vmatpush2.msra.mxu0 0.0
      %2234 = vmatprep.subr.mxu0 0.0
      %2235 = vmatpush2.msra.mxu0 0.0
      %2236 = vmatprep.subr.mxu0 0.0
      %2237 = vmatpush2.msra.mxu0 0.0
      %2238 = vmatprep.subr.mxu0 0.0
      %2239 = vmatpush2.msra.mxu0 0.0
      %2240 = vmatprep.mubr.f32.mxu0 0.0
      %2241 = vmatmul.mubr.f32.gmra.mxu0 %v1181
      %v2242 = vpop.f32.mrf.mxu0
      %v2243 = vadd.f32 %v402, %v2242
      %v2244 = vpop.f32.mrf.mxu0
      %v2245 = vadd.f32 %v402, %v2244
      %2246 = vdwg.mxu0
      %2247 = vmatprep.subr.mxu0 0.0
      %2248 = vmatpush1.msra.mxu0 0.0
      %2249 = vmatprep.subr.mxu0 0.0
      %2250 = vmatpush1.msra.mxu0 0.0
      %2251 = vmatprep.subr.mxu0 0.0
      %2252 = vmatpush1.msra.mxu0 0.0
      %2253 = vmatprep.subr.mxu0 0.0
      %2254 = vmatpush1.msra.mxu0 0.0
      %2255 = vmatprep.subr.mxu0 0.0
      %2256 = vmatpush1.msra.mxu0 0.0
      %2257 = vmatprep.subr.mxu0 0.0
      %2258 = vmatpush1.msra.mxu0 0.0
      %2259 = vmatprep.subr.mxu0 0.0
      %2260 = vmatpush1.msra.mxu0 0.0
      %2261 = vmatprep.subr.mxu0 %v2173
      %2262 = vmatpush1.msra.mxu0 %v2172
      %2263 = vmatprep.subr.mxu0 %v2167
      %2264 = vmatpush1.msra.mxu0 %v2166
      %2265 = vmatprep.subr.mxu0 %v2161
      %2266 = vmatpush1.msra.mxu0 %v2160
      %2267 = vmatprep.subr.mxu0 %v2155
      %2268 = vmatpush1.msra.mxu0 %v2154
      %2269 = vmatprep.subr.mxu0 %v2149
      %2270 = vmatpush1.msra.mxu0 %v2148
      %2271 = vmatprep.subr.mxu0 %v2143
      %2272 = vmatpush1.msra.mxu0 %v2142
      %2273 = vmatprep.subr.mxu0 %v2137
      %2274 = vmatpush1.msra.mxu0 %v2136
      %2275 = vmatprep.subr.mxu0 %v2131
      %2276 = vmatpush1.msra.mxu0 %v2130
      %2277 = vmatprep.subr.mxu0 %v2125
      %2278 = vmatpush1.msra.mxu0 %v2124
      %2279 = vmatprep.subr.mxu0 0.0
      %2280 = vmatpush2.msra.mxu0 0.0
      %2281 = vmatprep.subr.mxu0 0.0
      %2282 = vmatpush2.msra.mxu0 0.0
      %2283 = vmatprep.subr.mxu0 0.0
      %2284 = vmatpush2.msra.mxu0 0.0
      %2285 = vmatprep.subr.mxu0 0.0
      %2286 = vmatpush2.msra.mxu0 0.0
      %2287 = vmatprep.subr.mxu0 0.0
      %2288 = vmatpush2.msra.mxu0 0.0
      %2289 = vmatprep.subr.mxu0 0.0
      %2290 = vmatpush2.msra.mxu0 0.0
      %2291 = vmatprep.subr.mxu0 0.0
      %2292 = vmatpush2.msra.mxu0 0.0
      %2293 = vmatprep.subr.mxu0 0.0
      %2294 = vmatpush2.msra.mxu0 0.0
      %2295 = vmatprep.subr.mxu0 0.0
      %2296 = vmatpush2.msra.mxu0 0.0
      %2297 = vmatprep.subr.mxu0 0.0
      %2298 = vmatpush2.msra.mxu0 0.0
      %2299 = vmatprep.subr.mxu0 0.0
      %2300 = vmatpush2.msra.mxu0 0.0
      %2301 = vmatprep.subr.mxu0 0.0
      %2302 = vmatpush2.msra.mxu0 0.0
      %2303 = vmatprep.subr.mxu0 0.0
      %2304 = vmatpush2.msra.mxu0 0.0
      %2305 = vmatprep.subr.mxu0 0.0
      %2306 = vmatpush2.msra.mxu0 0.0
      %2307 = vmatprep.subr.mxu0 0.0
      %2308 = vmatpush2.msra.mxu0 0.0
      %2309 = vmatprep.subr.mxu0 0.0
      %2310 = vmatpush2.msra.mxu0 0.0
      %2311 = vmatprep.mubr.f32.mxu0 0.0
      %2312 = vmatmul.mubr.f32.gmra.mxu0 %v1181
      %v2313 = vpop.f32.mrf.mxu0
      %v2314 = vadd.f32 %v402, %v2313
      %v2315 = vpop.f32.mrf.mxu0
      %v2316 = vadd.f32 %v402, %v2315
      %2317 = vdwg.mxu0
      %2318 = vmatprep.subr.mxu0 0.0
      %2319 = vmatpush1.msra.mxu0 0.0
      %2320 = vmatprep.subr.mxu0 0.0
      %2321 = vmatpush1.msra.mxu0 0.0
      %2322 = vmatprep.subr.mxu0 0.0
      %2323 = vmatpush1.msra.mxu0 0.0
      %2324 = vmatprep.subr.mxu0 0.0
      %2325 = vmatpush1.msra.mxu0 0.0
      %2326 = vmatprep.subr.mxu0 0.0
      %2327 = vmatpush1.msra.mxu0 0.0
      %2328 = vmatprep.subr.mxu0 0.0
      %2329 = vmatpush1.msra.mxu0 0.0
      %2330 = vmatprep.subr.mxu0 0.0
      %2331 = vmatpush1.msra.mxu0 0.0
      %2332 = vmatprep.subr.mxu0 %v2175
      %2333 = vmatpush1.msra.mxu0 %v2174
      %2334 = vmatprep.subr.mxu0 %v2169
      %2335 = vmatpush1.msra.mxu0 %v2168
      %2336 = vmatprep.subr.mxu0 %v2163
      %2337 = vmatpush1.msra.mxu0 %v2162
      %2338 = vmatprep.subr.mxu0 %v2157
      %2339 = vmatpush1.msra.mxu0 %v2156
      %2340 = vmatprep.subr.mxu0 %v2151
      %2341 = vmatpush1.msra.mxu0 %v2150
      %2342 = vmatprep.subr.mxu0 %v2145
      %2343 = vmatpush1.msra.mxu0 %v2144
      %2344 = vmatprep.subr.mxu0 %v2139
      %2345 = vmatpush1.msra.mxu0 %v2138
      %2346 = vmatprep.subr.mxu0 %v2133
      %2347 = vmatpush1.msra.mxu0 %v2132
      %2348 = vmatprep.subr.mxu0 %v2127
      %2349 = vmatpush1.msra.mxu0 %v2126
      %2350 = vmatprep.subr.mxu0 0.0
      %2351 = vmatpush2.msra.mxu0 0.0
      %2352 = vmatprep.subr.mxu0 0.0
      %2353 = vmatpush2.msra.mxu0 0.0
      %2354 = vmatprep.subr.mxu0 0.0
      %2355 = vmatpush2.msra.mxu0 0.0
      %2356 = vmatprep.subr.mxu0 0.0
      %2357 = vmatpush2.msra.mxu0 0.0
      %2358 = vmatprep.subr.mxu0 0.0
      %2359 = vmatpush2.msra.mxu0 0.0
      %2360 = vmatprep.subr.mxu0 0.0
      %2361 = vmatpush2.msra.mxu0 0.0
      %2362 = vmatprep.subr.mxu0 0.0
      %2363 = vmatpush2.msra.mxu0 0.0
      %2364 = vmatprep.subr.mxu0 0.0
      %2365 = vmatpush2.msra.mxu0 0.0
      %2366 = vmatprep.subr.mxu0 0.0
      %2367 = vmatpush2.msra.mxu0 0.0
      %2368 = vmatprep.subr.mxu0 0.0
      %2369 = vmatpush2.msra.mxu0 0.0
      %2370 = vmatprep.subr.mxu0 0.0
      %2371 = vmatpush2.msra.mxu0 0.0
      %2372 = vmatprep.subr.mxu0 0.0
      %2373 = vmatpush2.msra.mxu0 0.0
      %2374 = vmatprep.subr.mxu0 0.0
      %2375 = vmatpush2.msra.mxu0 0.0
      %2376 = vmatprep.subr.mxu0 0.0
      %2377 = vmatpush2.msra.mxu0 0.0
      %2378 = vmatprep.subr.mxu0 0.0
      %2379 = vmatpush2.msra.mxu0 0.0
      %2380 = vmatprep.subr.mxu0 0.0
      %2381 = vmatpush2.msra.mxu0 0.0
      %2382 = vmatprep.mubr.f32.mxu0 0.0
      %2383 = vmatmul.mubr.f32.gmra.mxu0 %v1181
      %v2384 = vpop.f32.mrf.mxu0
      %v2385 = vadd.f32 %v402, %v2384
      %v2386 = vpop.f32.mrf.mxu0
      %v2387 = vadd.f32 %v402, %v2386
      %2388 = vdwg.mxu0
      %v2389 = vmax.f32 %v2243, 0.0
      %v2390 = vmax.f32 %v2245, 0.0
      %v2391 = vmax.f32 %v2314, 0.0
      %v2392 = vmax.f32 %v2316, 0.0
      %v2393 = vmax.f32 %v2385, 0.0
      %v2394 = vmax.f32 %v2387, 0.0
      %v2395 = vmul.f32 %v2389, %v365
      %v2396 = vmul.f32 %v2390, %v369
      %v2397 = vmul.f32 %v2391, %v373
      %v2398 = vmul.f32 %v2392, %v377
      %v2399 = vmul.f32 %v2393, %v381
      %v2400 = vmul.f32 %v2394, %v385
      %2401 = vst [vmem:[#allocation3] sm:$0xff] %v2395
      %2402 = vst [vmem:[#allocation3 + $0x8] sm:$0xff] %v2396
      %2403 = vst [vmem:[#allocation3 + $0x10] sm:$0xff] %v2397
      %2404 = vst [vmem:[#allocation3 + $0x18] sm:$0xff] %v2398
      %2405 = vst [vmem:[#allocation3 + $0x20] sm:$0xff] %v2399
      %2406 = vst [vmem:[#allocation3 + $0x28] sm:$0xff] %v2400
      %v2407 = vld [vmem:[#allocation2] sm:$0xff]
      %v2408 = vld [vmem:[#allocation2 + $0x8] sm:$0xff]
      %v2409 = vld [vmem:[#allocation2 + $0x10] sm:$0xff]
      %v2410 = vld [vmem:[#allocation2 + $0x18] sm:$0xff]
      %v2411 = vld [vmem:[#allocation2 + $0x20] sm:$0xff]
      %v2412 = vld [vmem:[#allocation2 + $0x28] sm:$0xff]
      %v2413 = vld [vmem:[#allocation3] sm:$0xff]
      %v2414 = vld [vmem:[#allocation3 + $0x8] sm:$0xff]
      %v2415 = vld [vmem:[#allocation3 + $0x10] sm:$0xff]
      %v2416 = vld [vmem:[#allocation3 + $0x18] sm:$0xff]
      %v2417 = vld [vmem:[#allocation3 + $0x20] sm:$0xff]
      %v2418 = vld [vmem:[#allocation3 + $0x28] sm:$0xff]
      %2419 = vrot.lane.b32.xlu0 %v2413, 19
      %v2420 = vpop.permute.xlu0 %2419
      %2421 = vrot.lane.b32.xlu0 %v2414, 19
      %v2422 = vpop.permute.xlu0 %2421
      %2423 = vrot.lane.b32.xlu0 %v2415, 19
      %v2424 = vpop.permute.xlu0 %2423
      %2425 = vrot.lane.b32.xlu0 %v2416, 19
      %v2426 = vpop.permute.xlu0 %2425
      %2427 = vrot.lane.b32.xlu0 %v2417, 19
      %v2428 = vpop.permute.xlu0 %2427
      %2429 = vrot.lane.b32.xlu0 %v2418, 19
      %v2430 = vpop.permute.xlu0 %2429
      %v2431 = vsel %vm439, %v2428, %v2430
      %v2432 = vsel %vm439, %v2426, %v2428
      %v2433 = vsel %vm439, %v2424, %v2426
      %v2434 = vsel %vm439, %v2422, %v2424
      %v2435 = vsel %vm439, %v2420, %v2422
      %v2436 = vsel %vm439, %v2430, %v2420
      %2437 = vst [vmem:[#allocation4] sm:$0xff] %v2436
      %2438 = vst [vmem:[#allocation4 + $0x8] sm:$0xff] %v2435
      %2439 = vst [vmem:[#allocation4 + $0x10] sm:$0xff] %v2434
      %2440 = vst [vmem:[#allocation4 + $0x18] sm:$0xff] %v2433
      %2441 = vst [vmem:[#allocation4 + $0x20] sm:$0xff] %v2432
      %2442 = vst [vmem:[#allocation4 + $0x28] sm:$0xff] %v2431
      %2443 = vrot.lane.b32.xlu0 %v2413, 18
      %v2444 = vpop.permute.xlu0 %2443
      %2445 = vrot.lane.b32.xlu0 %v2414, 18
      %v2446 = vpop.permute.xlu0 %2445
      %2447 = vrot.lane.b32.xlu0 %v2415, 18
      %v2448 = vpop.permute.xlu0 %2447
      %2449 = vrot.lane.b32.xlu0 %v2416, 18
      %v2450 = vpop.permute.xlu0 %2449
      %2451 = vrot.lane.b32.xlu0 %v2417, 18
      %v2452 = vpop.permute.xlu0 %2451
      %2453 = vrot.lane.b32.xlu0 %v2418, 18
      %v2454 = vpop.permute.xlu0 %2453
      %v2455 = vsel %vm464, %v2452, %v2454
      %v2456 = vsel %vm464, %v2450, %v2452
      %v2457 = vsel %vm464, %v2448, %v2450
      %v2458 = vsel %vm464, %v2446, %v2448
      %v2459 = vsel %vm464, %v2444, %v2446
      %v2460 = vsel %vm464, %v2454, %v2444
      %2461 = vst [vmem:[#allocation4 + $0x30] sm:$0xff] %v2460
      %2462 = vst [vmem:[#allocation4 + $0x38] sm:$0xff] %v2459
      %2463 = vst [vmem:[#allocation4 + $0x40] sm:$0xff] %v2458
      %2464 = vst [vmem:[#allocation4 + $0x48] sm:$0xff] %v2457
      %2465 = vst [vmem:[#allocation4 + $0x50] sm:$0xff] %v2456
      %2466 = vst [vmem:[#allocation4 + $0x58] sm:$0xff] %v2455
      %2467 = vrot.lane.b32.xlu0 %v2413, 17
      %v2468 = vpop.permute.xlu0 %2467
      %2469 = vrot.lane.b32.xlu0 %v2414, 17
      %v2470 = vpop.permute.xlu0 %2469
      %2471 = vrot.lane.b32.xlu0 %v2415, 17
      %v2472 = vpop.permute.xlu0 %2471
      %2473 = vrot.lane.b32.xlu0 %v2416, 17
      %v2474 = vpop.permute.xlu0 %2473
      %2475 = vrot.lane.b32.xlu0 %v2417, 17
      %v2476 = vpop.permute.xlu0 %2475
      %2477 = vrot.lane.b32.xlu0 %v2418, 17
      %v2478 = vpop.permute.xlu0 %2477
      %v2479 = vsel %vm489, %v2476, %v2478
      %v2480 = vsel %vm489, %v2474, %v2476
      %v2481 = vsel %vm489, %v2472, %v2474
      %v2482 = vsel %vm489, %v2470, %v2472
      %v2483 = vsel %vm489, %v2468, %v2470
      %v2484 = vsel %vm489, %v2478, %v2468
      %2485 = vst [vmem:[#allocation4 + $0x60] sm:$0xff] %v2484
      %2486 = vst [vmem:[#allocation4 + $0x68] sm:$0xff] %v2483
      %2487 = vst [vmem:[#allocation4 + $0x70] sm:$0xff] %v2482
      %2488 = vst [vmem:[#allocation4 + $0x78] sm:$0xff] %v2481
      %2489 = vst [vmem:[#allocation4 + $0x80] sm:$0xff] %v2480
      %2490 = vst [vmem:[#allocation4 + $0x88] sm:$0xff] %v2479
      %2491 = vrot.lane.b32.xlu0 %v2413, 1
      %v2492 = vpop.permute.xlu0 %2491
      %2493 = vrot.lane.b32.xlu0 %v2414, 1
      %v2494 = vpop.permute.xlu0 %2493
      %2495 = vrot.lane.b32.xlu0 %v2415, 1
      %v2496 = vpop.permute.xlu0 %2495
      %2497 = vrot.lane.b32.xlu0 %v2416, 1
      %v2498 = vpop.permute.xlu0 %2497
      %2499 = vrot.lane.b32.xlu0 %v2417, 1
      %v2500 = vpop.permute.xlu0 %2499
      %2501 = vrot.lane.b32.xlu0 %v2418, 1
      %v2502 = vpop.permute.xlu0 %2501
      %v2503 = vsel %vm514, %v2500, %v2502
      %v2504 = vsel %vm514, %v2498, %v2500
      %v2505 = vsel %vm514, %v2496, %v2498
      %v2506 = vsel %vm514, %v2494, %v2496
      %v2507 = vsel %vm514, %v2492, %v2494
      %v2508 = vsel %vm514, %v2502, %v2492
      %2509 = vst [vmem:[#allocation4 + $0x90] sm:$0xff] %v2508
      %2510 = vst [vmem:[#allocation4 + $0x98] sm:$0xff] %v2507
      %2511 = vst [vmem:[#allocation4 + $0xa0] sm:$0xff] %v2506
      %2512 = vst [vmem:[#allocation4 + $0xa8] sm:$0xff] %v2505
      %2513 = vst [vmem:[#allocation4 + $0xb0] sm:$0xff] %v2504
      %2514 = vst [vmem:[#allocation4 + $0xb8] sm:$0xff] %v2503
      %2515 = vst [vmem:[#allocation4 + $0xc0] sm:$0xff] %v2413
      %2516 = vst [vmem:[#allocation4 + $0xc8] sm:$0xff] %v2414
      %2517 = vst [vmem:[#allocation4 + $0xd0] sm:$0xff] %v2415
      %2518 = vst [vmem:[#allocation4 + $0xd8] sm:$0xff] %v2416
      %2519 = vst [vmem:[#allocation4 + $0xe0] sm:$0xff] %v2417
      %2520 = vst [vmem:[#allocation4 + $0xe8] sm:$0xff] %v2418
      %2521 = vrot.lane.b32.xlu0 %v2413, 127
      %v2522 = vpop.permute.xlu0 %2521
      %2523 = vrot.lane.b32.xlu0 %v2414, 127
      %v2524 = vpop.permute.xlu0 %2523
      %2525 = vrot.lane.b32.xlu0 %v2415, 127
      %v2526 = vpop.permute.xlu0 %2525
      %2527 = vrot.lane.b32.xlu0 %v2416, 127
      %v2528 = vpop.permute.xlu0 %2527
      %2529 = vrot.lane.b32.xlu0 %v2417, 127
      %v2530 = vpop.permute.xlu0 %2529
      %2531 = vrot.lane.b32.xlu0 %v2418, 127
      %v2532 = vpop.permute.xlu0 %2531
      %v2533 = vsel %vm545, %v2530, %v2532
      %v2534 = vsel %vm545, %v2528, %v2530
      %v2535 = vsel %vm545, %v2526, %v2528
      %v2536 = vsel %vm545, %v2524, %v2526
      %v2537 = vsel %vm545, %v2522, %v2524
      %v2538 = vsel %vm545, %v2532, %v2522
      %2539 = vst [vmem:[#allocation4 + $0xf0] sm:$0xff] %v2537
      %2540 = vst [vmem:[#allocation4 + $0xf8] sm:$0xff] %v2536
      %2541 = vst [vmem:[#allocation4 + $0x100] sm:$0xff] %v2535
      %2542 = vst [vmem:[#allocation4 + $0x108] sm:$0xff] %v2534
      %2543 = vst [vmem:[#allocation4 + $0x110] sm:$0xff] %v2533
      %2544 = vst [vmem:[#allocation4 + $0x118] sm:$0xff] %v2538
      %2545 = vrot.lane.b32.xlu0 %v2413, 111
      %v2546 = vpop.permute.xlu0 %2545
      %2547 = vrot.lane.b32.xlu0 %v2414, 111
      %v2548 = vpop.permute.xlu0 %2547
      %2549 = vrot.lane.b32.xlu0 %v2415, 111
      %v2550 = vpop.permute.xlu0 %2549
      %2551 = vrot.lane.b32.xlu0 %v2416, 111
      %v2552 = vpop.permute.xlu0 %2551
      %2553 = vrot.lane.b32.xlu0 %v2417, 111
      %v2554 = vpop.permute.xlu0 %2553
      %2555 = vrot.lane.b32.xlu0 %v2418, 111
      %v2556 = vpop.permute.xlu0 %2555
      %v2557 = vsel %vm570, %v2554, %v2556
      %v2558 = vsel %vm570, %v2552, %v2554
      %v2559 = vsel %vm570, %v2550, %v2552
      %v2560 = vsel %vm570, %v2548, %v2550
      %v2561 = vsel %vm570, %v2546, %v2548
      %v2562 = vsel %vm570, %v2556, %v2546
      %2563 = vst [vmem:[#allocation4 + $0x120] sm:$0xff] %v2561
      %2564 = vst [vmem:[#allocation4 + $0x128] sm:$0xff] %v2560
      %2565 = vst [vmem:[#allocation4 + $0x130] sm:$0xff] %v2559
      %2566 = vst [vmem:[#allocation4 + $0x138] sm:$0xff] %v2558
      %2567 = vst [vmem:[#allocation4 + $0x140] sm:$0xff] %v2557
      %2568 = vst [vmem:[#allocation4 + $0x148] sm:$0xff] %v2562
      %2569 = vrot.lane.b32.xlu0 %v2413, 110
      %v2570 = vpop.permute.xlu0 %2569
      %2571 = vrot.lane.b32.xlu0 %v2414, 110
      %v2572 = vpop.permute.xlu0 %2571
      %2573 = vrot.lane.b32.xlu0 %v2415, 110
      %v2574 = vpop.permute.xlu0 %2573
      %2575 = vrot.lane.b32.xlu0 %v2416, 110
      %v2576 = vpop.permute.xlu0 %2575
      %2577 = vrot.lane.b32.xlu0 %v2417, 110
      %v2578 = vpop.permute.xlu0 %2577
      %2579 = vrot.lane.b32.xlu0 %v2418, 110
      %v2580 = vpop.permute.xlu0 %2579
      %v2581 = vsel %vm595, %v2578, %v2580
      %v2582 = vsel %vm595, %v2576, %v2578
      %v2583 = vsel %vm595, %v2574, %v2576
      %v2584 = vsel %vm595, %v2572, %v2574
      %v2585 = vsel %vm595, %v2570, %v2572
      %v2586 = vsel %vm595, %v2580, %v2570
      %2587 = vst [vmem:[#allocation4 + $0x150] sm:$0xff] %v2585
      %2588 = vst [vmem:[#allocation4 + $0x158] sm:$0xff] %v2584
      %2589 = vst [vmem:[#allocation4 + $0x160] sm:$0xff] %v2583
      %2590 = vst [vmem:[#allocation4 + $0x168] sm:$0xff] %v2582
      %2591 = vst [vmem:[#allocation4 + $0x170] sm:$0xff] %v2581
      %2592 = vst [vmem:[#allocation4 + $0x178] sm:$0xff] %v2586
      %2593 = vrot.lane.b32.xlu0 %v2413, 109
      %v2594 = vpop.permute.xlu0 %2593
      %2595 = vrot.lane.b32.xlu0 %v2414, 109
      %v2596 = vpop.permute.xlu0 %2595
      %2597 = vrot.lane.b32.xlu0 %v2415, 109
      %v2598 = vpop.permute.xlu0 %2597
      %2599 = vrot.lane.b32.xlu0 %v2416, 109
      %v2600 = vpop.permute.xlu0 %2599
      %2601 = vrot.lane.b32.xlu0 %v2417, 109
      %v2602 = vpop.permute.xlu0 %2601
      %2603 = vrot.lane.b32.xlu0 %v2418, 109
      %v2604 = vpop.permute.xlu0 %2603
      %v2605 = vsel %vm620, %v2602, %v2604
      %v2606 = vsel %vm620, %v2600, %v2602
      %v2607 = vsel %vm620, %v2598, %v2600
      %v2608 = vsel %vm620, %v2596, %v2598
      %v2609 = vsel %vm620, %v2594, %v2596
      %v2610 = vsel %vm620, %v2604, %v2594
      %2611 = vst [vmem:[#allocation4 + $0x180] sm:$0xff] %v2609
      %2612 = vst [vmem:[#allocation4 + $0x188] sm:$0xff] %v2608
      %2613 = vst [vmem:[#allocation4 + $0x190] sm:$0xff] %v2607
      %2614 = vst [vmem:[#allocation4 + $0x198] sm:$0xff] %v2606
      %2615 = vst [vmem:[#allocation4 + $0x1a0] sm:$0xff] %v2605
      %2616 = vst [vmem:[#allocation4 + $0x1a8] sm:$0xff] %v2610
      %v2617 = vld [vmem:[#allocation4] sm:$0xff]
      %v2618 = vld [vmem:[#allocation4 + $0x8] sm:$0xff]
      %v2619 = vld [vmem:[#allocation4 + $0x10] sm:$0xff]
      %v2620 = vld [vmem:[#allocation4 + $0x18] sm:$0xff]
      %v2621 = vld [vmem:[#allocation4 + $0x20] sm:$0xff]
      %v2622 = vld [vmem:[#allocation4 + $0x28] sm:$0xff]
      %v2623 = vld [vmem:[#allocation4 + $0x30] sm:$0xff]
      %v2624 = vld [vmem:[#allocation4 + $0x38] sm:$0xff]
      %v2625 = vld [vmem:[#allocation4 + $0x40] sm:$0xff]
      %v2626 = vld [vmem:[#allocation4 + $0x48] sm:$0xff]
      %v2627 = vld [vmem:[#allocation4 + $0x50] sm:$0xff]
      %v2628 = vld [vmem:[#allocation4 + $0x58] sm:$0xff]
      %v2629 = vld [vmem:[#allocation4 + $0x60] sm:$0xff]
      %v2630 = vld [vmem:[#allocation4 + $0x68] sm:$0xff]
      %v2631 = vld [vmem:[#allocation4 + $0x70] sm:$0xff]
      %v2632 = vld [vmem:[#allocation4 + $0x78] sm:$0xff]
      %v2633 = vld [vmem:[#allocation4 + $0x80] sm:$0xff]
      %v2634 = vld [vmem:[#allocation4 + $0x88] sm:$0xff]
      %v2635 = vld [vmem:[#allocation4 + $0x90] sm:$0xff]
      %v2636 = vld [vmem:[#allocation4 + $0x98] sm:$0xff]
      %v2637 = vld [vmem:[#allocation4 + $0xa0] sm:$0xff]
      %v2638 = vld [vmem:[#allocation4 + $0xa8] sm:$0xff]
      %v2639 = vld [vmem:[#allocation4 + $0xb0] sm:$0xff]
      %v2640 = vld [vmem:[#allocation4 + $0xb8] sm:$0xff]
      %v2641 = vld [vmem:[#allocation4 + $0xc0] sm:$0xff]
      %v2642 = vld [vmem:[#allocation4 + $0xc8] sm:$0xff]
      %v2643 = vld [vmem:[#allocation4 + $0xd0] sm:$0xff]
      %v2644 = vld [vmem:[#allocation4 + $0xd8] sm:$0xff]
      %v2645 = vld [vmem:[#allocation4 + $0xe0] sm:$0xff]
      %v2646 = vld [vmem:[#allocation4 + $0xe8] sm:$0xff]
      %v2647 = vld [vmem:[#allocation4 + $0xf0] sm:$0xff]
      %v2648 = vld [vmem:[#allocation4 + $0xf8] sm:$0xff]
      %v2649 = vld [vmem:[#allocation4 + $0x100] sm:$0xff]
      %v2650 = vld [vmem:[#allocation4 + $0x108] sm:$0xff]
      %v2651 = vld [vmem:[#allocation4 + $0x110] sm:$0xff]
      %v2652 = vld [vmem:[#allocation4 + $0x118] sm:$0xff]
      %v2653 = vld [vmem:[#allocation4 + $0x120] sm:$0xff]
      %v2654 = vld [vmem:[#allocation4 + $0x128] sm:$0xff]
      %v2655 = vld [vmem:[#allocation4 + $0x130] sm:$0xff]
      %v2656 = vld [vmem:[#allocation4 + $0x138] sm:$0xff]
      %v2657 = vld [vmem:[#allocation4 + $0x140] sm:$0xff]
      %v2658 = vld [vmem:[#allocation4 + $0x148] sm:$0xff]
      %v2659 = vld [vmem:[#allocation4 + $0x150] sm:$0xff]
      %v2660 = vld [vmem:[#allocation4 + $0x158] sm:$0xff]
      %v2661 = vld [vmem:[#allocation4 + $0x160] sm:$0xff]
      %v2662 = vld [vmem:[#allocation4 + $0x168] sm:$0xff]
      %v2663 = vld [vmem:[#allocation4 + $0x170] sm:$0xff]
      %v2664 = vld [vmem:[#allocation4 + $0x178] sm:$0xff]
      %v2665 = vld [vmem:[#allocation4 + $0x180] sm:$0xff]
      %v2666 = vld [vmem:[#allocation4 + $0x188] sm:$0xff]
      %v2667 = vld [vmem:[#allocation4 + $0x190] sm:$0xff]
      %v2668 = vld [vmem:[#allocation4 + $0x198] sm:$0xff]
      %v2669 = vld [vmem:[#allocation4 + $0x1a0] sm:$0xff]
      %v2670 = vld [vmem:[#allocation4 + $0x1a8] sm:$0xff]
      %2671 = vmatprep.subr.mxu0 0.0
      %2672 = vmatpush1.msra.mxu0 0.0
      %2673 = vmatprep.subr.mxu0 0.0
      %2674 = vmatpush1.msra.mxu0 0.0
      %2675 = vmatprep.subr.mxu0 0.0
      %2676 = vmatpush1.msra.mxu0 0.0
      %2677 = vmatprep.subr.mxu0 0.0
      %2678 = vmatpush1.msra.mxu0 0.0
      %2679 = vmatprep.subr.mxu0 0.0
      %2680 = vmatpush1.msra.mxu0 0.0
      %2681 = vmatprep.subr.mxu0 0.0
      %2682 = vmatpush1.msra.mxu0 0.0
      %2683 = vmatprep.subr.mxu0 0.0
      %2684 = vmatpush1.msra.mxu0 0.0
      %2685 = vmatprep.subr.mxu0 %v2666
      %2686 = vmatpush1.msra.mxu0 %v2665
      %2687 = vmatprep.subr.mxu0 %v2660
      %2688 = vmatpush1.msra.mxu0 %v2659
      %2689 = vmatprep.subr.mxu0 %v2654
      %2690 = vmatpush1.msra.mxu0 %v2653
      %2691 = vmatprep.subr.mxu0 %v2648
      %2692 = vmatpush1.msra.mxu0 %v2647
      %2693 = vmatprep.subr.mxu0 %v2642
      %2694 = vmatpush1.msra.mxu0 %v2641
      %2695 = vmatprep.subr.mxu0 %v2636
      %2696 = vmatpush1.msra.mxu0 %v2635
      %2697 = vmatprep.subr.mxu0 %v2630
      %2698 = vmatpush1.msra.mxu0 %v2629
      %2699 = vmatprep.subr.mxu0 %v2624
      %2700 = vmatpush1.msra.mxu0 %v2623
      %2701 = vmatprep.subr.mxu0 %v2618
      %2702 = vmatpush1.msra.mxu0 %v2617
      %2703 = vmatprep.subr.mxu0 0.0
      %2704 = vmatpush2.msra.mxu0 0.0
      %2705 = vmatprep.subr.mxu0 0.0
      %2706 = vmatpush2.msra.mxu0 0.0
      %2707 = vmatprep.subr.mxu0 0.0
      %2708 = vmatpush2.msra.mxu0 0.0
      %2709 = vmatprep.subr.mxu0 0.0
      %2710 = vmatpush2.msra.mxu0 0.0
      %2711 = vmatprep.subr.mxu0 0.0
      %2712 = vmatpush2.msra.mxu0 0.0
      %2713 = vmatprep.subr.mxu0 0.0
      %2714 = vmatpush2.msra.mxu0 0.0
      %2715 = vmatprep.subr.mxu0 0.0
      %2716 = vmatpush2.msra.mxu0 0.0
      %2717 = vmatprep.subr.mxu0 0.0
      %2718 = vmatpush2.msra.mxu0 0.0
      %2719 = vmatprep.subr.mxu0 0.0
      %2720 = vmatpush2.msra.mxu0 0.0
      %2721 = vmatprep.subr.mxu0 0.0
      %2722 = vmatpush2.msra.mxu0 0.0
      %2723 = vmatprep.subr.mxu0 0.0
      %2724 = vmatpush2.msra.mxu0 0.0
      %2725 = vmatprep.subr.mxu0 0.0
      %2726 = vmatpush2.msra.mxu0 0.0
      %2727 = vmatprep.subr.mxu0 0.0
      %2728 = vmatpush2.msra.mxu0 0.0
      %2729 = vmatprep.subr.mxu0 0.0
      %2730 = vmatpush2.msra.mxu0 0.0
      %2731 = vmatprep.subr.mxu0 0.0
      %2732 = vmatpush2.msra.mxu0 0.0
      %2733 = vmatprep.subr.mxu0 0.0
      %2734 = vmatpush2.msra.mxu0 0.0
      %2735 = vmatprep.mubr.f32.mxu0 0.0
      %2736 = vmatmul.mubr.f32.gmra.mxu0 %v1679
      %v2737 = vpop.f32.mrf.mxu0
      %v2738 = vadd.f32 %v408, %v2737
      %v2739 = vpop.f32.mrf.mxu0
      %v2740 = vadd.f32 %v408, %v2739
      %2741 = vdwg.mxu0
      %2742 = vmatprep.subr.mxu0 0.0
      %2743 = vmatpush1.msra.mxu0 0.0
      %2744 = vmatprep.subr.mxu0 0.0
      %2745 = vmatpush1.msra.mxu0 0.0
      %2746 = vmatprep.subr.mxu0 0.0
      %2747 = vmatpush1.msra.mxu0 0.0
      %2748 = vmatprep.subr.mxu0 0.0
      %2749 = vmatpush1.msra.mxu0 0.0
      %2750 = vmatprep.subr.mxu0 0.0
      %2751 = vmatpush1.msra.mxu0 0.0
      %2752 = vmatprep.subr.mxu0 0.0
      %2753 = vmatpush1.msra.mxu0 0.0
      %2754 = vmatprep.subr.mxu0 0.0
      %2755 = vmatpush1.msra.mxu0 0.0
      %2756 = vmatprep.subr.mxu0 %v2668
      %2757 = vmatpush1.msra.mxu0 %v2667
      %2758 = vmatprep.subr.mxu0 %v2662
      %2759 = vmatpush1.msra.mxu0 %v2661
      %2760 = vmatprep.subr.mxu0 %v2656
      %2761 = vmatpush1.msra.mxu0 %v2655
      %2762 = vmatprep.subr.mxu0 %v2650
      %2763 = vmatpush1.msra.mxu0 %v2649
      %2764 = vmatprep.subr.mxu0 %v2644
      %2765 = vmatpush1.msra.mxu0 %v2643
      %2766 = vmatprep.subr.mxu0 %v2638
      %2767 = vmatpush1.msra.mxu0 %v2637
      %2768 = vmatprep.subr.mxu0 %v2632
      %2769 = vmatpush1.msra.mxu0 %v2631
      %2770 = vmatprep.subr.mxu0 %v2626
      %2771 = vmatpush1.msra.mxu0 %v2625
      %2772 = vmatprep.subr.mxu0 %v2620
      %2773 = vmatpush1.msra.mxu0 %v2619
      %2774 = vmatprep.subr.mxu0 0.0
      %2775 = vmatpush2.msra.mxu0 0.0
      %2776 = vmatprep.subr.mxu0 0.0
      %2777 = vmatpush2.msra.mxu0 0.0
      %2778 = vmatprep.subr.mxu0 0.0
      %2779 = vmatpush2.msra.mxu0 0.0
      %2780 = vmatprep.subr.mxu0 0.0
      %2781 = vmatpush2.msra.mxu0 0.0
      %2782 = vmatprep.subr.mxu0 0.0
      %2783 = vmatpush2.msra.mxu0 0.0
      %2784 = vmatprep.subr.mxu0 0.0
      %2785 = vmatpush2.msra.mxu0 0.0
      %2786 = vmatprep.subr.mxu0 0.0
      %2787 = vmatpush2.msra.mxu0 0.0
      %2788 = vmatprep.subr.mxu0 0.0
      %2789 = vmatpush2.msra.mxu0 0.0
      %2790 = vmatprep.subr.mxu0 0.0
      %2791 = vmatpush2.msra.mxu0 0.0
      %2792 = vmatprep.subr.mxu0 0.0
      %2793 = vmatpush2.msra.mxu0 0.0
      %2794 = vmatprep.subr.mxu0 0.0
      %2795 = vmatpush2.msra.mxu0 0.0
      %2796 = vmatprep.subr.mxu0 0.0
      %2797 = vmatpush2.msra.mxu0 0.0
      %2798 = vmatprep.subr.mxu0 0.0
      %2799 = vmatpush2.msra.mxu0 0.0
      %2800 = vmatprep.subr.mxu0 0.0
      %2801 = vmatpush2.msra.mxu0 0.0
      %2802 = vmatprep.subr.mxu0 0.0
      %2803 = vmatpush2.msra.mxu0 0.0
      %2804 = vmatprep.subr.mxu0 0.0
      %2805 = vmatpush2.msra.mxu0 0.0
      %2806 = vmatprep.mubr.f32.mxu0 0.0
      %2807 = vmatmul.mubr.f32.gmra.mxu0 %v1679
      %v2808 = vpop.f32.mrf.mxu0
      %v2809 = vadd.f32 %v408, %v2808
      %v2810 = vpop.f32.mrf.mxu0
      %v2811 = vadd.f32 %v408, %v2810
      %2812 = vdwg.mxu0
      %2813 = vmatprep.subr.mxu0 0.0
      %2814 = vmatpush1.msra.mxu0 0.0
      %2815 = vmatprep.subr.mxu0 0.0
      %2816 = vmatpush1.msra.mxu0 0.0
      %2817 = vmatprep.subr.mxu0 0.0
      %2818 = vmatpush1.msra.mxu0 0.0
      %2819 = vmatprep.subr.mxu0 0.0
      %2820 = vmatpush1.msra.mxu0 0.0
      %2821 = vmatprep.subr.mxu0 0.0
      %2822 = vmatpush1.msra.mxu0 0.0
      %2823 = vmatprep.subr.mxu0 0.0
      %2824 = vmatpush1.msra.mxu0 0.0
      %2825 = vmatprep.subr.mxu0 0.0
      %2826 = vmatpush1.msra.mxu0 0.0
      %2827 = vmatprep.subr.mxu0 %v2670
      %2828 = vmatpush1.msra.mxu0 %v2669
      %2829 = vmatprep.subr.mxu0 %v2664
      %2830 = vmatpush1.msra.mxu0 %v2663
      %2831 = vmatprep.subr.mxu0 %v2658
      %2832 = vmatpush1.msra.mxu0 %v2657
      %2833 = vmatprep.subr.mxu0 %v2652
      %2834 = vmatpush1.msra.mxu0 %v2651
      %2835 = vmatprep.subr.mxu0 %v2646
      %2836 = vmatpush1.msra.mxu0 %v2645
      %2837 = vmatprep.subr.mxu0 %v2640
      %2838 = vmatpush1.msra.mxu0 %v2639
      %2839 = vmatprep.subr.mxu0 %v2634
      %2840 = vmatpush1.msra.mxu0 %v2633
      %2841 = vmatprep.subr.mxu0 %v2628
      %2842 = vmatpush1.msra.mxu0 %v2627
      %2843 = vmatprep.subr.mxu0 %v2622
      %2844 = vmatpush1.msra.mxu0 %v2621
      %2845 = vmatprep.subr.mxu0 0.0
      %2846 = vmatpush2.msra.mxu0 0.0
      %2847 = vmatprep.subr.mxu0 0.0
      %2848 = vmatpush2.msra.mxu0 0.0
      %2849 = vmatprep.subr.mxu0 0.0
      %2850 = vmatpush2.msra.mxu0 0.0
      %2851 = vmatprep.subr.mxu0 0.0
      %2852 = vmatpush2.msra.mxu0 0.0
      %2853 = vmatprep.subr.mxu0 0.0
      %2854 = vmatpush2.msra.mxu0 0.0
      %2855 = vmatprep.subr.mxu0 0.0
      %2856 = vmatpush2.msra.mxu0 0.0
      %2857 = vmatprep.subr.mxu0 0.0
      %2858 = vmatpush2.msra.mxu0 0.0
      %2859 = vmatprep.subr.mxu0 0.0
      %2860 = vmatpush2.msra.mxu0 0.0
      %2861 = vmatprep.subr.mxu0 0.0
      %2862 = vmatpush2.msra.mxu0 0.0
      %2863 = vmatprep.subr.mxu0 0.0
      %2864 = vmatpush2.msra.mxu0 0.0
      %2865 = vmatprep.subr.mxu0 0.0
      %2866 = vmatpush2.msra.mxu0 0.0
      %2867 = vmatprep.subr.mxu0 0.0
      %2868 = vmatpush2.msra.mxu0 0.0
      %2869 = vmatprep.subr.mxu0 0.0
      %2870 = vmatpush2.msra.mxu0 0.0
      %2871 = vmatprep.subr.mxu0 0.0
      %2872 = vmatpush2.msra.mxu0 0.0
      %2873 = vmatprep.subr.mxu0 0.0
      %2874 = vmatpush2.msra.mxu0 0.0
      %2875 = vmatprep.subr.mxu0 0.0
      %2876 = vmatpush2.msra.mxu0 0.0
      %2877 = vmatprep.mubr.f32.mxu0 0.0
      %2878 = vmatmul.mubr.f32.gmra.mxu0 %v1679
      %v2879 = vpop.f32.mrf.mxu0
      %v2880 = vadd.f32 %v408, %v2879
      %v2881 = vpop.f32.mrf.mxu0
      %v2882 = vadd.f32 %v408, %v2881
      %2883 = vdwg.mxu0
      %v2884 = vmax.f32 %v2738, 0.0
      %v2885 = vmax.f32 %v2740, 0.0
      %v2886 = vmax.f32 %v2809, 0.0
      %v2887 = vmax.f32 %v2811, 0.0
      %v2888 = vmax.f32 %v2880, 0.0
      %v2889 = vmax.f32 %v2882, 0.0
      %v2890 = vmul.f32 %v2884, %v365
      %v2891 = vmul.f32 %v2885, %v369
      %v2892 = vmul.f32 %v2886, %v373
      %v2893 = vmul.f32 %v2887, %v377
      %v2894 = vmul.f32 %v2888, %v381
      %v2895 = vmul.f32 %v2889, %v385
      %v2896 = vadd.f32 %v2407, %v2890
      %v2897 = vadd.f32 %v2408, %v2891
      %v2898 = vadd.f32 %v2409, %v2892
      %v2899 = vadd.f32 %v2410, %v2893
      %v2900 = vadd.f32 %v2411, %v2894
      %v2901 = vadd.f32 %v2412, %v2895
      %2902 = vst [vmem:[#allocation2] sm:$0xff] %v2896
      %2903 = vst [vmem:[#allocation2 + $0x8] sm:$0xff] %v2897
      %2904 = vst [vmem:[#allocation2 + $0x10] sm:$0xff] %v2898
      %2905 = vst [vmem:[#allocation2 + $0x18] sm:$0xff] %v2899
      %2906 = vst [vmem:[#allocation2 + $0x20] sm:$0xff] %v2900
      %2907 = vst [vmem:[#allocation2 + $0x28] sm:$0xff] %v2901
      %v2908 = vld [vmem:[#allocation2] sm:$0xff]
      %v2909 = vld [vmem:[#allocation2 + $0x8] sm:$0xff]
      %v2910 = vld [vmem:[#allocation2 + $0x10] sm:$0xff]
      %v2911 = vld [vmem:[#allocation2 + $0x18] sm:$0xff]
      %v2912 = vld [vmem:[#allocation2 + $0x20] sm:$0xff]
      %v2913 = vld [vmem:[#allocation2 + $0x28] sm:$0xff]
      %v2914 = vld [vmem:[%s8] sm:$0xff]
      %2915 = vrot.lane.b32.xlu0 %v2908, 19
      %v2916 = vpop.permute.xlu0 %2915
      %2917 = vrot.lane.b32.xlu0 %v2909, 19
      %v2918 = vpop.permute.xlu0 %2917
      %2919 = vrot.lane.b32.xlu0 %v2910, 19
      %v2920 = vpop.permute.xlu0 %2919
      %2921 = vrot.lane.b32.xlu0 %v2911, 19
      %v2922 = vpop.permute.xlu0 %2921
      %2923 = vrot.lane.b32.xlu0 %v2912, 19
      %v2924 = vpop.permute.xlu0 %2923
      %2925 = vrot.lane.b32.xlu0 %v2913, 19
      %v2926 = vpop.permute.xlu0 %2925
      %v2927 = vsel %vm439, %v2924, %v2926
      %v2928 = vsel %vm439, %v2922, %v2924
      %v2929 = vsel %vm439, %v2920, %v2922
      %v2930 = vsel %vm439, %v2918, %v2920
      %v2931 = vsel %vm439, %v2916, %v2918
      %v2932 = vsel %vm439, %v2926, %v2916
      %2933 = vst [vmem:[#allocation4] sm:$0xff] %v2932
      %2934 = vst [vmem:[#allocation4 + $0x8] sm:$0xff] %v2931
      %2935 = vst [vmem:[#allocation4 + $0x10] sm:$0xff] %v2930
      %2936 = vst [vmem:[#allocation4 + $0x18] sm:$0xff] %v2929
      %2937 = vst [vmem:[#allocation4 + $0x20] sm:$0xff] %v2928
      %2938 = vst [vmem:[#allocation4 + $0x28] sm:$0xff] %v2927
      %2939 = vrot.lane.b32.xlu0 %v2908, 18
      %v2940 = vpop.permute.xlu0 %2939
      %2941 = vrot.lane.b32.xlu0 %v2909, 18
      %v2942 = vpop.permute.xlu0 %2941
      %2943 = vrot.lane.b32.xlu0 %v2910, 18
      %v2944 = vpop.permute.xlu0 %2943
      %2945 = vrot.lane.b32.xlu0 %v2911, 18
      %v2946 = vpop.permute.xlu0 %2945
      %2947 = vrot.lane.b32.xlu0 %v2912, 18
      %v2948 = vpop.permute.xlu0 %2947
      %2949 = vrot.lane.b32.xlu0 %v2913, 18
      %v2950 = vpop.permute.xlu0 %2949
      %v2951 = vsel %vm464, %v2948, %v2950
      %v2952 = vsel %vm464, %v2946, %v2948
      %v2953 = vsel %vm464, %v2944, %v2946
      %v2954 = vsel %vm464, %v2942, %v2944
      %v2955 = vsel %vm464, %v2940, %v2942
      %v2956 = vsel %vm464, %v2950, %v2940
      %2957 = vst [vmem:[#allocation4 + $0x30] sm:$0xff] %v2956
      %2958 = vst [vmem:[#allocation4 + $0x38] sm:$0xff] %v2955
      %2959 = vst [vmem:[#allocation4 + $0x40] sm:$0xff] %v2954
      %2960 = vst [vmem:[#allocation4 + $0x48] sm:$0xff] %v2953
      %2961 = vst [vmem:[#allocation4 + $0x50] sm:$0xff] %v2952
      %2962 = vst [vmem:[#allocation4 + $0x58] sm:$0xff] %v2951
      %2963 = vrot.lane.b32.xlu0 %v2908, 17
      %v2964 = vpop.permute.xlu0 %2963
      %2965 = vrot.lane.b32.xlu0 %v2909, 17
      %v2966 = vpop.permute.xlu0 %2965
      %2967 = vrot.lane.b32.xlu0 %v2910, 17
      %v2968 = vpop.permute.xlu0 %2967
      %2969 = vrot.lane.b32.xlu0 %v2911, 17
      %v2970 = vpop.permute.xlu0 %2969
      %2971 = vrot.lane.b32.xlu0 %v2912, 17
      %v2972 = vpop.permute.xlu0 %2971
      %2973 = vrot.lane.b32.xlu0 %v2913, 17
      %v2974 = vpop.permute.xlu0 %2973
      %v2975 = vsel %vm489, %v2972, %v2974
      %v2976 = vsel %vm489, %v2970, %v2972
      %v2977 = vsel %vm489, %v2968, %v2970
      %v2978 = vsel %vm489, %v2966, %v2968
      %v2979 = vsel %vm489, %v2964, %v2966
      %v2980 = vsel %vm489, %v2974, %v2964
      %2981 = vst [vmem:[#allocation4 + $0x60] sm:$0xff] %v2980
      %2982 = vst [vmem:[#allocation4 + $0x68] sm:$0xff] %v2979
      %2983 = vst [vmem:[#allocation4 + $0x70] sm:$0xff] %v2978
      %2984 = vst [vmem:[#allocation4 + $0x78] sm:$0xff] %v2977
      %2985 = vst [vmem:[#allocation4 + $0x80] sm:$0xff] %v2976
      %2986 = vst [vmem:[#allocation4 + $0x88] sm:$0xff] %v2975
      %2987 = vrot.lane.b32.xlu0 %v2908, 1
      %v2988 = vpop.permute.xlu0 %2987
      %2989 = vrot.lane.b32.xlu0 %v2909, 1
      %v2990 = vpop.permute.xlu0 %2989
      %2991 = vrot.lane.b32.xlu0 %v2910, 1
      %v2992 = vpop.permute.xlu0 %2991
      %2993 = vrot.lane.b32.xlu0 %v2911, 1
      %v2994 = vpop.permute.xlu0 %2993
      %2995 = vrot.lane.b32.xlu0 %v2912, 1
      %v2996 = vpop.permute.xlu0 %2995
      %2997 = vrot.lane.b32.xlu0 %v2913, 1
      %v2998 = vpop.permute.xlu0 %2997
      %v2999 = vsel %vm514, %v2996, %v2998
      %v3000 = vsel %vm514, %v2994, %v2996
      %v3001 = vsel %vm514, %v2992, %v2994
      %v3002 = vsel %vm514, %v2990, %v2992
      %v3003 = vsel %vm514, %v2988, %v2990
      %v3004 = vsel %vm514, %v2998, %v2988
      %3005 = vst [vmem:[#allocation4 + $0x90] sm:$0xff] %v3004
      %3006 = vst [vmem:[#allocation4 + $0x98] sm:$0xff] %v3003
      %3007 = vst [vmem:[#allocation4 + $0xa0] sm:$0xff] %v3002
      %3008 = vst [vmem:[#allocation4 + $0xa8] sm:$0xff] %v3001
      %3009 = vst [vmem:[#allocation4 + $0xb0] sm:$0xff] %v3000
      %3010 = vst [vmem:[#allocation4 + $0xb8] sm:$0xff] %v2999
      %3011 = vst [vmem:[#allocation4 + $0xc0] sm:$0xff] %v2908
      %3012 = vst [vmem:[#allocation4 + $0xc8] sm:$0xff] %v2909
      %3013 = vst [vmem:[#allocation4 + $0xd0] sm:$0xff] %v2910
      %3014 = vst [vmem:[#allocation4 + $0xd8] sm:$0xff] %v2911
      %3015 = vst [vmem:[#allocation4 + $0xe0] sm:$0xff] %v2912
      %3016 = vst [vmem:[#allocation4 + $0xe8] sm:$0xff] %v2913
      %3017 = vrot.lane.b32.xlu0 %v2908, 127
      %v3018 = vpop.permute.xlu0 %3017
      %3019 = vrot.lane.b32.xlu0 %v2909, 127
      %v3020 = vpop.permute.xlu0 %3019
      %3021 = vrot.lane.b32.xlu0 %v2910, 127
      %v3022 = vpop.permute.xlu0 %3021
      %3023 = vrot.lane.b32.xlu0 %v2911, 127
      %v3024 = vpop.permute.xlu0 %3023
      %3025 = vrot.lane.b32.xlu0 %v2912, 127
      %v3026 = vpop.permute.xlu0 %3025
      %3027 = vrot.lane.b32.xlu0 %v2913, 127
      %v3028 = vpop.permute.xlu0 %3027
      %v3029 = vsel %vm545, %v3026, %v3028
      %v3030 = vsel %vm545, %v3024, %v3026
      %v3031 = vsel %vm545, %v3022, %v3024
      %v3032 = vsel %vm545, %v3020, %v3022
      %v3033 = vsel %vm545, %v3018, %v3020
      %v3034 = vsel %vm545, %v3028, %v3018
      %3035 = vst [vmem:[#allocation4 + $0xf0] sm:$0xff] %v3033
      %3036 = vst [vmem:[#allocation4 + $0xf8] sm:$0xff] %v3032
      %3037 = vst [vmem:[#allocation4 + $0x100] sm:$0xff] %v3031
      %3038 = vst [vmem:[#allocation4 + $0x108] sm:$0xff] %v3030
      %3039 = vst [vmem:[#allocation4 + $0x110] sm:$0xff] %v3029
      %3040 = vst [vmem:[#allocation4 + $0x118] sm:$0xff] %v3034
      %3041 = vrot.lane.b32.xlu0 %v2908, 111
      %v3042 = vpop.permute.xlu0 %3041
      %3043 = vrot.lane.b32.xlu0 %v2909, 111
      %v3044 = vpop.permute.xlu0 %3043
      %3045 = vrot.lane.b32.xlu0 %v2910, 111
      %v3046 = vpop.permute.xlu0 %3045
      %3047 = vrot.lane.b32.xlu0 %v2911, 111
      %v3048 = vpop.permute.xlu0 %3047
      %3049 = vrot.lane.b32.xlu0 %v2912, 111
      %v3050 = vpop.permute.xlu0 %3049
      %3051 = vrot.lane.b32.xlu0 %v2913, 111
      %v3052 = vpop.permute.xlu0 %3051
      %v3053 = vsel %vm570, %v3050, %v3052
      %v3054 = vsel %vm570, %v3048, %v3050
      %v3055 = vsel %vm570, %v3046, %v3048
      %v3056 = vsel %vm570, %v3044, %v3046
      %v3057 = vsel %vm570, %v3042, %v3044
      %v3058 = vsel %vm570, %v3052, %v3042
      %3059 = vst [vmem:[#allocation4 + $0x120] sm:$0xff] %v3057
      %3060 = vst [vmem:[#allocation4 + $0x128] sm:$0xff] %v3056
      %3061 = vst [vmem:[#allocation4 + $0x130] sm:$0xff] %v3055
      %3062 = vst [vmem:[#allocation4 + $0x138] sm:$0xff] %v3054
      %3063 = vst [vmem:[#allocation4 + $0x140] sm:$0xff] %v3053
      %3064 = vst [vmem:[#allocation4 + $0x148] sm:$0xff] %v3058
      %3065 = vrot.lane.b32.xlu0 %v2908, 110
      %v3066 = vpop.permute.xlu0 %3065
      %3067 = vrot.lane.b32.xlu0 %v2909, 110
      %v3068 = vpop.permute.xlu0 %3067
      %3069 = vrot.lane.b32.xlu0 %v2910, 110
      %v3070 = vpop.permute.xlu0 %3069
      %3071 = vrot.lane.b32.xlu0 %v2911, 110
      %v3072 = vpop.permute.xlu0 %3071
      %3073 = vrot.lane.b32.xlu0 %v2912, 110
      %v3074 = vpop.permute.xlu0 %3073
      %3075 = vrot.lane.b32.xlu0 %v2913, 110
      %v3076 = vpop.permute.xlu0 %3075
      %v3077 = vsel %vm595, %v3074, %v3076
      %v3078 = vsel %vm595, %v3072, %v3074
      %v3079 = vsel %vm595, %v3070, %v3072
      %v3080 = vsel %vm595, %v3068, %v3070
      %v3081 = vsel %vm595, %v3066, %v3068
      %v3082 = vsel %vm595, %v3076, %v3066
      %3083 = vst [vmem:[#allocation4 + $0x150] sm:$0xff] %v3081
      %3084 = vst [vmem:[#allocation4 + $0x158] sm:$0xff] %v3080
      %3085 = vst [vmem:[#allocation4 + $0x160] sm:$0xff] %v3079
      %3086 = vst [vmem:[#allocation4 + $0x168] sm:$0xff] %v3078
      %3087 = vst [vmem:[#allocation4 + $0x170] sm:$0xff] %v3077
      %3088 = vst [vmem:[#allocation4 + $0x178] sm:$0xff] %v3082
      %3089 = vrot.lane.b32.xlu0 %v2908, 109
      %v3090 = vpop.permute.xlu0 %3089
      %3091 = vrot.lane.b32.xlu0 %v2909, 109
      %v3092 = vpop.permute.xlu0 %3091
      %3093 = vrot.lane.b32.xlu0 %v2910, 109
      %v3094 = vpop.permute.xlu0 %3093
      %3095 = vrot.lane.b32.xlu0 %v2911, 109
      %v3096 = vpop.permute.xlu0 %3095
      %3097 = vrot.lane.b32.xlu0 %v2912, 109
      %v3098 = vpop.permute.xlu0 %3097
      %3099 = vrot.lane.b32.xlu0 %v2913, 109
      %v3100 = vpop.permute.xlu0 %3099
      %v3101 = vsel %vm620, %v3098, %v3100
      %v3102 = vsel %vm620, %v3096, %v3098
      %v3103 = vsel %vm620, %v3094, %v3096
      %v3104 = vsel %vm620, %v3092, %v3094
      %v3105 = vsel %vm620, %v3090, %v3092
      %v3106 = vsel %vm620, %v3100, %v3090
      %3107 = vst [vmem:[#allocation4 + $0x180] sm:$0xff] %v3105
      %3108 = vst [vmem:[#allocation4 + $0x188] sm:$0xff] %v3104
      %3109 = vst [vmem:[#allocation4 + $0x190] sm:$0xff] %v3103
      %3110 = vst [vmem:[#allocation4 + $0x198] sm:$0xff] %v3102
      %3111 = vst [vmem:[#allocation4 + $0x1a0] sm:$0xff] %v3101
      %3112 = vst [vmem:[#allocation4 + $0x1a8] sm:$0xff] %v3106
      %v3113 = vld [vmem:[#allocation4] sm:$0xff]
      %v3114 = vld [vmem:[#allocation4 + $0x8] sm:$0xff]
      %v3115 = vld [vmem:[#allocation4 + $0x10] sm:$0xff]
      %v3116 = vld [vmem:[#allocation4 + $0x18] sm:$0xff]
      %v3117 = vld [vmem:[#allocation4 + $0x20] sm:$0xff]
      %v3118 = vld [vmem:[#allocation4 + $0x28] sm:$0xff]
      %v3119 = vld [vmem:[#allocation4 + $0x30] sm:$0xff]
      %v3120 = vld [vmem:[#allocation4 + $0x38] sm:$0xff]
      %v3121 = vld [vmem:[#allocation4 + $0x40] sm:$0xff]
      %v3122 = vld [vmem:[#allocation4 + $0x48] sm:$0xff]
      %v3123 = vld [vmem:[#allocation4 + $0x50] sm:$0xff]
      %v3124 = vld [vmem:[#allocation4 + $0x58] sm:$0xff]
      %v3125 = vld [vmem:[#allocation4 + $0x60] sm:$0xff]
      %v3126 = vld [vmem:[#allocation4 + $0x68] sm:$0xff]
      %v3127 = vld [vmem:[#allocation4 + $0x70] sm:$0xff]
      %v3128 = vld [vmem:[#allocation4 + $0x78] sm:$0xff]
      %v3129 = vld [vmem:[#allocation4 + $0x80] sm:$0xff]
      %v3130 = vld [vmem:[#allocation4 + $0x88] sm:$0xff]
      %v3131 = vld [vmem:[#allocation4 + $0x90] sm:$0xff]
      %v3132 = vld [vmem:[#allocation4 + $0x98] sm:$0xff]
      %v3133 = vld [vmem:[#allocation4 + $0xa0] sm:$0xff]
      %v3134 = vld [vmem:[#allocation4 + $0xa8] sm:$0xff]
      %v3135 = vld [vmem:[#allocation4 + $0xb0] sm:$0xff]
      %v3136 = vld [vmem:[#allocation4 + $0xb8] sm:$0xff]
      %v3137 = vld [vmem:[#allocation4 + $0xc0] sm:$0xff]
      %v3138 = vld [vmem:[#allocation4 + $0xc8] sm:$0xff]
      %v3139 = vld [vmem:[#allocation4 + $0xd0] sm:$0xff]
      %v3140 = vld [vmem:[#allocation4 + $0xd8] sm:$0xff]
      %v3141 = vld [vmem:[#allocation4 + $0xe0] sm:$0xff]
      %v3142 = vld [vmem:[#allocation4 + $0xe8] sm:$0xff]
      %v3143 = vld [vmem:[#allocation4 + $0xf0] sm:$0xff]
      %v3144 = vld [vmem:[#allocation4 + $0xf8] sm:$0xff]
      %v3145 = vld [vmem:[#allocation4 + $0x100] sm:$0xff]
      %v3146 = vld [vmem:[#allocation4 + $0x108] sm:$0xff]
      %v3147 = vld [vmem:[#allocation4 + $0x110] sm:$0xff]
      %v3148 = vld [vmem:[#allocation4 + $0x118] sm:$0xff]
      %v3149 = vld [vmem:[#allocation4 + $0x120] sm:$0xff]
      %v3150 = vld [vmem:[#allocation4 + $0x128] sm:$0xff]
      %v3151 = vld [vmem:[#allocation4 + $0x130] sm:$0xff]
      %v3152 = vld [vmem:[#allocation4 + $0x138] sm:$0xff]
      %v3153 = vld [vmem:[#allocation4 + $0x140] sm:$0xff]
      %v3154 = vld [vmem:[#allocation4 + $0x148] sm:$0xff]
      %v3155 = vld [vmem:[#allocation4 + $0x150] sm:$0xff]
      %v3156 = vld [vmem:[#allocation4 + $0x158] sm:$0xff]
      %v3157 = vld [vmem:[#allocation4 + $0x160] sm:$0xff]
      %v3158 = vld [vmem:[#allocation4 + $0x168] sm:$0xff]
      %v3159 = vld [vmem:[#allocation4 + $0x170] sm:$0xff]
      %v3160 = vld [vmem:[#allocation4 + $0x178] sm:$0xff]
      %v3161 = vld [vmem:[#allocation4 + $0x180] sm:$0xff]
      %v3162 = vld [vmem:[#allocation4 + $0x188] sm:$0xff]
      %v3163 = vld [vmem:[#allocation4 + $0x190] sm:$0xff]
      %v3164 = vld [vmem:[#allocation4 + $0x198] sm:$0xff]
      %v3165 = vld [vmem:[#allocation4 + $0x1a0] sm:$0xff]
      %v3166 = vld [vmem:[#allocation4 + $0x1a8] sm:$0xff]
      %v3168 = vsel %vm687, %v2914, 0
      %3170 = vmatprep.subr.mxu0 0.0
      %3171 = vmatpush1.msra.mxu0 0.0
      %3172 = vmatprep.subr.mxu0 0.0
      %3173 = vmatpush1.msra.mxu0 0.0
      %3174 = vmatprep.subr.mxu0 0.0
      %3175 = vmatpush1.msra.mxu0 0.0
      %3176 = vmatprep.subr.mxu0 0.0
      %3177 = vmatpush1.msra.mxu0 0.0
      %3178 = vmatprep.subr.mxu0 0.0
      %3179 = vmatpush1.msra.mxu0 0.0
      %3180 = vmatprep.subr.mxu0 0.0
      %3181 = vmatpush1.msra.mxu0 0.0
      %3182 = vmatprep.subr.mxu0 0.0
      %3183 = vmatpush1.msra.mxu0 0.0
      %3184 = vmatprep.subr.mxu0 %v3162
      %3185 = vmatpush1.msra.mxu0 %v3161
      %3186 = vmatprep.subr.mxu0 %v3156
      %3187 = vmatpush1.msra.mxu0 %v3155
      %3188 = vmatprep.subr.mxu0 %v3150
      %3189 = vmatpush1.msra.mxu0 %v3149
      %3190 = vmatprep.subr.mxu0 %v3144
      %3191 = vmatpush1.msra.mxu0 %v3143
      %3192 = vmatprep.subr.mxu0 %v3138
      %3193 = vmatpush1.msra.mxu0 %v3137
      %3194 = vmatprep.subr.mxu0 %v3132
      %3195 = vmatpush1.msra.mxu0 %v3131
      %3196 = vmatprep.subr.mxu0 %v3126
      %3197 = vmatpush1.msra.mxu0 %v3125
      %3198 = vmatprep.subr.mxu0 %v3120
      %3199 = vmatpush1.msra.mxu0 %v3119
      %3200 = vmatprep.subr.mxu0 %v3114
      %3201 = vmatpush1.msra.mxu0 %v3113
      %3202 = vmatprep.subr.mxu0 0.0
      %3203 = vmatpush2.msra.mxu0 0.0
      %3204 = vmatprep.subr.mxu0 0.0
      %3205 = vmatpush2.msra.mxu0 0.0
      %3206 = vmatprep.subr.mxu0 0.0
      %3207 = vmatpush2.msra.mxu0 0.0
      %3208 = vmatprep.subr.mxu0 0.0
      %3209 = vmatpush2.msra.mxu0 0.0
      %3210 = vmatprep.subr.mxu0 0.0
      %3211 = vmatpush2.msra.mxu0 0.0
      %3212 = vmatprep.subr.mxu0 0.0
      %3213 = vmatpush2.msra.mxu0 0.0
      %3214 = vmatprep.subr.mxu0 0.0
      %3215 = vmatpush2.msra.mxu0 0.0
      %3216 = vmatprep.subr.mxu0 0.0
      %3217 = vmatpush2.msra.mxu0 0.0
      %3218 = vmatprep.subr.mxu0 0.0
      %3219 = vmatpush2.msra.mxu0 0.0
      %3220 = vmatprep.subr.mxu0 0.0
      %3221 = vmatpush2.msra.mxu0 0.0
      %3222 = vmatprep.subr.mxu0 0.0
      %3223 = vmatpush2.msra.mxu0 0.0
      %3224 = vmatprep.subr.mxu0 0.0
      %3225 = vmatpush2.msra.mxu0 0.0
      %3226 = vmatprep.subr.mxu0 0.0
      %3227 = vmatpush2.msra.mxu0 0.0
      %3228 = vmatprep.subr.mxu0 0.0
      %3229 = vmatpush2.msra.mxu0 0.0
      %3230 = vmatprep.subr.mxu0 0.0
      %3231 = vmatpush2.msra.mxu0 0.0
      %3232 = vmatprep.subr.mxu0 0.0
      %3233 = vmatpush2.msra.mxu0 0.0
      %3234 = vmatprep.mubr.f32.mxu0 0.0
      %3235 = vmatmul.mubr.f32.gmra.mxu0 %v3168
      %v3236 = vpop.f32.mrf.mxu0
      %v3237 = vadd.f32 %v414, %v3236
      %v3238 = vpop.f32.mrf.mxu0
      %v3239 = vadd.f32 %v414, %v3238
      %3240 = vdwg.mxu0
      %3241 = vmatprep.subr.mxu0 0.0
      %3242 = vmatpush1.msra.mxu0 0.0
      %3243 = vmatprep.subr.mxu0 0.0
      %3244 = vmatpush1.msra.mxu0 0.0
      %3245 = vmatprep.subr.mxu0 0.0
      %3246 = vmatpush1.msra.mxu0 0.0
      %3247 = vmatprep.subr.mxu0 0.0
      %3248 = vmatpush1.msra.mxu0 0.0
      %3249 = vmatprep.subr.mxu0 0.0
      %3250 = vmatpush1.msra.mxu0 0.0
      %3251 = vmatprep.subr.mxu0 0.0
      %3252 = vmatpush1.msra.mxu0 0.0
      %3253 = vmatprep.subr.mxu0 0.0
      %3254 = vmatpush1.msra.mxu0 0.0
      %3255 = vmatprep.subr.mxu0 %v3164
      %3256 = vmatpush1.msra.mxu0 %v3163
      %3257 = vmatprep.subr.mxu0 %v3158
      %3258 = vmatpush1.msra.mxu0 %v3157
      %3259 = vmatprep.subr.mxu0 %v3152
      %3260 = vmatpush1.msra.mxu0 %v3151
      %3261 = vmatprep.subr.mxu0 %v3146
      %3262 = vmatpush1.msra.mxu0 %v3145
      %3263 = vmatprep.subr.mxu0 %v3140
      %3264 = vmatpush1.msra.mxu0 %v3139
      %3265 = vmatprep.subr.mxu0 %v3134
      %3266 = vmatpush1.msra.mxu0 %v3133
      %3267 = vmatprep.subr.mxu0 %v3128
      %3268 = vmatpush1.msra.mxu0 %v3127
      %3269 = vmatprep.subr.mxu0 %v3122
      %3270 = vmatpush1.msra.mxu0 %v3121
      %3271 = vmatprep.subr.mxu0 %v3116
      %3272 = vmatpush1.msra.mxu0 %v3115
      %3273 = vmatprep.subr.mxu0 0.0
      %3274 = vmatpush2.msra.mxu0 0.0
      %3275 = vmatprep.subr.mxu0 0.0
      %3276 = vmatpush2.msra.mxu0 0.0
      %3277 = vmatprep.subr.mxu0 0.0
      %3278 = vmatpush2.msra.mxu0 0.0
      %3279 = vmatprep.subr.mxu0 0.0
      %3280 = vmatpush2.msra.mxu0 0.0
      %3281 = vmatprep.subr.mxu0 0.0
      %3282 = vmatpush2.msra.mxu0 0.0
      %3283 = vmatprep.subr.mxu0 0.0
      %3284 = vmatpush2.msra.mxu0 0.0
      %3285 = vmatprep.subr.mxu0 0.0
      %3286 = vmatpush2.msra.mxu0 0.0
      %3287 = vmatprep.subr.mxu0 0.0
      %3288 = vmatpush2.msra.mxu0 0.0
      %3289 = vmatprep.subr.mxu0 0.0
      %3290 = vmatpush2.msra.mxu0 0.0
      %3291 = vmatprep.subr.mxu0 0.0
      %3292 = vmatpush2.msra.mxu0 0.0
      %3293 = vmatprep.subr.mxu0 0.0
      %3294 = vmatpush2.msra.mxu0 0.0
      %3295 = vmatprep.subr.mxu0 0.0
      %3296 = vmatpush2.msra.mxu0 0.0
      %3297 = vmatprep.subr.mxu0 0.0
      %3298 = vmatpush2.msra.mxu0 0.0
      %3299 = vmatprep.subr.mxu0 0.0
      %3300 = vmatpush2.msra.mxu0 0.0
      %3301 = vmatprep.subr.mxu0 0.0
      %3302 = vmatpush2.msra.mxu0 0.0
      %3303 = vmatprep.subr.mxu0 0.0
      %3304 = vmatpush2.msra.mxu0 0.0
      %3305 = vmatprep.mubr.f32.mxu0 0.0
      %3306 = vmatmul.mubr.f32.gmra.mxu0 %v3168
      %v3307 = vpop.f32.mrf.mxu0
      %v3308 = vadd.f32 %v414, %v3307
      %v3309 = vpop.f32.mrf.mxu0
      %v3310 = vadd.f32 %v414, %v3309
      %3311 = vdwg.mxu0
      %3312 = vmatprep.subr.mxu0 0.0
      %3313 = vmatpush1.msra.mxu0 0.0
      %3314 = vmatprep.subr.mxu0 0.0
      %3315 = vmatpush1.msra.mxu0 0.0
      %3316 = vmatprep.subr.mxu0 0.0
      %3317 = vmatpush1.msra.mxu0 0.0
      %3318 = vmatprep.subr.mxu0 0.0
      %3319 = vmatpush1.msra.mxu0 0.0
      %3320 = vmatprep.subr.mxu0 0.0
      %3321 = vmatpush1.msra.mxu0 0.0
      %3322 = vmatprep.subr.mxu0 0.0
      %3323 = vmatpush1.msra.mxu0 0.0
      %3324 = vmatprep.subr.mxu0 0.0
      %3325 = vmatpush1.msra.mxu0 0.0
      %3326 = vmatprep.subr.mxu0 %v3166
      %3327 = vmatpush1.msra.mxu0 %v3165
      %3328 = vmatprep.subr.mxu0 %v3160
      %3329 = vmatpush1.msra.mxu0 %v3159
      %3330 = vmatprep.subr.mxu0 %v3154
      %3331 = vmatpush1.msra.mxu0 %v3153
      %3332 = vmatprep.subr.mxu0 %v3148
      %3333 = vmatpush1.msra.mxu0 %v3147
      %3334 = vmatprep.subr.mxu0 %v3142
      %3335 = vmatpush1.msra.mxu0 %v3141
      %3336 = vmatprep.subr.mxu0 %v3136
      %3337 = vmatpush1.msra.mxu0 %v3135
      %3338 = vmatprep.subr.mxu0 %v3130
      %3339 = vmatpush1.msra.mxu0 %v3129
      %3340 = vmatprep.subr.mxu0 %v3124
      %3341 = vmatpush1.msra.mxu0 %v3123
      %3342 = vmatprep.subr.mxu0 %v3118
      %3343 = vmatpush1.msra.mxu0 %v3117
      %3344 = vmatprep.subr.mxu0 0.0
      %3345 = vmatpush2.msra.mxu0 0.0
      %3346 = vmatprep.subr.mxu0 0.0
      %3347 = vmatpush2.msra.mxu0 0.0
      %3348 = vmatprep.subr.mxu0 0.0
      %3349 = vmatpush2.msra.mxu0 0.0
      %3350 = vmatprep.subr.mxu0 0.0
      %3351 = vmatpush2.msra.mxu0 0.0
      %3352 = vmatprep.subr.mxu0 0.0
      %3353 = vmatpush2.msra.mxu0 0.0
      %3354 = vmatprep.subr.mxu0 0.0
      %3355 = vmatpush2.msra.mxu0 0.0
      %3356 = vmatprep.subr.mxu0 0.0
      %3357 = vmatpush2.msra.mxu0 0.0
      %3358 = vmatprep.subr.mxu0 0.0
      %3359 = vmatpush2.msra.mxu0 0.0
      %3360 = vmatprep.subr.mxu0 0.0
      %3361 = vmatpush2.msra.mxu0 0.0
      %3362 = vmatprep.subr.mxu0 0.0
      %3363 = vmatpush2.msra.mxu0 0.0
      %3364 = vmatprep.subr.mxu0 0.0
      %3365 = vmatpush2.msra.mxu0 0.0
      %3366 = vmatprep.subr.mxu0 0.0
      %3367 = vmatpush2.msra.mxu0 0.0
      %3368 = vmatprep.subr.mxu0 0.0
      %3369 = vmatpush2.msra.mxu0 0.0
      %3370 = vmatprep.subr.mxu0 0.0
      %3371 = vmatpush2.msra.mxu0 0.0
      %3372 = vmatprep.subr.mxu0 0.0
      %3373 = vmatpush2.msra.mxu0 0.0
      %3374 = vmatprep.subr.mxu0 0.0
      %3375 = vmatpush2.msra.mxu0 0.0
      %3376 = vmatprep.mubr.f32.mxu0 0.0
      %3377 = vmatmul.mubr.f32.gmra.mxu0 %v3168
      %v3378 = vpop.f32.mrf.mxu0
      %v3379 = vadd.f32 %v414, %v3378
      %v3380 = vpop.f32.mrf.mxu0
      %v3381 = vadd.f32 %v414, %v3380
      %3382 = vdwg.mxu0
      %v3383 = vxor.u32 %v3237, 2147483648
      %v3384 = vxor.u32 %v3239, 2147483648
      %v3385 = vxor.u32 %v3308, 2147483648
      %v3386 = vxor.u32 %v3310, 2147483648
      %v3387 = vxor.u32 %v3379, 2147483648
      %v3388 = vxor.u32 %v3381, 2147483648
      %v3389 = vmul.f32 %v3383, 1.442695
      %v3390 = vpow.pop %v3389
      %v3391 = vmul.f32 %v3384, 1.442695
      %v3392 = vpow.pop %v3391
      %v3393 = vmul.f32 %v3385, 1.442695
      %v3394 = vpow.pop %v3393
      %v3395 = vmul.f32 %v3386, 1.442695
      %v3396 = vpow.pop %v3395
      %v3397 = vmul.f32 %v3387, 1.442695
      %v3398 = vpow.pop %v3397
      %v3399 = vmul.f32 %v3388, 1.442695
      %v3400 = vpow.pop %v3399
      %v3401 = vadd.f32 %v3390, 1.0
      %v3402 = vadd.f32 %v3392, 1.0
      %v3403 = vadd.f32 %v3394, 1.0
      %v3404 = vadd.f32 %v3396, 1.0
      %v3405 = vadd.f32 %v3398, 1.0
      %v3406 = vadd.f32 %v3400, 1.0
      %v3407 = vrcp.pop %v3401
      %v3408 = vmul.f32 1.0, %v3407
      %v3409 = vrcp.pop %v3402
      %v3410 = vmul.f32 1.0, %v3409
      %v3411 = vrcp.pop %v3403
      %v3412 = vmul.f32 1.0, %v3411
      %v3413 = vrcp.pop %v3404
      %v3414 = vmul.f32 1.0, %v3413
      %v3415 = vrcp.pop %v3405
      %v3416 = vmul.f32 1.0, %v3415
      %v3417 = vrcp.pop %v3406
      %v3418 = vmul.f32 1.0, %v3417
      %v3419 = vsub.f32 %v418, %v3408
      %v3420 = vsub.f32 %v419, %v3410
      %v3421 = vsub.f32 %v420, %v3412
      %v3422 = vsub.f32 %v421, %v3414
      %v3423 = vsub.f32 %v422, %v3416
      %v3424 = vsub.f32 %v423, %v3418
      %3425 = vst [vmem:[%s359] sm:$0xff] %v3419
      %3426 = vst [vmem:[%s359 + $0x8] sm:$0xff] %v3420
      %3427 = vst [vmem:[%s359 + $0x10] sm:$0xff] %v3421
      %3428 = vst [vmem:[%s359 + $0x18] sm:$0xff] %v3422
      %3429 = vst [vmem:[%s359 + $0x20] sm:$0xff] %v3423
      %3430 = vst [vmem:[%s359 + $0x28] sm:$0xff] %v3424
      %p3431 = scmp.lt.s32.totalorder %s21, 1
      %s3432 = scalar_select %p3431, %s21, 1
      %s3433 = smul.addr %s3432, 6
      %s3434 = smul.addr %s3433, 8
      %s3435 = scalar_lea.vmem %s10, %s3434
      // Predicated region
      $region61: #{calibrate_network_forward.1} parent=59 // pred_check
        %p3436 = pneg %p254
      $region62: #{calibrate_network_forward.1} parent=59 // pred_check_branch
        %3438 = sbr.rel (%p3436) target = $region64
      $region63: #{calibrate_network_forward.1} parent=59 // pred_region
        _
      $region64: #{calibrate_network_forward.1} parent=59 // pred_fallthru
        _
    $region60: #{calibrate_network_forward.1} parent=5 // pred_fallthru
      _
    %p3439 = scmp.le.s32.totalorder 2, %s16
    // Predicated region
    $region65: #{calibrate_network_forward.1} parent=5 // pred_check
      %p3440 = pneg %p3439
    $region66: #{calibrate_network_forward.1} parent=5 // pred_check_branch
      %3442 = sbr.rel (%p3440) target = $region68
    $region67: #{calibrate_network_forward.1} parent=5 // pred_region
      %s3443 = ssub.s32 %s16, 2
      // Predicated region
      $region69: #{calibrate_network_forward.1} parent=67 // pred_check
        %p3444 = pneg %p260
      $region70: #{calibrate_network_forward.1} parent=67 // pred_check_branch
        %3446 = sbr.rel (%p3444) target = $region72
      $region71: #{calibrate_network_forward.1} parent=67 // pred_region
        %p3447 = scmp.lt.s32.totalorder %s22, 1
        %s3448 = scalar_select %p3447, %s22, 1
        %s3449 = smul.addr %s3448, 6
        %s3450 = smul.addr %s3449, 8
        %s3451 = scalar_lea.vmem %s10, %s3450
      $region72: #{calibrate_network_forward.1} parent=67 // pred_fallthru
        _
    $region68: #{calibrate_network_forward.1} parent=5 // pred_fallthru
      _
  $region6: #{calibrate_network_forward.1} parent=0 // loop_footer
    %s20 = sadd.s32 1, %s16
  $region7: #{calibrate_network_forward.1} parent=0 // loop_footer_branch
    %15 = sbr.rel target = $region3
  $region8: #{calibrate_network_forward.1} parent=0 // loop_exit
    _

</llo_original>
